<compile_context>
chip_gen: v5e
topology: v5e:2x2
jax: 0.10.0
libtpu: 0.0.40
codegen_flags: <defaults>
</compile_context>

<pallas_src>
import math

import numpy as np

import jax
import jax.numpy as jnp
from jax.experimental import pallas as pl
from jax.experimental.pallas import tpu as pltpu


def round_up(x, m):
    return ((x + m - 1) // m) * m


# --------------------------- fused encoder kernel ----------------------------

def _encoder_kernel(x_ref, *refs):
    """Whole encoder in one kernel invocation.

    refs = (w0, b0, w1, b1, ..., w4, b4, o_ref).
      x_ref : (M0, Cp)  bf16   tap-major permuted, channel-padded input rows
      w_i   : (Kp, Np)  bf16   zero-padded weights (lane-dense)
      b_i   : (1, Np)   f32
      o_ref : (M4, N)   f32    bottleneck activation rows
    Each stage: relu(h @ W + b); between stages the 2x2 max-pool is an
    elementwise max of four contiguous, sublane-aligned row slabs.
    """
    o_ref = refs[-1]
    wb = refs[:-1]
    n_layers = len(wb) // 2

    h = x_ref[...]                                            # bf16
    for li in range(n_layers):
        w_ref, b_ref = wb[2 * li], wb[2 * li + 1]
        y = jnp.dot(h.astype(jnp.bfloat16), w_ref[...],
                    preferred_element_type=jnp.float32)
        y = jnp.maximum(y + b_ref[...], 0.0)                  # fused bias+ReLU
        if li < n_layers - 1:                                 # fused MaxPool2d(2)
            q = y.shape[0] // 4
            y = jnp.maximum(jnp.maximum(y[0 * q:1 * q], y[1 * q:2 * q]),
                            jnp.maximum(y[2 * q:3 * q], y[3 * q:4 * q]))
        h = y
    o_ref[...] = h                                            # f32


# --------------------------- tap-major permutation ---------------------------

def _tap_major_perm(bp, h, w, depth):
    """Row order for the flattened (b, h, w) grid such that, at every pooling
    level l, the four taps (h bit l, w bit l) of each 2x2 window sit in four
    contiguous, equally sized row slabs (tap index is the most significant sort
    key, recursively; batch / residual spatial coords are least significant, so
    the final rows come out (b, h>>depth, w>>depth)-major)."""
    assert h % (1 << depth) == 0 and w % (1 << depth) == 0, (
        "fused encoder path needs spatial dims divisible by 2**depth")
    bb, hh, ww = np.meshgrid(np.arange(bp), np.arange(h), np.arange(w),
                             indexing="ij")
    key = np.zeros_like(bb)
    for l in range(depth):
        key = key * 4 + (((hh >> l) & 1) * 2 + ((ww >> l) & 1))
    hr, wr = h >> depth, w >> depth
    key = ((key * bp + bb) * hr + (hh >> depth)) * wr + (ww >> depth)
    return np.argsort(key.reshape(-1), kind="stable").astype(np.int32)


# ----------------------------- parameters ------------------------------------

def build_params(key, in_channels):
    """downs = [Linear(in,64)] + [Linear(64*2^i, 128*2^i) for i in 0..3];
    torch default init; weights stored (K, N) in bf16, biases in f32."""
    dims_in = [in_channels, 64, 128, 256, 512]
    dims_out = [64, 128, 256, 512, 1024]
    downs = []
    for li, (ki, no) in enumerate(zip(dims_in, dims_out)):
        kw, kb = jax.random.split(jax.random.fold_in(key, li))
        bound = 1.0 / math.sqrt(ki)
        w = jax.random.uniform(kw, (ki, no), jnp.float32, -bound, bound)
        bias = jax.random.uniform(kb, (no,), jnp.float32, -bound, bound)
        downs.append((w.astype(jnp.bfloat16), bias))
    return {"downs": downs}


# ----------------------------- forward pass -----------------------------------

def forward(x, params):
    downs = params["downs"]
    depth = len(downs) - 1
    B, H, W, Cin = x.shape
    N_out = downs[-1][0].shape[1]
    Hr, Wr = H >> depth, W >> depth

    Bp = round_up(B, 8)            # slab (sublane) alignment for every pool
    Cp = round_up(Cin, 128)        # lane-dense first matmul

    # tap-major permutation of the flattened rows (static, trace-time).
    perm = jnp.asarray(_tap_major_perm(Bp, H, W, depth))
    xp = jnp.pad(x, ((0, Bp - B), (0, 0), (0, 0), (0, 0)))
    xf = xp.reshape(Bp * H * W, Cin)[perm]
    xf = jnp.pad(xf, ((0, 0), (0, Cp - Cin))).astype(jnp.bfloat16)

    # zero-pad weights so every operand is lane-dense (exact: padded output
    # channels are relu(0+0)=0 and hit zero rows of the next weight).
    prev = Cp
    args = [xf]
    in_specs = [pl.BlockSpec(xf.shape, lambda i: (0, 0))]
    for (w, b) in downs:
        K, N = w.shape
        Np = round_up(N, 128)
        wp = jnp.zeros((prev, Np), jnp.bfloat16).at[:K, :N].set(
            w.astype(jnp.bfloat16))
        bias_p = jnp.zeros((1, Np), jnp.float32).at[0, :N].set(
            b.astype(jnp.float32))
        args += [wp, bias_p]
        in_specs += [pl.BlockSpec((prev, Np), lambda i: (0, 0)),
                     pl.BlockSpec((1, Np), lambda i: (0, 0))]
        prev = Np

    M_out = Bp * Hr * Wr
    Np_out = prev                   # last layer's (already 128-aligned) width
    out = pl.pallas_call(
        _encoder_kernel,
        out_shape=jax.ShapeDtypeStruct((M_out, Np_out), jnp.float32),
        grid=(1,),
        in_specs=in_specs,
        out_specs=pl.BlockSpec((M_out, Np_out), lambda i: (0, 0)),
        compiler_params=pltpu.CompilerParams(
            dimension_semantics=("arbitrary",)),
    )(*args)

    # rows are (b, hr, wr)-major; drop padded batches / padded channels.
    return out[:B * Hr * Wr, :N_out].reshape(B, Hr, Wr, N_out)


# ----------------------------- pure-JAX reference -----------------------------

def reference_forward(x, params):
    downs = params["downs"]

    def lin(h, w, b):
        y = jnp.dot(h.astype(jnp.bfloat16), w, preferred_element_type=jnp.float32)
        return jnp.maximum(y + b, 0.0)

    def pool(h):   # MaxPool2d(2, ceil_mode=True) over (H, W) of NHWC
        B, H, W, C = h.shape
        h = jnp.pad(h, ((0, 0), (0, H % 2), (0, W % 2), (0, 0)),
                    constant_values=-jnp.inf)
        return h.reshape(B, (H + 1) // 2, 2, (W + 1) // 2, 2, C).max(axis=(2, 4))

    h = x.astype(jnp.bfloat16)
    for (w, b) in downs[:-1]:
        h = pool(lin(h, w, b))
    w, b = downs[-1]
    return lin(h, w, b)


# ----------------------------- main -------------------------------------------

if __name__ == "__main__":
    key = jax.random.PRNGKey(0)
    in_channels = 4
    params = build_params(key, in_channels)

    # channels-last input: nn.Linear acts on the last (channel) dimension.
    x = jax.random.normal(jax.random.fold_in(key, 12345),
                          (2, 16, 16, in_channels), jnp.float32)

    y = jax.block_until_ready(jax.jit(forward)(x, params))
    assert y.shape == (2, 1, 1, 1024)
    assert bool(jnp.all(jnp.isfinite(y)))

    y_ref = jax.block_until_ready(jax.jit(reference_forward)(x, params))
    err = float(jnp.max(jnp.abs(y - y_ref)))
    scale = float(jnp.max(jnp.abs(y_ref)))
    assert err <= 1e-2 * scale + 1e-3, f"mismatch: err={err} scale={scale}"

    print("KERNEL_OK")
</pallas_src>

<mosaic_0001>
module attributes {stable_mosaic.version = 11 : i64} {
  func.func @_encoder_kernel(%arg0: i32, %arg1: memref<2048x128xbf16, #tpu.memory_space<vmem>>, %arg2: memref<128x128xbf16, #tpu.memory_space<vmem>>, %arg3: memref<1x128xf32, #tpu.memory_space<vmem>>, %arg4: memref<128x128xbf16, #tpu.memory_space<vmem>>, %arg5: memref<1x128xf32, #tpu.memory_space<vmem>>, %arg6: memref<128x256xbf16, #tpu.memory_space<vmem>>, %arg7: memref<1x256xf32, #tpu.memory_space<vmem>>, %arg8: memref<256x512xbf16, #tpu.memory_space<vmem>>, %arg9: memref<1x512xf32, #tpu.memory_space<vmem>>, %arg10: memref<512x1024xbf16, #tpu.memory_space<vmem>>, %arg11: memref<1x1024xf32, #tpu.memory_space<vmem>>, %arg12: memref<8x1024xf32, #tpu.memory_space<vmem>>) attributes {dimension_semantics = [#tpu.dimension_semantics<arbitrary>], iteration_bounds = array<i64: 1>, scalar_prefetch = 0 : i64, scratch_operands = 0 : i64, tpu.core_type = #tpu.core_type<tc>, window_params = [{pipeline_mode = #tpu.pipeline_mode<synchronous>, transform_indices = @transform_0, window_bounds = array<i64: 2048, 128>}, {pipeline_mode = #tpu.pipeline_mode<synchronous>, transform_indices = @transform_1, window_bounds = array<i64: 128, 128>}, {pipeline_mode = #tpu.pipeline_mode<synchronous>, transform_indices = @transform_2, window_bounds = array<i64: 1, 128>}, {pipeline_mode = #tpu.pipeline_mode<synchronous>, transform_indices = @transform_3, window_bounds = array<i64: 128, 128>}, {pipeline_mode = #tpu.pipeline_mode<synchronous>, transform_indices = @transform_4, window_bounds = array<i64: 1, 128>}, {pipeline_mode = #tpu.pipeline_mode<synchronous>, transform_indices = @transform_5, window_bounds = array<i64: 128, 256>}, {pipeline_mode = #tpu.pipeline_mode<synchronous>, transform_indices = @transform_6, window_bounds = array<i64: 1, 256>}, {pipeline_mode = #tpu.pipeline_mode<synchronous>, transform_indices = @transform_7, window_bounds = array<i64: 256, 512>}, {pipeline_mode = #tpu.pipeline_mode<synchronous>, transform_indices = @transform_8, window_bounds = array<i64: 1, 512>}, {pipeline_mode = #tpu.pipeline_mode<synchronous>, transform_indices = @transform_9, window_bounds = array<i64: 512, 1024>}, {pipeline_mode = #tpu.pipeline_mode<synchronous>, transform_indices = @transform_10, window_bounds = array<i64: 1, 1024>}, {pipeline_mode = #tpu.pipeline_mode<synchronous>, transform_indices = @transform_11, window_bounds = array<i64: 8, 1024>}]} {
    %c0 = arith.constant 0 : index
    %c0_0 = arith.constant 0 : index
    %0 = vector.load %arg1[%c0, %c0_0] : memref<2048x128xbf16, #tpu.memory_space<vmem>>, vector<2048x128xbf16>
    %c0_1 = arith.constant 0 : index
    %c0_2 = arith.constant 0 : index
    %1 = vector.load %arg2[%c0_1, %c0_2] : memref<128x128xbf16, #tpu.memory_space<vmem>>, vector<128x128xbf16>
    %cst = arith.constant dense<0.000000e+00> : vector<2048x128xf32>
    %2 = tpu.matmul %0, %1, %cst {dimension_numbers = #tpu.dot_dimension_numbers<[1], [0], [0], [1], [0, 0, 1, 1], [], []>} : vector<2048x128xbf16>, vector<128x128xbf16>, vector<2048x128xf32> -> vector<2048x128xf32>
    %c0_3 = arith.constant 0 : index
    %c0_4 = arith.constant 0 : index
    %3 = vector.load %arg3[%c0_3, %c0_4] : memref<1x128xf32, #tpu.memory_space<vmem>>, vector<1x128xf32>
    %4 = vector.broadcast %3 : vector<1x128xf32> to vector<2048x128xf32>
    %5 = arith.addf %2, %4 : vector<2048x128xf32>
    %cst_5 = arith.constant 0.000000e+00 : f32
    %6 = vector.broadcast %cst_5 : f32 to vector<2048x128xf32>
    %7 = arith.maximumf %5, %6 : vector<2048x128xf32>
    %8 = vector.extract_strided_slice %7 {offsets = [0, 0], sizes = [512, 128], strides = [1, 1]} : vector<2048x128xf32> to vector<512x128xf32>
    %9 = vector.extract_strided_slice %7 {offsets = [512, 0], sizes = [512, 128], strides = [1, 1]} : vector<2048x128xf32> to vector<512x128xf32>
    %10 = arith.maximumf %8, %9 : vector<512x128xf32>
    %11 = vector.extract_strided_slice %7 {offsets = [1024, 0], sizes = [512, 128], strides = [1, 1]} : vector<2048x128xf32> to vector<512x128xf32>
    %12 = vector.extract_strided_slice %7 {offsets = [1536, 0], sizes = [512, 128], strides = [1, 1]} : vector<2048x128xf32> to vector<512x128xf32>
    %13 = arith.maximumf %11, %12 : vector<512x128xf32>
    %14 = arith.maximumf %10, %13 : vector<512x128xf32>
    %15 = arith.truncf %14 : vector<512x128xf32> to vector<512x128xbf16>
    %c0_6 = arith.constant 0 : index
    %c0_7 = arith.constant 0 : index
    %16 = vector.load %arg4[%c0_6, %c0_7] : memref<128x128xbf16, #tpu.memory_space<vmem>>, vector<128x128xbf16>
    %cst_8 = arith.constant dense<0.000000e+00> : vector<512x128xf32>
    %17 = tpu.matmul %15, %16, %cst_8 {dimension_numbers = #tpu.dot_dimension_numbers<[1], [0], [0], [1], [0, 0, 1, 1], [], []>} : vector<512x128xbf16>, vector<128x128xbf16>, vector<512x128xf32> -> vector<512x128xf32>
    %c0_9 = arith.constant 0 : index
    %c0_10 = arith.constant 0 : index
    %18 = vector.load %arg5[%c0_9, %c0_10] : memref<1x128xf32, #tpu.memory_space<vmem>>, vector<1x128xf32>
    %19 = vector.broadcast %18 : vector<1x128xf32> to vector<512x128xf32>
    %20 = arith.addf %17, %19 : vector<512x128xf32>
    %cst_11 = arith.constant 0.000000e+00 : f32
    %21 = vector.broadcast %cst_11 : f32 to vector<512x128xf32>
    %22 = arith.maximumf %20, %21 : vector<512x128xf32>
    %23 = vector.extract_strided_slice %22 {offsets = [0, 0], sizes = [128, 128], strides = [1, 1]} : vector<512x128xf32> to vector<128x128xf32>
    %24 = vector.extract_strided_slice %22 {offsets = [128, 0], sizes = [128, 128], strides = [1, 1]} : vector<512x128xf32> to vector<128x128xf32>
    %25 = arith.maximumf %23, %24 : vector<128x128xf32>
    %26 = vector.extract_strided_slice %22 {offsets = [256, 0], sizes = [128, 128], strides = [1, 1]} : vector<512x128xf32> to vector<128x128xf32>
    %27 = vector.extract_strided_slice %22 {offsets = [384, 0], sizes = [128, 128], strides = [1, 1]} : vector<512x128xf32> to vector<128x128xf32>
    %28 = arith.maximumf %26, %27 : vector<128x128xf32>
    %29 = arith.maximumf %25, %28 : vector<128x128xf32>
    %30 = arith.truncf %29 : vector<128x128xf32> to vector<128x128xbf16>
    %c0_12 = arith.constant 0 : index
    %c0_13 = arith.constant 0 : index
    %31 = vector.load %arg6[%c0_12, %c0_13] : memref<128x256xbf16, #tpu.memory_space<vmem>>, vector<128x256xbf16>
    %cst_14 = arith.constant dense<0.000000e+00> : vector<128x256xf32>
    %32 = tpu.matmul %30, %31, %cst_14 {dimension_numbers = #tpu.dot_dimension_numbers<[1], [0], [0], [1], [0, 0, 1, 1], [], []>} : vector<128x128xbf16>, vector<128x256xbf16>, vector<128x256xf32> -> vector<128x256xf32>
    %c0_15 = arith.constant 0 : index
    %c0_16 = arith.constant 0 : index
    %33 = vector.load %arg7[%c0_15, %c0_16] : memref<1x256xf32, #tpu.memory_space<vmem>>, vector<1x256xf32>
    %34 = vector.broadcast %33 : vector<1x256xf32> to vector<128x256xf32>
    %35 = arith.addf %32, %34 : vector<128x256xf32>
    %cst_17 = arith.constant 0.000000e+00 : f32
    %36 = vector.broadcast %cst_17 : f32 to vector<128x256xf32>
    %37 = arith.maximumf %35, %36 : vector<128x256xf32>
    %38 = vector.extract_strided_slice %37 {offsets = [0, 0], sizes = [32, 256], strides = [1, 1]} : vector<128x256xf32> to vector<32x256xf32>
    %39 = vector.extract_strided_slice %37 {offsets = [32, 0], sizes = [32, 256], strides = [1, 1]} : vector<128x256xf32> to vector<32x256xf32>
    %40 = arith.maximumf %38, %39 : vector<32x256xf32>
    %41 = vector.extract_strided_slice %37 {offsets = [64, 0], sizes = [32, 256], strides = [1, 1]} : vector<128x256xf32> to vector<32x256xf32>
    %42 = vector.extract_strided_slice %37 {offsets = [96, 0], sizes = [32, 256], strides = [1, 1]} : vector<128x256xf32> to vector<32x256xf32>
    %43 = arith.maximumf %41, %42 : vector<32x256xf32>
    %44 = arith.maximumf %40, %43 : vector<32x256xf32>
    %45 = arith.truncf %44 : vector<32x256xf32> to vector<32x256xbf16>
    %c0_18 = arith.constant 0 : index
    %c0_19 = arith.constant 0 : index
    %46 = vector.load %arg8[%c0_18, %c0_19] : memref<256x512xbf16, #tpu.memory_space<vmem>>, vector<256x512xbf16>
    %cst_20 = arith.constant dense<0.000000e+00> : vector<32x512xf32>
    %47 = tpu.matmul %45, %46, %cst_20 {dimension_numbers = #tpu.dot_dimension_numbers<[1], [0], [0], [1], [0, 0, 1, 1], [], []>} : vector<32x256xbf16>, vector<256x512xbf16>, vector<32x512xf32> -> vector<32x512xf32>
    %c0_21 = arith.constant 0 : index
    %c0_22 = arith.constant 0 : index
    %48 = vector.load %arg9[%c0_21, %c0_22] : memref<1x512xf32, #tpu.memory_space<vmem>>, vector<1x512xf32>
    %49 = vector.broadcast %48 : vector<1x512xf32> to vector<32x512xf32>
    %50 = arith.addf %47, %49 : vector<32x512xf32>
    %cst_23 = arith.constant 0.000000e+00 : f32
    %51 = vector.broadcast %cst_23 : f32 to vector<32x512xf32>
    %52 = arith.maximumf %50, %51 : vector<32x512xf32>
    %53 = vector.extract_strided_slice %52 {offsets = [0, 0], sizes = [8, 512], strides = [1, 1]} : vector<32x512xf32> to vector<8x512xf32>
    %54 = vector.extract_strided_slice %52 {offsets = [8, 0], sizes = [8, 512], strides = [1, 1]} : vector<32x512xf32> to vector<8x512xf32>
    %55 = arith.maximumf %53, %54 : vector<8x512xf32>
    %56 = vector.extract_strided_slice %52 {offsets = [16, 0], sizes = [8, 512], strides = [1, 1]} : vector<32x512xf32> to vector<8x512xf32>
    %57 = vector.extract_strided_slice %52 {offsets = [24, 0], sizes = [8, 512], strides = [1, 1]} : vector<32x512xf32> to vector<8x512xf32>
    %58 = arith.maximumf %56, %57 : vector<8x512xf32>
    %59 = arith.maximumf %55, %58 : vector<8x512xf32>
    %60 = arith.truncf %59 : vector<8x512xf32> to vector<8x512xbf16>
    %c0_24 = arith.constant 0 : index
    %c0_25 = arith.constant 0 : index
    %61 = vector.load %arg10[%c0_24, %c0_25] : memref<512x1024xbf16, #tpu.memory_space<vmem>>, vector<512x1024xbf16>
    %cst_26 = arith.constant dense<0.000000e+00> : vector<8x1024xf32>
    %62 = tpu.matmul %60, %61, %cst_26 {dimension_numbers = #tpu.dot_dimension_numbers<[1], [0], [0], [1], [0, 0, 1, 1], [], []>} : vector<8x512xbf16>, vector<512x1024xbf16>, vector<8x1024xf32> -> vector<8x1024xf32>
    %c0_27 = arith.constant 0 : index
    %c0_28 = arith.constant 0 : index
    %63 = vector.load %arg11[%c0_27, %c0_28] : memref<1x1024xf32, #tpu.memory_space<vmem>>, vector<1x1024xf32>
    %64 = vector.broadcast %63 : vector<1x1024xf32> to vector<8x1024xf32>
    %65 = arith.addf %62, %64 : vector<8x1024xf32>
    %cst_29 = arith.constant 0.000000e+00 : f32
    %66 = vector.broadcast %cst_29 : f32 to vector<8x1024xf32>
    %67 = arith.maximumf %65, %66 : vector<8x1024xf32>
    %c0_30 = arith.constant 0 : index
    %c0_31 = arith.constant 0 : index
    %68 = vector.load %arg12[%c0_30, %c0_31] : memref<8x1024xf32, #tpu.memory_space<vmem>>, vector<8x1024xf32>
    tpu.vector_store %arg12[%c0_30, %c0_31], %67 {strides = array<i32>} : memref<8x1024xf32, #tpu.memory_space<vmem>>, vector<8x1024xf32>,
    return
  }
  func.func @transform_0(%arg0: i32) -> (i32, i32) {
    %c0_i32 = arith.constant 0 : i32
    %c0_i32_0 = arith.constant 0 : i32
    %c0_i32_1 = arith.constant 0 : i32
    return %c0_i32, %c0_i32_0 : i32, i32
  }
  func.func @transform_1(%arg0: i32) -> (i32, i32) {
    %c0_i32 = arith.constant 0 : i32
    %c0_i32_0 = arith.constant 0 : i32
    %c0_i32_1 = arith.constant 0 : i32
    return %c0_i32, %c0_i32_0 : i32, i32
  }
  func.func @transform_2(%arg0: i32) -> (i32, i32) {
    %c0_i32 = arith.constant 0 : i32
    %c0_i32_0 = arith.constant 0 : i32
    %c0_i32_1 = arith.constant 0 : i32
    return %c0_i32, %c0_i32_0 : i32, i32
  }
  func.func @transform_3(%arg0: i32) -> (i32, i32) {
    %c0_i32 = arith.constant 0 : i32
    %c0_i32_0 = arith.constant 0 : i32
    %c0_i32_1 = arith.constant 0 : i32
    return %c0_i32, %c0_i32_0 : i32, i32
  }
  func.func @transform_4(%arg0: i32) -> (i32, i32) {
    %c0_i32 = arith.constant 0 : i32
    %c0_i32_0 = arith.constant 0 : i32
    %c0_i32_1 = arith.constant 0 : i32
    return %c0_i32, %c0_i32_0 : i32, i32
  }
  func.func @transform_5(%arg0: i32) -> (i32, i32) {
    %c0_i32 = arith.constant 0 : i32
    %c0_i32_0 = arith.constant 0 : i32
    %c0_i32_1 = arith.constant 0 : i32
    return %c0_i32, %c0_i32_0 : i32, i32
  }
  func.func @transform_6(%arg0: i32) -> (i32, i32) {
    %c0_i32 = arith.constant 0 : i32
    %c0_i32_0 = arith.constant 0 : i32
    %c0_i32_1 = arith.constant 0 : i32
    return %c0_i32, %c0_i32_0 : i32, i32
  }
  func.func @transform_7(%arg0: i32) -> (i32, i32) {
    %c0_i32 = arith.constant 0 : i32
    %c0_i32_0 = arith.constant 0 : i32
    %c0_i32_1 = arith.constant 0 : i32
    return %c0_i32, %c0_i32_0 : i32, i32
  }
  func.func @transform_8(%arg0: i32) -> (i32, i32) {
    %c0_i32 = arith.constant 0 : i32
    %c0_i32_0 = arith.constant 0 : i32
    %c0_i32_1 = arith.constant 0 : i32
    return %c0_i32, %c0_i32_0 : i32, i32
  }
  func.func @transform_9(%arg0: i32) -> (i32, i32) {
    %c0_i32 = arith.constant 0 : i32
    %c0_i32_0 = arith.constant 0 : i32
    %c0_i32_1 = arith.constant 0 : i32
    return %c0_i32, %c0_i32_0 : i32, i32
  }
  func.func @transform_10(%arg0: i32) -> (i32, i32) {
    %c0_i32 = arith.constant 0 : i32
    %c0_i32_0 = arith.constant 0 : i32
    %c0_i32_1 = arith.constant 0 : i32
    return %c0_i32, %c0_i32_0 : i32, i32
  }
  func.func @transform_11(%arg0: i32) -> (i32, i32) {
    %c0_i32 = arith.constant 0 : i32
    %c0_i32_0 = arith.constant 0 : i32
    %c0_i32_1 = arith.constant 0 : i32
    return %c0_i32, %c0_i32_0 : i32, i32
  }
}

</mosaic_0001>

<llo_original>
// kernel: forward.1
$region0: #{forward.1}
  #allocation0 [shape = 'u32[]', space=smem, size = 0x4, offset = 0x4, fixed_abs, tag = 'smem constant byte address 0x4 - core index']
  #allocation1 [shape = 'u32[72,128]{1,0:T(1,128)}', space=vmem, size = 0x9000, scoped, tag = 'internal scratch']
  %s0 = inlined_call_operand.vmem [shape: bf16[2048,128], index: 0, kind: input, shape index: {}]
  %s1 = inlined_call_operand.vmem [shape: bf16[128,128], index: 1, kind: input, shape index: {}]
  %s2 = inlined_call_operand.vmem [shape: f32[1,128], index: 2, kind: input, shape index: {}]
  %s3 = inlined_call_operand.vmem [shape: bf16[128,128], index: 3, kind: input, shape index: {}]
  %s4 = inlined_call_operand.vmem [shape: f32[1,128], index: 4, kind: input, shape index: {}]
  %s5 = inlined_call_operand.vmem [shape: bf16[128,256], index: 5, kind: input, shape index: {}]
  %s6 = inlined_call_operand.vmem [shape: f32[1,256], index: 6, kind: input, shape index: {}]
  %s7 = inlined_call_operand.vmem [shape: bf16[256,512], index: 7, kind: input, shape index: {}]
  %s8 = inlined_call_operand.vmem [shape: f32[1,512], index: 8, kind: input, shape index: {}]
  %s9 = inlined_call_operand.vmem [shape: bf16[512,1024], index: 9, kind: input, shape index: {}]
  %s10 = inlined_call_operand.vmem [shape: f32[1,1024], index: 10, kind: input, shape index: {}]
  %s11 = inlined_call_operand.vmem [shape: f32[8,1024], index: 11, kind: output, shape index: {}]
  %s12 = sld [smem:[#allocation0]]
  $region54: #{forward.1} parent=0
    _
  %s14 = ssub.s32 1, %s12
  %s15 = scalar_select 0, %s14, %s12
  // Predicated region
  $region2: #{forward.1} parent=0 // pred_check
    _
  $region3: #{forward.1} parent=0 // pred_check_branch
    %17 = sbr.rel (0) target = $region5
  $region4: #{forward.1} parent=0 // pred_region
    _
  $region5: #{forward.1} parent=0 // pred_fallthru
    _
  // Predicated region
  $region6: #{forward.1} parent=0 // pred_check
    _
  $region7: #{forward.1} parent=0 // pred_check_branch
    %19 = sbr.rel (0) target = $region9
  $region8: #{forward.1} parent=0 // pred_region
    _
  $region9: #{forward.1} parent=0 // pred_fallthru
    _
  // Predicated region
  $region10: #{forward.1} parent=0 // pred_check
    _
  $region11: #{forward.1} parent=0 // pred_check_branch
    %21 = sbr.rel (0) target = $region13
  $region12: #{forward.1} parent=0 // pred_region
    _
  $region13: #{forward.1} parent=0 // pred_fallthru
    _
  // Predicated region
  $region14: #{forward.1} parent=0 // pred_check
    _
  $region15: #{forward.1} parent=0 // pred_check_branch
    %23 = sbr.rel (0) target = $region17
  $region16: #{forward.1} parent=0 // pred_region
    _
  $region17: #{forward.1} parent=0 // pred_fallthru
    _
  // Predicated region
  $region18: #{forward.1} parent=0 // pred_check
    _
  $region19: #{forward.1} parent=0 // pred_check_branch
    %25 = sbr.rel (0) target = $region21
  $region20: #{forward.1} parent=0 // pred_region
    _
  $region21: #{forward.1} parent=0 // pred_fallthru
    _
  // Predicated region
  $region22: #{forward.1} parent=0 // pred_check
    _
  $region23: #{forward.1} parent=0 // pred_check_branch
    %27 = sbr.rel (0) target = $region25
  $region24: #{forward.1} parent=0 // pred_region
    _
  $region25: #{forward.1} parent=0 // pred_fallthru
    _
  // Predicated region
  $region26: #{forward.1} parent=0 // pred_check
    _
  $region27: #{forward.1} parent=0 // pred_check_branch
    %29 = sbr.rel (0) target = $region29
  $region28: #{forward.1} parent=0 // pred_region
    _
  $region29: #{forward.1} parent=0 // pred_fallthru
    _
  // Predicated region
  $region30: #{forward.1} parent=0 // pred_check
    _
  $region31: #{forward.1} parent=0 // pred_check_branch
    %31 = sbr.rel (0) target = $region33
  $region32: #{forward.1} parent=0 // pred_region
    _
  $region33: #{forward.1} parent=0 // pred_fallthru
    _
  // Predicated region
  $region34: #{forward.1} parent=0 // pred_check
    _
  $region35: #{forward.1} parent=0 // pred_check_branch
    %33 = sbr.rel (0) target = $region37
  $region36: #{forward.1} parent=0 // pred_region
    _
  $region37: #{forward.1} parent=0 // pred_fallthru
    _
  // Predicated region
  $region38: #{forward.1} parent=0 // pred_check
    _
  $region39: #{forward.1} parent=0 // pred_check_branch
    %35 = sbr.rel (0) target = $region41
  $region40: #{forward.1} parent=0 // pred_region
    _
  $region41: #{forward.1} parent=0 // pred_fallthru
    _
  // Predicated region
  $region42: #{forward.1} parent=0 // pred_check
    _
  $region43: #{forward.1} parent=0 // pred_check_branch
    %37 = sbr.rel (0) target = $region45
  $region44: #{forward.1} parent=0 // pred_region
    _
  $region45: #{forward.1} parent=0 // pred_fallthru
    _
  %v38 = vld [vmem:[%s0] sm:$0xf]
  %v39 = vld [vmem:[%s0 + $0x4] sm:$0xf]
  %v40 = vld [vmem:[%s0 + $0x8] sm:$0xf]
  %v41 = vld [vmem:[%s0 + $0xc] sm:$0xf]
  %v42 = vld [vmem:[%s0 + $0x10] sm:$0xf]
  %v43 = vld [vmem:[%s0 + $0x14] sm:$0xf]
  %v44 = vld [vmem:[%s0 + $0x18] sm:$0xf]
  %v45 = vld [vmem:[%s0 + $0x1c] sm:$0xf]
  %v46 = vld [vmem:[%s0 + $0x20] sm:$0xf]
  %v47 = vld [vmem:[%s0 + $0x24] sm:$0xf]
  %v48 = vld [vmem:[%s0 + $0x28] sm:$0xf]
  %v49 = vld [vmem:[%s0 + $0x2c] sm:$0xf]
  %v50 = vld [vmem:[%s0 + $0x30] sm:$0xf]
  %v51 = vld [vmem:[%s0 + $0x34] sm:$0xf]
  %v52 = vld [vmem:[%s0 + $0x38] sm:$0xf]
  %v53 = vld [vmem:[%s0 + $0x3c] sm:$0xf]
  %v54 = vld [vmem:[%s0 + $0x40] sm:$0xf]
  %v55 = vld [vmem:[%s0 + $0x44] sm:$0xf]
  %v56 = vld [vmem:[%s0 + $0x48] sm:$0xf]
  %v57 = vld [vmem:[%s0 + $0x4c] sm:$0xf]
  %v58 = vld [vmem:[%s0 + $0x50] sm:$0xf]
  %v59 = vld [vmem:[%s0 + $0x54] sm:$0xf]
  %v60 = vld [vmem:[%s0 + $0x58] sm:$0xf]
  %v61 = vld [vmem:[%s0 + $0x5c] sm:$0xf]
  %v62 = vld [vmem:[%s0 + $0x60] sm:$0xf]
  %v63 = vld [vmem:[%s0 + $0x64] sm:$0xf]
  %v64 = vld [vmem:[%s0 + $0x68] sm:$0xf]
  %v65 = vld [vmem:[%s0 + $0x6c] sm:$0xf]
  %v66 = vld [vmem:[%s0 + $0x70] sm:$0xf]
  %v67 = vld [vmem:[%s0 + $0x74] sm:$0xf]
  %v68 = vld [vmem:[%s0 + $0x78] sm:$0xf]
  %v69 = vld [vmem:[%s0 + $0x7c] sm:$0xf]
  %v70 = vld [vmem:[%s0 + $0x80] sm:$0xf]
  %v71 = vld [vmem:[%s0 + $0x84] sm:$0xf]
  %v72 = vld [vmem:[%s0 + $0x88] sm:$0xf]
  %v73 = vld [vmem:[%s0 + $0x8c] sm:$0xf]
  %v74 = vld [vmem:[%s0 + $0x90] sm:$0xf]
  %v75 = vld [vmem:[%s0 + $0x94] sm:$0xf]
  %v76 = vld [vmem:[%s0 + $0x98] sm:$0xf]
  %v77 = vld [vmem:[%s0 + $0x9c] sm:$0xf]
  %v78 = vld [vmem:[%s0 + $0xa0] sm:$0xf]
  %v79 = vld [vmem:[%s0 + $0xa4] sm:$0xf]
  %v80 = vld [vmem:[%s0 + $0xa8] sm:$0xf]
  %v81 = vld [vmem:[%s0 + $0xac] sm:$0xf]
  %v82 = vld [vmem:[%s0 + $0xb0] sm:$0xf]
  %v83 = vld [vmem:[%s0 + $0xb4] sm:$0xf]
  %v84 = vld [vmem:[%s0 + $0xb8] sm:$0xf]
  %v85 = vld [vmem:[%s0 + $0xbc] sm:$0xf]
  %v86 = vld [vmem:[%s0 + $0xc0] sm:$0xf]
  %v87 = vld [vmem:[%s0 + $0xc4] sm:$0xf]
  %v88 = vld [vmem:[%s0 + $0xc8] sm:$0xf]
  %v89 = vld [vmem:[%s0 + $0xcc] sm:$0xf]
  %v90 = vld [vmem:[%s0 + $0xd0] sm:$0xf]
  %v91 = vld [vmem:[%s0 + $0xd4] sm:$0xf]
  %v92 = vld [vmem:[%s0 + $0xd8] sm:$0xf]
  %v93 = vld [vmem:[%s0 + $0xdc] sm:$0xf]
  %v94 = vld [vmem:[%s0 + $0xe0] sm:$0xf]
  %v95 = vld [vmem:[%s0 + $0xe4] sm:$0xf]
  %v96 = vld [vmem:[%s0 + $0xe8] sm:$0xf]
  %v97 = vld [vmem:[%s0 + $0xec] sm:$0xf]
  %v98 = vld [vmem:[%s0 + $0xf0] sm:$0xf]
  %v99 = vld [vmem:[%s0 + $0xf4] sm:$0xf]
  %v100 = vld [vmem:[%s0 + $0xf8] sm:$0xf]
  %v101 = vld [vmem:[%s0 + $0xfc] sm:$0xf]
  %v102 = vld [vmem:[%s0 + $0x100] sm:$0xf]
  %v103 = vld [vmem:[%s0 + $0x104] sm:$0xf]
  %v104 = vld [vmem:[%s0 + $0x108] sm:$0xf]
  %v105 = vld [vmem:[%s0 + $0x10c] sm:$0xf]
  %v106 = vld [vmem:[%s0 + $0x110] sm:$0xf]
  %v107 = vld [vmem:[%s0 + $0x114] sm:$0xf]
  %v108 = vld [vmem:[%s0 + $0x118] sm:$0xf]
  %v109 = vld [vmem:[%s0 + $0x11c] sm:$0xf]
  %v110 = vld [vmem:[%s0 + $0x120] sm:$0xf]
  %v111 = vld [vmem:[%s0 + $0x124] sm:$0xf]
  %v112 = vld [vmem:[%s0 + $0x128] sm:$0xf]
  %v113 = vld [vmem:[%s0 + $0x12c] sm:$0xf]
  %v114 = vld [vmem:[%s0 + $0x130] sm:$0xf]
  %v115 = vld [vmem:[%s0 + $0x134] sm:$0xf]
  %v116 = vld [vmem:[%s0 + $0x138] sm:$0xf]
  %v117 = vld [vmem:[%s0 + $0x13c] sm:$0xf]
  %v118 = vld [vmem:[%s0 + $0x140] sm:$0xf]
  %v119 = vld [vmem:[%s0 + $0x144] sm:$0xf]
  %v120 = vld [vmem:[%s0 + $0x148] sm:$0xf]
  %v121 = vld [vmem:[%s0 + $0x14c] sm:$0xf]
  %v122 = vld [vmem:[%s0 + $0x150] sm:$0xf]
  %v123 = vld [vmem:[%s0 + $0x154] sm:$0xf]
  %v124 = vld [vmem:[%s0 + $0x158] sm:$0xf]
  %v125 = vld [vmem:[%s0 + $0x15c] sm:$0xf]
  %v126 = vld [vmem:[%s0 + $0x160] sm:$0xf]
  %v127 = vld [vmem:[%s0 + $0x164] sm:$0xf]
  %v128 = vld [vmem:[%s0 + $0x168] sm:$0xf]
  %v129 = vld [vmem:[%s0 + $0x16c] sm:$0xf]
  %v130 = vld [vmem:[%s0 + $0x170] sm:$0xf]
  %v131 = vld [vmem:[%s0 + $0x174] sm:$0xf]
  %v132 = vld [vmem:[%s0 + $0x178] sm:$0xf]
  %v133 = vld [vmem:[%s0 + $0x17c] sm:$0xf]
  %v134 = vld [vmem:[%s0 + $0x180] sm:$0xf]
  %v135 = vld [vmem:[%s0 + $0x184] sm:$0xf]
  %v136 = vld [vmem:[%s0 + $0x188] sm:$0xf]
  %v137 = vld [vmem:[%s0 + $0x18c] sm:$0xf]
  %v138 = vld [vmem:[%s0 + $0x190] sm:$0xf]
  %v139 = vld [vmem:[%s0 + $0x194] sm:$0xf]
  %v140 = vld [vmem:[%s0 + $0x198] sm:$0xf]
  %v141 = vld [vmem:[%s0 + $0x19c] sm:$0xf]
  %v142 = vld [vmem:[%s0 + $0x1a0] sm:$0xf]
  %v143 = vld [vmem:[%s0 + $0x1a4] sm:$0xf]
  %v144 = vld [vmem:[%s0 + $0x1a8] sm:$0xf]
  %v145 = vld [vmem:[%s0 + $0x1ac] sm:$0xf]
  %v146 = vld [vmem:[%s0 + $0x1b0] sm:$0xf]
  %v147 = vld [vmem:[%s0 + $0x1b4] sm:$0xf]
  %v148 = vld [vmem:[%s0 + $0x1b8] sm:$0xf]
  %v149 = vld [vmem:[%s0 + $0x1bc] sm:$0xf]
  %v150 = vld [vmem:[%s0 + $0x1c0] sm:$0xf]
  %v151 = vld [vmem:[%s0 + $0x1c4] sm:$0xf]
  %v152 = vld [vmem:[%s0 + $0x1c8] sm:$0xf]
  %v153 = vld [vmem:[%s0 + $0x1cc] sm:$0xf]
  %v154 = vld [vmem:[%s0 + $0x1d0] sm:$0xf]
  %v155 = vld [vmem:[%s0 + $0x1d4] sm:$0xf]
  %v156 = vld [vmem:[%s0 + $0x1d8] sm:$0xf]
  %v157 = vld [vmem:[%s0 + $0x1dc] sm:$0xf]
  %v158 = vld [vmem:[%s0 + $0x1e0] sm:$0xf]
  %v159 = vld [vmem:[%s0 + $0x1e4] sm:$0xf]
  %v160 = vld [vmem:[%s0 + $0x1e8] sm:$0xf]
  %v161 = vld [vmem:[%s0 + $0x1ec] sm:$0xf]
  %v162 = vld [vmem:[%s0 + $0x1f0] sm:$0xf]
  %v163 = vld [vmem:[%s0 + $0x1f4] sm:$0xf]
  %v164 = vld [vmem:[%s0 + $0x1f8] sm:$0xf]
  %v165 = vld [vmem:[%s0 + $0x1fc] sm:$0xf]
  %v166 = vld [vmem:[%s0 + $0x200] sm:$0xf]
  %v167 = vld [vmem:[%s0 + $0x204] sm:$0xf]
  %v168 = vld [vmem:[%s0 + $0x208] sm:$0xf]
  %v169 = vld [vmem:[%s0 + $0x20c] sm:$0xf]
  %v170 = vld [vmem:[%s0 + $0x210] sm:$0xf]
  %v171 = vld [vmem:[%s0 + $0x214] sm:$0xf]
  %v172 = vld [vmem:[%s0 + $0x218] sm:$0xf]
  %v173 = vld [vmem:[%s0 + $0x21c] sm:$0xf]
  %v174 = vld [vmem:[%s0 + $0x220] sm:$0xf]
  %v175 = vld [vmem:[%s0 + $0x224] sm:$0xf]
  %v176 = vld [vmem:[%s0 + $0x228] sm:$0xf]
  %v177 = vld [vmem:[%s0 + $0x22c] sm:$0xf]
  %v178 = vld [vmem:[%s0 + $0x230] sm:$0xf]
  %v179 = vld [vmem:[%s0 + $0x234] sm:$0xf]
  %v180 = vld [vmem:[%s0 + $0x238] sm:$0xf]
  %v181 = vld [vmem:[%s0 + $0x23c] sm:$0xf]
  %v182 = vld [vmem:[%s0 + $0x240] sm:$0xf]
  %v183 = vld [vmem:[%s0 + $0x244] sm:$0xf]
  %v184 = vld [vmem:[%s0 + $0x248] sm:$0xf]
  %v185 = vld [vmem:[%s0 + $0x24c] sm:$0xf]
  %v186 = vld [vmem:[%s0 + $0x250] sm:$0xf]
  %v187 = vld [vmem:[%s0 + $0x254] sm:$0xf]
  %v188 = vld [vmem:[%s0 + $0x258] sm:$0xf]
  %v189 = vld [vmem:[%s0 + $0x25c] sm:$0xf]
  %v190 = vld [vmem:[%s0 + $0x260] sm:$0xf]
  %v191 = vld [vmem:[%s0 + $0x264] sm:$0xf]
  %v192 = vld [vmem:[%s0 + $0x268] sm:$0xf]
  %v193 = vld [vmem:[%s0 + $0x26c] sm:$0xf]
  %v194 = vld [vmem:[%s0 + $0x270] sm:$0xf]
  %v195 = vld [vmem:[%s0 + $0x274] sm:$0xf]
  %v196 = vld [vmem:[%s0 + $0x278] sm:$0xf]
  %v197 = vld [vmem:[%s0 + $0x27c] sm:$0xf]
  %v198 = vld [vmem:[%s0 + $0x280] sm:$0xf]
  %v199 = vld [vmem:[%s0 + $0x284] sm:$0xf]
  %v200 = vld [vmem:[%s0 + $0x288] sm:$0xf]
  %v201 = vld [vmem:[%s0 + $0x28c] sm:$0xf]
  %v202 = vld [vmem:[%s0 + $0x290] sm:$0xf]
  %v203 = vld [vmem:[%s0 + $0x294] sm:$0xf]
  %v204 = vld [vmem:[%s0 + $0x298] sm:$0xf]
  %v205 = vld [vmem:[%s0 + $0x29c] sm:$0xf]
  %v206 = vld [vmem:[%s0 + $0x2a0] sm:$0xf]
  %v207 = vld [vmem:[%s0 + $0x2a4] sm:$0xf]
  %v208 = vld [vmem:[%s0 + $0x2a8] sm:$0xf]
  %v209 = vld [vmem:[%s0 + $0x2ac] sm:$0xf]
  %v210 = vld [vmem:[%s0 + $0x2b0] sm:$0xf]
  %v211 = vld [vmem:[%s0 + $0x2b4] sm:$0xf]
  %v212 = vld [vmem:[%s0 + $0x2b8] sm:$0xf]
  %v213 = vld [vmem:[%s0 + $0x2bc] sm:$0xf]
  %v214 = vld [vmem:[%s0 + $0x2c0] sm:$0xf]
  %v215 = vld [vmem:[%s0 + $0x2c4] sm:$0xf]
  %v216 = vld [vmem:[%s0 + $0x2c8] sm:$0xf]
  %v217 = vld [vmem:[%s0 + $0x2cc] sm:$0xf]
  %v218 = vld [vmem:[%s0 + $0x2d0] sm:$0xf]
  %v219 = vld [vmem:[%s0 + $0x2d4] sm:$0xf]
  %v220 = vld [vmem:[%s0 + $0x2d8] sm:$0xf]
  %v221 = vld [vmem:[%s0 + $0x2dc] sm:$0xf]
  %v222 = vld [vmem:[%s0 + $0x2e0] sm:$0xf]
  %v223 = vld [vmem:[%s0 + $0x2e4] sm:$0xf]
  %v224 = vld [vmem:[%s0 + $0x2e8] sm:$0xf]
  %v225 = vld [vmem:[%s0 + $0x2ec] sm:$0xf]
  %v226 = vld [vmem:[%s0 + $0x2f0] sm:$0xf]
  %v227 = vld [vmem:[%s0 + $0x2f4] sm:$0xf]
  %v228 = vld [vmem:[%s0 + $0x2f8] sm:$0xf]
  %v229 = vld [vmem:[%s0 + $0x2fc] sm:$0xf]
  %v230 = vld [vmem:[%s0 + $0x300] sm:$0xf]
  %v231 = vld [vmem:[%s0 + $0x304] sm:$0xf]
  %v232 = vld [vmem:[%s0 + $0x308] sm:$0xf]
  %v233 = vld [vmem:[%s0 + $0x30c] sm:$0xf]
  %v234 = vld [vmem:[%s0 + $0x310] sm:$0xf]
  %v235 = vld [vmem:[%s0 + $0x314] sm:$0xf]
  %v236 = vld [vmem:[%s0 + $0x318] sm:$0xf]
  %v237 = vld [vmem:[%s0 + $0x31c] sm:$0xf]
  %v238 = vld [vmem:[%s0 + $0x320] sm:$0xf]
  %v239 = vld [vmem:[%s0 + $0x324] sm:$0xf]
  %v240 = vld [vmem:[%s0 + $0x328] sm:$0xf]
  %v241 = vld [vmem:[%s0 + $0x32c] sm:$0xf]
  %v242 = vld [vmem:[%s0 + $0x330] sm:$0xf]
  %v243 = vld [vmem:[%s0 + $0x334] sm:$0xf]
  %v244 = vld [vmem:[%s0 + $0x338] sm:$0xf]
  %v245 = vld [vmem:[%s0 + $0x33c] sm:$0xf]
  %v246 = vld [vmem:[%s0 + $0x340] sm:$0xf]
  %v247 = vld [vmem:[%s0 + $0x344] sm:$0xf]
  %v248 = vld [vmem:[%s0 + $0x348] sm:$0xf]
  %v249 = vld [vmem:[%s0 + $0x34c] sm:$0xf]
  %v250 = vld [vmem:[%s0 + $0x350] sm:$0xf]
  %v251 = vld [vmem:[%s0 + $0x354] sm:$0xf]
  %v252 = vld [vmem:[%s0 + $0x358] sm:$0xf]
  %v253 = vld [vmem:[%s0 + $0x35c] sm:$0xf]
  %v254 = vld [vmem:[%s0 + $0x360] sm:$0xf]
  %v255 = vld [vmem:[%s0 + $0x364] sm:$0xf]
  %v256 = vld [vmem:[%s0 + $0x368] sm:$0xf]
  %v257 = vld [vmem:[%s0 + $0x36c] sm:$0xf]
  %v258 = vld [vmem:[%s0 + $0x370] sm:$0xf]
  %v259 = vld [vmem:[%s0 + $0x374] sm:$0xf]
  %v260 = vld [vmem:[%s0 + $0x378] sm:$0xf]
  %v261 = vld [vmem:[%s0 + $0x37c] sm:$0xf]
  %v262 = vld [vmem:[%s0 + $0x380] sm:$0xf]
  %v263 = vld [vmem:[%s0 + $0x384] sm:$0xf]
  %v264 = vld [vmem:[%s0 + $0x388] sm:$0xf]
  %v265 = vld [vmem:[%s0 + $0x38c] sm:$0xf]
  %v266 = vld [vmem:[%s0 + $0x390] sm:$0xf]
  %v267 = vld [vmem:[%s0 + $0x394] sm:$0xf]
  %v268 = vld [vmem:[%s0 + $0x398] sm:$0xf]
  %v269 = vld [vmem:[%s0 + $0x39c] sm:$0xf]
  %v270 = vld [vmem:[%s0 + $0x3a0] sm:$0xf]
  %v271 = vld [vmem:[%s0 + $0x3a4] sm:$0xf]
  %v272 = vld [vmem:[%s0 + $0x3a8] sm:$0xf]
  %v273 = vld [vmem:[%s0 + $0x3ac] sm:$0xf]
  %v274 = vld [vmem:[%s0 + $0x3b0] sm:$0xf]
  %v275 = vld [vmem:[%s0 + $0x3b4] sm:$0xf]
  %v276 = vld [vmem:[%s0 + $0x3b8] sm:$0xf]
  %v277 = vld [vmem:[%s0 + $0x3bc] sm:$0xf]
  %v278 = vld [vmem:[%s0 + $0x3c0] sm:$0xf]
  %v279 = vld [vmem:[%s0 + $0x3c4] sm:$0xf]
  %v280 = vld [vmem:[%s0 + $0x3c8] sm:$0xf]
  %v281 = vld [vmem:[%s0 + $0x3cc] sm:$0xf]
  %v282 = vld [vmem:[%s0 + $0x3d0] sm:$0xf]
  %v283 = vld [vmem:[%s0 + $0x3d4] sm:$0xf]
  %v284 = vld [vmem:[%s0 + $0x3d8] sm:$0xf]
  %v285 = vld [vmem:[%s0 + $0x3dc] sm:$0xf]
  %v286 = vld [vmem:[%s0 + $0x3e0] sm:$0xf]
  %v287 = vld [vmem:[%s0 + $0x3e4] sm:$0xf]
  %v288 = vld [vmem:[%s0 + $0x3e8] sm:$0xf]
  %v289 = vld [vmem:[%s0 + $0x3ec] sm:$0xf]
  %v290 = vld [vmem:[%s0 + $0x3f0] sm:$0xf]
  %v291 = vld [vmem:[%s0 + $0x3f4] sm:$0xf]
  %v292 = vld [vmem:[%s0 + $0x3f8] sm:$0xf]
  %v293 = vld [vmem:[%s0 + $0x3fc] sm:$0xf]
  %v294 = vld [vmem:[%s1] sm:$0xf]
  %v295 = vld [vmem:[%s1 + $0x4] sm:$0xf]
  %v296 = vld [vmem:[%s1 + $0x8] sm:$0xf]
  %v297 = vld [vmem:[%s1 + $0xc] sm:$0xf]
  %v298 = vld [vmem:[%s1 + $0x10] sm:$0xf]
  %v299 = vld [vmem:[%s1 + $0x14] sm:$0xf]
  %v300 = vld [vmem:[%s1 + $0x18] sm:$0xf]
  %v301 = vld [vmem:[%s1 + $0x1c] sm:$0xf]
  %v302 = vld [vmem:[%s1 + $0x20] sm:$0xf]
  %v303 = vld [vmem:[%s1 + $0x24] sm:$0xf]
  %v304 = vld [vmem:[%s1 + $0x28] sm:$0xf]
  %v305 = vld [vmem:[%s1 + $0x2c] sm:$0xf]
  %v306 = vld [vmem:[%s1 + $0x30] sm:$0xf]
  %v307 = vld [vmem:[%s1 + $0x34] sm:$0xf]
  %v308 = vld [vmem:[%s1 + $0x38] sm:$0xf]
  %v309 = vld [vmem:[%s1 + $0x3c] sm:$0xf]
  %v310 = vld [vmem:[%s2] sm:$0x1]
  %v312 = vperm.slane %v310, 0
  %v570 = vunpack.c.l.b16 %v38
  %v571 = vunpack.c.l.b16 %v39
  %v572 = vunpack.c.l.b16 %v40
  %v573 = vunpack.c.l.b16 %v41
  %v574 = vunpack.c.l.b16 %v42
  %v575 = vunpack.c.l.b16 %v43
  %v576 = vunpack.c.l.b16 %v44
  %v577 = vunpack.c.l.b16 %v45
  %v578 = vunpack.c.l.b16 %v46
  %v579 = vunpack.c.l.b16 %v47
  %v580 = vunpack.c.l.b16 %v48
  %v581 = vunpack.c.l.b16 %v49
  %v582 = vunpack.c.l.b16 %v50
  %v583 = vunpack.c.l.b16 %v51
  %v584 = vunpack.c.l.b16 %v52
  %v585 = vunpack.c.l.b16 %v53
  %v586 = vunpack.c.l.b16 %v54
  %v587 = vunpack.c.l.b16 %v55
  %v588 = vunpack.c.l.b16 %v56
  %v589 = vunpack.c.l.b16 %v57
  %v590 = vunpack.c.l.b16 %v58
  %v591 = vunpack.c.l.b16 %v59
  %v592 = vunpack.c.l.b16 %v60
  %v593 = vunpack.c.l.b16 %v61
  %v594 = vunpack.c.l.b16 %v62
  %v595 = vunpack.c.l.b16 %v63
  %v596 = vunpack.c.l.b16 %v64
  %v597 = vunpack.c.l.b16 %v65
  %v598 = vunpack.c.l.b16 %v66
  %v599 = vunpack.c.l.b16 %v67
  %v600 = vunpack.c.l.b16 %v68
  %v601 = vunpack.c.l.b16 %v69
  %v602 = vunpack.c.l.b16 %v70
  %v603 = vunpack.c.l.b16 %v71
  %v604 = vunpack.c.l.b16 %v72
  %v605 = vunpack.c.l.b16 %v73
  %v606 = vunpack.c.l.b16 %v74
  %v607 = vunpack.c.l.b16 %v75
  %v608 = vunpack.c.l.b16 %v76
  %v609 = vunpack.c.l.b16 %v77
  %v610 = vunpack.c.l.b16 %v78
  %v611 = vunpack.c.l.b16 %v79
  %v612 = vunpack.c.l.b16 %v80
  %v613 = vunpack.c.l.b16 %v81
  %v614 = vunpack.c.l.b16 %v82
  %v615 = vunpack.c.l.b16 %v83
  %v616 = vunpack.c.l.b16 %v84
  %v617 = vunpack.c.l.b16 %v85
  %v618 = vunpack.c.l.b16 %v86
  %v619 = vunpack.c.l.b16 %v87
  %v620 = vunpack.c.l.b16 %v88
  %v621 = vunpack.c.l.b16 %v89
  %v622 = vunpack.c.l.b16 %v90
  %v623 = vunpack.c.l.b16 %v91
  %v624 = vunpack.c.l.b16 %v92
  %v625 = vunpack.c.l.b16 %v93
  %v626 = vunpack.c.l.b16 %v94
  %v627 = vunpack.c.l.b16 %v95
  %v628 = vunpack.c.l.b16 %v96
  %v629 = vunpack.c.l.b16 %v97
  %v630 = vunpack.c.l.b16 %v98
  %v631 = vunpack.c.l.b16 %v99
  %v632 = vunpack.c.l.b16 %v100
  %v633 = vunpack.c.l.b16 %v101
  %v634 = vunpack.c.l.b16 %v102
  %v635 = vunpack.c.l.b16 %v103
  %v636 = vunpack.c.l.b16 %v104
  %v637 = vunpack.c.l.b16 %v105
  %v638 = vunpack.c.l.b16 %v106
  %v639 = vunpack.c.l.b16 %v107
  %v640 = vunpack.c.l.b16 %v108
  %v641 = vunpack.c.l.b16 %v109
  %v642 = vunpack.c.l.b16 %v110
  %v643 = vunpack.c.l.b16 %v111
  %v644 = vunpack.c.l.b16 %v112
  %v645 = vunpack.c.l.b16 %v113
  %v646 = vunpack.c.l.b16 %v114
  %v647 = vunpack.c.l.b16 %v115
  %v648 = vunpack.c.l.b16 %v116
  %v649 = vunpack.c.l.b16 %v117
  %v650 = vunpack.c.l.b16 %v118
  %v651 = vunpack.c.l.b16 %v119
  %v652 = vunpack.c.l.b16 %v120
  %v653 = vunpack.c.l.b16 %v121
  %v654 = vunpack.c.l.b16 %v122
  %v655 = vunpack.c.l.b16 %v123
  %v656 = vunpack.c.l.b16 %v124
  %v657 = vunpack.c.l.b16 %v125
  %v658 = vunpack.c.l.b16 %v126
  %v659 = vunpack.c.l.b16 %v127
  %v660 = vunpack.c.l.b16 %v128
  %v661 = vunpack.c.l.b16 %v129
  %v662 = vunpack.c.l.b16 %v130
  %v663 = vunpack.c.l.b16 %v131
  %v664 = vunpack.c.l.b16 %v132
  %v665 = vunpack.c.l.b16 %v133
  %v666 = vunpack.c.l.b16 %v134
  %v667 = vunpack.c.l.b16 %v135
  %v668 = vunpack.c.l.b16 %v136
  %v669 = vunpack.c.l.b16 %v137
  %v670 = vunpack.c.l.b16 %v138
  %v671 = vunpack.c.l.b16 %v139
  %v672 = vunpack.c.l.b16 %v140
  %v673 = vunpack.c.l.b16 %v141
  %v674 = vunpack.c.l.b16 %v142
  %v675 = vunpack.c.l.b16 %v143
  %v676 = vunpack.c.l.b16 %v144
  %v677 = vunpack.c.l.b16 %v145
  %v678 = vunpack.c.l.b16 %v146
  %v679 = vunpack.c.l.b16 %v147
  %v680 = vunpack.c.l.b16 %v148
  %v681 = vunpack.c.l.b16 %v149
  %v682 = vunpack.c.l.b16 %v150
  %v683 = vunpack.c.l.b16 %v151
  %v684 = vunpack.c.l.b16 %v152
  %v685 = vunpack.c.l.b16 %v153
  %v686 = vunpack.c.l.b16 %v154
  %v687 = vunpack.c.l.b16 %v155
  %v688 = vunpack.c.l.b16 %v156
  %v689 = vunpack.c.l.b16 %v157
  %v690 = vunpack.c.l.b16 %v158
  %v691 = vunpack.c.l.b16 %v159
  %v692 = vunpack.c.l.b16 %v160
  %v693 = vunpack.c.l.b16 %v161
  %v694 = vunpack.c.l.b16 %v162
  %v695 = vunpack.c.l.b16 %v163
  %v696 = vunpack.c.l.b16 %v164
  %v697 = vunpack.c.l.b16 %v165
  %v698 = vunpack.c.l.b16 %v166
  %v699 = vunpack.c.l.b16 %v167
  %v700 = vunpack.c.l.b16 %v168
  %v701 = vunpack.c.l.b16 %v169
  %v702 = vunpack.c.l.b16 %v170
  %v703 = vunpack.c.l.b16 %v171
  %v704 = vunpack.c.l.b16 %v172
  %v705 = vunpack.c.l.b16 %v173
  %v706 = vunpack.c.l.b16 %v174
  %v707 = vunpack.c.l.b16 %v175
  %v708 = vunpack.c.l.b16 %v176
  %v709 = vunpack.c.l.b16 %v177
  %v710 = vunpack.c.l.b16 %v178
  %v711 = vunpack.c.l.b16 %v179
  %v712 = vunpack.c.l.b16 %v180
  %v713 = vunpack.c.l.b16 %v181
  %v714 = vunpack.c.l.b16 %v182
  %v715 = vunpack.c.l.b16 %v183
  %v716 = vunpack.c.l.b16 %v184
  %v717 = vunpack.c.l.b16 %v185
  %v718 = vunpack.c.l.b16 %v186
  %v719 = vunpack.c.l.b16 %v187
  %v720 = vunpack.c.l.b16 %v188
  %v721 = vunpack.c.l.b16 %v189
  %v722 = vunpack.c.l.b16 %v190
  %v723 = vunpack.c.l.b16 %v191
  %v724 = vunpack.c.l.b16 %v192
  %v725 = vunpack.c.l.b16 %v193
  %v726 = vunpack.c.l.b16 %v194
  %v727 = vunpack.c.l.b16 %v195
  %v728 = vunpack.c.l.b16 %v196
  %v729 = vunpack.c.l.b16 %v197
  %v730 = vunpack.c.l.b16 %v198
  %v731 = vunpack.c.l.b16 %v199
  %v732 = vunpack.c.l.b16 %v200
  %v733 = vunpack.c.l.b16 %v201
  %v734 = vunpack.c.l.b16 %v202
  %v735 = vunpack.c.l.b16 %v203
  %v736 = vunpack.c.l.b16 %v204
  %v737 = vunpack.c.l.b16 %v205
  %v738 = vunpack.c.l.b16 %v206
  %v739 = vunpack.c.l.b16 %v207
  %v740 = vunpack.c.l.b16 %v208
  %v741 = vunpack.c.l.b16 %v209
  %v742 = vunpack.c.l.b16 %v210
  %v743 = vunpack.c.l.b16 %v211
  %v744 = vunpack.c.l.b16 %v212
  %v745 = vunpack.c.l.b16 %v213
  %v746 = vunpack.c.l.b16 %v214
  %v747 = vunpack.c.l.b16 %v215
  %v748 = vunpack.c.l.b16 %v216
  %v749 = vunpack.c.l.b16 %v217
  %v750 = vunpack.c.l.b16 %v218
  %v751 = vunpack.c.l.b16 %v219
  %v752 = vunpack.c.l.b16 %v220
  %v753 = vunpack.c.l.b16 %v221
  %v754 = vunpack.c.l.b16 %v222
  %v755 = vunpack.c.l.b16 %v223
  %v756 = vunpack.c.l.b16 %v224
  %v757 = vunpack.c.l.b16 %v225
  %v758 = vunpack.c.l.b16 %v226
  %v759 = vunpack.c.l.b16 %v227
  %v760 = vunpack.c.l.b16 %v228
  %v761 = vunpack.c.l.b16 %v229
  %v762 = vunpack.c.l.b16 %v230
  %v763 = vunpack.c.l.b16 %v231
  %v764 = vunpack.c.l.b16 %v232
  %v765 = vunpack.c.l.b16 %v233
  %v766 = vunpack.c.l.b16 %v234
  %v767 = vunpack.c.l.b16 %v235
  %v768 = vunpack.c.l.b16 %v236
  %v769 = vunpack.c.l.b16 %v237
  %v770 = vunpack.c.l.b16 %v238
  %v771 = vunpack.c.l.b16 %v239
  %v772 = vunpack.c.l.b16 %v240
  %v773 = vunpack.c.l.b16 %v241
  %v774 = vunpack.c.l.b16 %v242
  %v775 = vunpack.c.l.b16 %v243
  %v776 = vunpack.c.l.b16 %v244
  %v777 = vunpack.c.l.b16 %v245
  %v778 = vunpack.c.l.b16 %v246
  %v779 = vunpack.c.l.b16 %v247
  %v780 = vunpack.c.l.b16 %v248
  %v781 = vunpack.c.l.b16 %v249
  %v782 = vunpack.c.l.b16 %v250
  %v783 = vunpack.c.l.b16 %v251
  %v784 = vunpack.c.l.b16 %v252
  %v785 = vunpack.c.l.b16 %v253
  %v786 = vunpack.c.l.b16 %v254
  %v787 = vunpack.c.l.b16 %v255
  %v788 = vunpack.c.l.b16 %v256
  %v789 = vunpack.c.l.b16 %v257
  %v790 = vunpack.c.l.b16 %v258
  %v791 = vunpack.c.l.b16 %v259
  %v792 = vunpack.c.l.b16 %v260
  %v793 = vunpack.c.l.b16 %v261
  %v794 = vunpack.c.l.b16 %v262
  %v795 = vunpack.c.l.b16 %v263
  %v796 = vunpack.c.l.b16 %v264
  %v797 = vunpack.c.l.b16 %v265
  %v798 = vunpack.c.l.b16 %v266
  %v799 = vunpack.c.l.b16 %v267
  %v800 = vunpack.c.l.b16 %v268
  %v801 = vunpack.c.l.b16 %v269
  %v802 = vunpack.c.l.b16 %v270
  %v803 = vunpack.c.l.b16 %v271
  %v804 = vunpack.c.l.b16 %v272
  %v805 = vunpack.c.l.b16 %v273
  %v806 = vunpack.c.l.b16 %v274
  %v807 = vunpack.c.l.b16 %v275
  %v808 = vunpack.c.l.b16 %v276
  %v809 = vunpack.c.l.b16 %v277
  %v810 = vunpack.c.l.b16 %v278
  %v811 = vunpack.c.l.b16 %v279
  %v812 = vunpack.c.l.b16 %v280
  %v813 = vunpack.c.l.b16 %v281
  %v814 = vunpack.c.l.b16 %v282
  %v815 = vunpack.c.l.b16 %v283
  %v816 = vunpack.c.l.b16 %v284
  %v817 = vunpack.c.l.b16 %v285
  %v818 = vunpack.c.l.b16 %v286
  %v819 = vunpack.c.l.b16 %v287
  %v820 = vunpack.c.l.b16 %v288
  %v821 = vunpack.c.l.b16 %v289
  %v822 = vunpack.c.l.b16 %v290
  %v823 = vunpack.c.l.b16 %v291
  %v824 = vunpack.c.l.b16 %v292
  %v825 = vunpack.c.l.b16 %v293
  %v826 = vpack.c.b16 %v571, %v570
  %v827 = vpack.c.b16 %v573, %v572
  %v828 = vpack.c.b16 %v575, %v574
  %v829 = vpack.c.b16 %v577, %v576
  %v830 = vpack.c.b16 %v579, %v578
  %v831 = vpack.c.b16 %v581, %v580
  %v832 = vpack.c.b16 %v583, %v582
  %v833 = vpack.c.b16 %v585, %v584
  %v834 = vpack.c.b16 %v587, %v586
  %v835 = vpack.c.b16 %v589, %v588
  %v836 = vpack.c.b16 %v591, %v590
  %v837 = vpack.c.b16 %v593, %v592
  %v838 = vpack.c.b16 %v595, %v594
  %v839 = vpack.c.b16 %v597, %v596
  %v840 = vpack.c.b16 %v599, %v598
  %v841 = vpack.c.b16 %v601, %v600
  %v842 = vpack.c.b16 %v603, %v602
  %v843 = vpack.c.b16 %v605, %v604
  %v844 = vpack.c.b16 %v607, %v606
  %v845 = vpack.c.b16 %v609, %v608
  %v846 = vpack.c.b16 %v611, %v610
  %v847 = vpack.c.b16 %v613, %v612
  %v848 = vpack.c.b16 %v615, %v614
  %v849 = vpack.c.b16 %v617, %v616
  %v850 = vpack.c.b16 %v619, %v618
  %v851 = vpack.c.b16 %v621, %v620
  %v852 = vpack.c.b16 %v623, %v622
  %v853 = vpack.c.b16 %v625, %v624
  %v854 = vpack.c.b16 %v627, %v626
  %v855 = vpack.c.b16 %v629, %v628
  %v856 = vpack.c.b16 %v631, %v630
  %v857 = vpack.c.b16 %v633, %v632
  %v858 = vpack.c.b16 %v635, %v634
  %v859 = vpack.c.b16 %v637, %v636
  %v860 = vpack.c.b16 %v639, %v638
  %v861 = vpack.c.b16 %v641, %v640
  %v862 = vpack.c.b16 %v643, %v642
  %v863 = vpack.c.b16 %v645, %v644
  %v864 = vpack.c.b16 %v647, %v646
  %v865 = vpack.c.b16 %v649, %v648
  %v866 = vpack.c.b16 %v651, %v650
  %v867 = vpack.c.b16 %v653, %v652
  %v868 = vpack.c.b16 %v655, %v654
  %v869 = vpack.c.b16 %v657, %v656
  %v870 = vpack.c.b16 %v659, %v658
  %v871 = vpack.c.b16 %v661, %v660
  %v872 = vpack.c.b16 %v663, %v662
  %v873 = vpack.c.b16 %v665, %v664
  %v874 = vpack.c.b16 %v667, %v666
  %v875 = vpack.c.b16 %v669, %v668
  %v876 = vpack.c.b16 %v671, %v670
  %v877 = vpack.c.b16 %v673, %v672
  %v878 = vpack.c.b16 %v675, %v674
  %v879 = vpack.c.b16 %v677, %v676
  %v880 = vpack.c.b16 %v679, %v678
  %v881 = vpack.c.b16 %v681, %v680
  %v882 = vpack.c.b16 %v683, %v682
  %v883 = vpack.c.b16 %v685, %v684
  %v884 = vpack.c.b16 %v687, %v686
  %v885 = vpack.c.b16 %v689, %v688
  %v886 = vpack.c.b16 %v691, %v690
  %v887 = vpack.c.b16 %v693, %v692
  %v888 = vpack.c.b16 %v695, %v694
  %v889 = vpack.c.b16 %v697, %v696
  %v890 = vpack.c.b16 %v699, %v698
  %v891 = vpack.c.b16 %v701, %v700
  %v892 = vpack.c.b16 %v703, %v702
  %v893 = vpack.c.b16 %v705, %v704
  %v894 = vpack.c.b16 %v707, %v706
  %v895 = vpack.c.b16 %v709, %v708
  %v896 = vpack.c.b16 %v711, %v710
  %v897 = vpack.c.b16 %v713, %v712
  %v898 = vpack.c.b16 %v715, %v714
  %v899 = vpack.c.b16 %v717, %v716
  %v900 = vpack.c.b16 %v719, %v718
  %v901 = vpack.c.b16 %v721, %v720
  %v902 = vpack.c.b16 %v723, %v722
  %v903 = vpack.c.b16 %v725, %v724
  %v904 = vpack.c.b16 %v727, %v726
  %v905 = vpack.c.b16 %v729, %v728
  %v906 = vpack.c.b16 %v731, %v730
  %v907 = vpack.c.b16 %v733, %v732
  %v908 = vpack.c.b16 %v735, %v734
  %v909 = vpack.c.b16 %v737, %v736
  %v910 = vpack.c.b16 %v739, %v738
  %v911 = vpack.c.b16 %v741, %v740
  %v912 = vpack.c.b16 %v743, %v742
  %v913 = vpack.c.b16 %v745, %v744
  %v914 = vpack.c.b16 %v747, %v746
  %v915 = vpack.c.b16 %v749, %v748
  %v916 = vpack.c.b16 %v751, %v750
  %v917 = vpack.c.b16 %v753, %v752
  %v918 = vpack.c.b16 %v755, %v754
  %v919 = vpack.c.b16 %v757, %v756
  %v920 = vpack.c.b16 %v759, %v758
  %v921 = vpack.c.b16 %v761, %v760
  %v922 = vpack.c.b16 %v763, %v762
  %v923 = vpack.c.b16 %v765, %v764
  %v924 = vpack.c.b16 %v767, %v766
  %v925 = vpack.c.b16 %v769, %v768
  %v926 = vpack.c.b16 %v771, %v770
  %v927 = vpack.c.b16 %v773, %v772
  %v928 = vpack.c.b16 %v775, %v774
  %v929 = vpack.c.b16 %v777, %v776
  %v930 = vpack.c.b16 %v779, %v778
  %v931 = vpack.c.b16 %v781, %v780
  %v932 = vpack.c.b16 %v783, %v782
  %v933 = vpack.c.b16 %v785, %v784
  %v934 = vpack.c.b16 %v787, %v786
  %v935 = vpack.c.b16 %v789, %v788
  %v936 = vpack.c.b16 %v791, %v790
  %v937 = vpack.c.b16 %v793, %v792
  %v938 = vpack.c.b16 %v795, %v794
  %v939 = vpack.c.b16 %v797, %v796
  %v940 = vpack.c.b16 %v799, %v798
  %v941 = vpack.c.b16 %v801, %v800
  %v942 = vpack.c.b16 %v803, %v802
  %v943 = vpack.c.b16 %v805, %v804
  %v944 = vpack.c.b16 %v807, %v806
  %v945 = vpack.c.b16 %v809, %v808
  %v946 = vpack.c.b16 %v811, %v810
  %v947 = vpack.c.b16 %v813, %v812
  %v948 = vpack.c.b16 %v815, %v814
  %v949 = vpack.c.b16 %v817, %v816
  %v950 = vpack.c.b16 %v819, %v818
  %v951 = vpack.c.b16 %v821, %v820
  %v952 = vpack.c.b16 %v823, %v822
  %v953 = vpack.c.b16 %v825, %v824
  %v1098 = vunpack.c.l.b16 %v294
  %v1099 = vunpack.c.l.b16 %v295
  %v1100 = vunpack.c.l.b16 %v296
  %v1101 = vunpack.c.l.b16 %v297
  %v1102 = vunpack.c.l.b16 %v298
  %v1103 = vunpack.c.l.b16 %v299
  %v1104 = vunpack.c.l.b16 %v300
  %v1105 = vunpack.c.l.b16 %v301
  %v1106 = vunpack.c.l.b16 %v302
  %v1107 = vunpack.c.l.b16 %v303
  %v1108 = vunpack.c.l.b16 %v304
  %v1109 = vunpack.c.l.b16 %v305
  %v1110 = vunpack.c.l.b16 %v306
  %v1111 = vunpack.c.l.b16 %v307
  %v1112 = vunpack.c.l.b16 %v308
  %v1113 = vunpack.c.l.b16 %v309
  %v1114 = vpack.c.b16 %v1099, %v1098
  %v1115 = vpack.c.b16 %v1101, %v1100
  %v1116 = vpack.c.b16 %v1103, %v1102
  %v1117 = vpack.c.b16 %v1105, %v1104
  %v1118 = vpack.c.b16 %v1107, %v1106
  %v1119 = vpack.c.b16 %v1109, %v1108
  %v1120 = vpack.c.b16 %v1111, %v1110
  %v1121 = vpack.c.b16 %v1113, %v1112
  %1130 = vmatpush.bf16.msra.mxu0 %v1121
  %1131 = vmatpush.bf16.msra.mxu0 %v1120
  %1132 = vmatpush.bf16.msra.mxu0 %v1119
  %1133 = vmatpush.bf16.msra.mxu0 %v1118
  %1134 = vmatpush.bf16.msra.mxu0 %v1117
  %1135 = vmatpush.bf16.msra.mxu0 %v1116
  %1136 = vmatpush.bf16.msra.mxu0 %v1115
  %1137 = vmatpush.bf16.msra.mxu0 %v1114
  %1138 = vmatmul.bf16.gmra.mxu0 %v826
  %v1139 = vpop.f32.mrf.mxu0
  %v1140 = vadd.f32 %v312, %v1139
  %v1141 = vpop.f32.mrf.mxu0
  %v1142 = vadd.f32 %v312, %v1141
  %1143 = vmatmul.bf16.gmra.mxu0 %v827
  %v1144 = vpop.f32.mrf.mxu0
  %v1145 = vadd.f32 %v312, %v1144
  %v1146 = vpop.f32.mrf.mxu0
  %v1147 = vadd.f32 %v312, %v1146
  %1148 = vmatmul.bf16.gmra.mxu0 %v828
  %v1149 = vpop.f32.mrf.mxu0
  %v1150 = vadd.f32 %v312, %v1149
  %v1151 = vpop.f32.mrf.mxu0
  %v1152 = vadd.f32 %v312, %v1151
  %1153 = vmatmul.bf16.gmra.mxu0 %v829
  %v1154 = vpop.f32.mrf.mxu0
  %v1155 = vadd.f32 %v312, %v1154
  %v1156 = vpop.f32.mrf.mxu0
  %v1157 = vadd.f32 %v312, %v1156
  %1158 = vmatmul.bf16.gmra.mxu0 %v830
  %v1159 = vpop.f32.mrf.mxu0
  %v1160 = vadd.f32 %v312, %v1159
  %v1161 = vpop.f32.mrf.mxu0
  %v1162 = vadd.f32 %v312, %v1161
  %1163 = vmatmul.bf16.gmra.mxu0 %v831
  %v1164 = vpop.f32.mrf.mxu0
  %v1165 = vadd.f32 %v312, %v1164
  %v1166 = vpop.f32.mrf.mxu0
  %v1167 = vadd.f32 %v312, %v1166
  %1168 = vmatmul.bf16.gmra.mxu0 %v832
  %v1169 = vpop.f32.mrf.mxu0
  %v1170 = vadd.f32 %v312, %v1169
  %v1171 = vpop.f32.mrf.mxu0
  %v1172 = vadd.f32 %v312, %v1171
  %1173 = vmatmul.bf16.gmra.mxu0 %v833
  %v1174 = vpop.f32.mrf.mxu0
  %v1175 = vadd.f32 %v312, %v1174
  %v1176 = vpop.f32.mrf.mxu0
  %v1177 = vadd.f32 %v312, %v1176
  %1178 = vmatmul.bf16.gmra.mxu0 %v834
  %v1179 = vpop.f32.mrf.mxu0
  %v1180 = vadd.f32 %v312, %v1179
  %v1181 = vpop.f32.mrf.mxu0
  %v1182 = vadd.f32 %v312, %v1181
  %1183 = vmatmul.bf16.gmra.mxu0 %v835
  %v1184 = vpop.f32.mrf.mxu0
  %v1185 = vadd.f32 %v312, %v1184
  %v1186 = vpop.f32.mrf.mxu0
  %v1187 = vadd.f32 %v312, %v1186
  %1188 = vmatmul.bf16.gmra.mxu0 %v836
  %v1189 = vpop.f32.mrf.mxu0
  %v1190 = vadd.f32 %v312, %v1189
  %v1191 = vpop.f32.mrf.mxu0
  %v1192 = vadd.f32 %v312, %v1191
  %1193 = vmatmul.bf16.gmra.mxu0 %v837
  %v1194 = vpop.f32.mrf.mxu0
  %v1195 = vadd.f32 %v312, %v1194
  %v1196 = vpop.f32.mrf.mxu0
  %v1197 = vadd.f32 %v312, %v1196
  %1198 = vmatmul.bf16.gmra.mxu0 %v838
  %v1199 = vpop.f32.mrf.mxu0
  %v1200 = vadd.f32 %v312, %v1199
  %v1201 = vpop.f32.mrf.mxu0
  %v1202 = vadd.f32 %v312, %v1201
  %1203 = vmatmul.bf16.gmra.mxu0 %v839
  %v1204 = vpop.f32.mrf.mxu0
  %v1205 = vadd.f32 %v312, %v1204
  %v1206 = vpop.f32.mrf.mxu0
  %v1207 = vadd.f32 %v312, %v1206
  %1208 = vmatmul.bf16.gmra.mxu0 %v840
  %v1209 = vpop.f32.mrf.mxu0
  %v1210 = vadd.f32 %v312, %v1209
  %v1211 = vpop.f32.mrf.mxu0
  %v1212 = vadd.f32 %v312, %v1211
  %1213 = vmatmul.bf16.gmra.mxu0 %v841
  %v1214 = vpop.f32.mrf.mxu0
  %v1215 = vadd.f32 %v312, %v1214
  %v1216 = vpop.f32.mrf.mxu0
  %v1217 = vadd.f32 %v312, %v1216
  %1218 = vmatmul.bf16.gmra.mxu0 %v842
  %v1219 = vpop.f32.mrf.mxu0
  %v1220 = vadd.f32 %v312, %v1219
  %v1221 = vpop.f32.mrf.mxu0
  %v1222 = vadd.f32 %v312, %v1221
  %1223 = vmatmul.bf16.gmra.mxu0 %v843
  %v1224 = vpop.f32.mrf.mxu0
  %v1225 = vadd.f32 %v312, %v1224
  %v1226 = vpop.f32.mrf.mxu0
  %v1227 = vadd.f32 %v312, %v1226
  %1228 = vmatmul.bf16.gmra.mxu0 %v844
  %v1229 = vpop.f32.mrf.mxu0
  %v1230 = vadd.f32 %v312, %v1229
  %v1231 = vpop.f32.mrf.mxu0
  %v1232 = vadd.f32 %v312, %v1231
  %1233 = vmatmul.bf16.gmra.mxu0 %v845
  %v1234 = vpop.f32.mrf.mxu0
  %v1235 = vadd.f32 %v312, %v1234
  %v1236 = vpop.f32.mrf.mxu0
  %v1237 = vadd.f32 %v312, %v1236
  %1238 = vmatmul.bf16.gmra.mxu0 %v846
  %v1239 = vpop.f32.mrf.mxu0
  %v1240 = vadd.f32 %v312, %v1239
  %v1241 = vpop.f32.mrf.mxu0
  %v1242 = vadd.f32 %v312, %v1241
  %1243 = vmatmul.bf16.gmra.mxu0 %v847
  %v1244 = vpop.f32.mrf.mxu0
  %v1245 = vadd.f32 %v312, %v1244
  %v1246 = vpop.f32.mrf.mxu0
  %v1247 = vadd.f32 %v312, %v1246
  %1248 = vmatmul.bf16.gmra.mxu0 %v848
  %v1249 = vpop.f32.mrf.mxu0
  %v1250 = vadd.f32 %v312, %v1249
  %v1251 = vpop.f32.mrf.mxu0
  %v1252 = vadd.f32 %v312, %v1251
  %1253 = vmatmul.bf16.gmra.mxu0 %v849
  %v1254 = vpop.f32.mrf.mxu0
  %v1255 = vadd.f32 %v312, %v1254
  %v1256 = vpop.f32.mrf.mxu0
  %v1257 = vadd.f32 %v312, %v1256
  %1258 = vmatmul.bf16.gmra.mxu0 %v850
  %v1259 = vpop.f32.mrf.mxu0
  %v1260 = vadd.f32 %v312, %v1259
  %v1261 = vpop.f32.mrf.mxu0
  %v1262 = vadd.f32 %v312, %v1261
  %1263 = vmatmul.bf16.gmra.mxu0 %v851
  %v1264 = vpop.f32.mrf.mxu0
  %v1265 = vadd.f32 %v312, %v1264
  %v1266 = vpop.f32.mrf.mxu0
  %v1267 = vadd.f32 %v312, %v1266
  %1268 = vmatmul.bf16.gmra.mxu0 %v852
  %v1269 = vpop.f32.mrf.mxu0
  %v1270 = vadd.f32 %v312, %v1269
  %v1271 = vpop.f32.mrf.mxu0
  %v1272 = vadd.f32 %v312, %v1271
  %1273 = vmatmul.bf16.gmra.mxu0 %v853
  %v1274 = vpop.f32.mrf.mxu0
  %v1275 = vadd.f32 %v312, %v1274
  %v1276 = vpop.f32.mrf.mxu0
  %v1277 = vadd.f32 %v312, %v1276
  %1278 = vmatmul.bf16.gmra.mxu0 %v854
  %v1279 = vpop.f32.mrf.mxu0
  %v1280 = vadd.f32 %v312, %v1279
  %v1281 = vpop.f32.mrf.mxu0
  %v1282 = vadd.f32 %v312, %v1281
  %1283 = vmatmul.bf16.gmra.mxu0 %v855
  %v1284 = vpop.f32.mrf.mxu0
  %v1285 = vadd.f32 %v312, %v1284
  %v1286 = vpop.f32.mrf.mxu0
  %v1287 = vadd.f32 %v312, %v1286
  %1288 = vmatmul.bf16.gmra.mxu0 %v856
  %v1289 = vpop.f32.mrf.mxu0
  %v1290 = vadd.f32 %v312, %v1289
  %v1291 = vpop.f32.mrf.mxu0
  %v1292 = vadd.f32 %v312, %v1291
  %1293 = vmatmul.bf16.gmra.mxu0 %v857
  %v1294 = vpop.f32.mrf.mxu0
  %v1295 = vadd.f32 %v312, %v1294
  %v1296 = vpop.f32.mrf.mxu0
  %v1297 = vadd.f32 %v312, %v1296
  %1298 = vmatmul.bf16.gmra.mxu0 %v858
  %v1299 = vpop.f32.mrf.mxu0
  %v1300 = vadd.f32 %v312, %v1299
  %v1301 = vpop.f32.mrf.mxu0
  %v1302 = vadd.f32 %v312, %v1301
  %1303 = vmatmul.bf16.gmra.mxu0 %v859
  %v1304 = vpop.f32.mrf.mxu0
  %v1305 = vadd.f32 %v312, %v1304
  %v1306 = vpop.f32.mrf.mxu0
  %v1307 = vadd.f32 %v312, %v1306
  %1308 = vmatmul.bf16.gmra.mxu0 %v860
  %v1309 = vpop.f32.mrf.mxu0
  %v1310 = vadd.f32 %v312, %v1309
  %v1311 = vpop.f32.mrf.mxu0
  %v1312 = vadd.f32 %v312, %v1311
  %1313 = vmatmul.bf16.gmra.mxu0 %v861
  %v1314 = vpop.f32.mrf.mxu0
  %v1315 = vadd.f32 %v312, %v1314
  %v1316 = vpop.f32.mrf.mxu0
  %v1317 = vadd.f32 %v312, %v1316
  %1318 = vmatmul.bf16.gmra.mxu0 %v862
  %v1319 = vpop.f32.mrf.mxu0
  %v1320 = vadd.f32 %v312, %v1319
  %v1321 = vpop.f32.mrf.mxu0
  %v1322 = vadd.f32 %v312, %v1321
  %1323 = vmatmul.bf16.gmra.mxu0 %v863
  %v1324 = vpop.f32.mrf.mxu0
  %v1325 = vadd.f32 %v312, %v1324
  %v1326 = vpop.f32.mrf.mxu0
  %v1327 = vadd.f32 %v312, %v1326
  %1328 = vmatmul.bf16.gmra.mxu0 %v864
  %v1329 = vpop.f32.mrf.mxu0
  %v1330 = vadd.f32 %v312, %v1329
  %v1331 = vpop.f32.mrf.mxu0
  %v1332 = vadd.f32 %v312, %v1331
  %1333 = vmatmul.bf16.gmra.mxu0 %v865
  %v1334 = vpop.f32.mrf.mxu0
  %v1335 = vadd.f32 %v312, %v1334
  %v1336 = vpop.f32.mrf.mxu0
  %v1337 = vadd.f32 %v312, %v1336
  %1338 = vmatmul.bf16.gmra.mxu0 %v866
  %v1339 = vpop.f32.mrf.mxu0
  %v1340 = vadd.f32 %v312, %v1339
  %v1341 = vpop.f32.mrf.mxu0
  %v1342 = vadd.f32 %v312, %v1341
  %1343 = vmatmul.bf16.gmra.mxu0 %v867
  %v1344 = vpop.f32.mrf.mxu0
  %v1345 = vadd.f32 %v312, %v1344
  %v1346 = vpop.f32.mrf.mxu0
  %v1347 = vadd.f32 %v312, %v1346
  %1348 = vmatmul.bf16.gmra.mxu0 %v868
  %v1349 = vpop.f32.mrf.mxu0
  %v1350 = vadd.f32 %v312, %v1349
  %v1351 = vpop.f32.mrf.mxu0
  %v1352 = vadd.f32 %v312, %v1351
  %1353 = vmatmul.bf16.gmra.mxu0 %v869
  %v1354 = vpop.f32.mrf.mxu0
  %v1355 = vadd.f32 %v312, %v1354
  %v1356 = vpop.f32.mrf.mxu0
  %v1357 = vadd.f32 %v312, %v1356
  %1358 = vmatmul.bf16.gmra.mxu0 %v870
  %v1359 = vpop.f32.mrf.mxu0
  %v1360 = vadd.f32 %v312, %v1359
  %v1361 = vpop.f32.mrf.mxu0
  %v1362 = vadd.f32 %v312, %v1361
  %1363 = vmatmul.bf16.gmra.mxu0 %v871
  %v1364 = vpop.f32.mrf.mxu0
  %v1365 = vadd.f32 %v312, %v1364
  %v1366 = vpop.f32.mrf.mxu0
  %v1367 = vadd.f32 %v312, %v1366
  %1368 = vmatmul.bf16.gmra.mxu0 %v872
  %v1369 = vpop.f32.mrf.mxu0
  %v1370 = vadd.f32 %v312, %v1369
  %v1371 = vpop.f32.mrf.mxu0
  %v1372 = vadd.f32 %v312, %v1371
  %1373 = vmatmul.bf16.gmra.mxu0 %v873
  %v1374 = vpop.f32.mrf.mxu0
  %v1375 = vadd.f32 %v312, %v1374
  %v1376 = vpop.f32.mrf.mxu0
  %v1377 = vadd.f32 %v312, %v1376
  %1378 = vmatmul.bf16.gmra.mxu0 %v874
  %v1379 = vpop.f32.mrf.mxu0
  %v1380 = vadd.f32 %v312, %v1379
  %v1381 = vpop.f32.mrf.mxu0
  %v1382 = vadd.f32 %v312, %v1381
  %1383 = vmatmul.bf16.gmra.mxu0 %v875
  %v1384 = vpop.f32.mrf.mxu0
  %v1385 = vadd.f32 %v312, %v1384
  %v1386 = vpop.f32.mrf.mxu0
  %v1387 = vadd.f32 %v312, %v1386
  %1388 = vmatmul.bf16.gmra.mxu0 %v876
  %v1389 = vpop.f32.mrf.mxu0
  %v1390 = vadd.f32 %v312, %v1389
  %v1391 = vpop.f32.mrf.mxu0
  %v1392 = vadd.f32 %v312, %v1391
  %1393 = vmatmul.bf16.gmra.mxu0 %v877
  %v1394 = vpop.f32.mrf.mxu0
  %v1395 = vadd.f32 %v312, %v1394
  %v1396 = vpop.f32.mrf.mxu0
  %v1397 = vadd.f32 %v312, %v1396
  %1398 = vmatmul.bf16.gmra.mxu0 %v878
  %v1399 = vpop.f32.mrf.mxu0
  %v1400 = vadd.f32 %v312, %v1399
  %v1401 = vpop.f32.mrf.mxu0
  %v1402 = vadd.f32 %v312, %v1401
  %1403 = vmatmul.bf16.gmra.mxu0 %v879
  %v1404 = vpop.f32.mrf.mxu0
  %v1405 = vadd.f32 %v312, %v1404
  %v1406 = vpop.f32.mrf.mxu0
  %v1407 = vadd.f32 %v312, %v1406
  %1408 = vmatmul.bf16.gmra.mxu0 %v880
  %v1409 = vpop.f32.mrf.mxu0
  %v1410 = vadd.f32 %v312, %v1409
  %v1411 = vpop.f32.mrf.mxu0
  %v1412 = vadd.f32 %v312, %v1411
  %1413 = vmatmul.bf16.gmra.mxu0 %v881
  %v1414 = vpop.f32.mrf.mxu0
  %v1415 = vadd.f32 %v312, %v1414
  %v1416 = vpop.f32.mrf.mxu0
  %v1417 = vadd.f32 %v312, %v1416
  %1418 = vmatmul.bf16.gmra.mxu0 %v882
  %v1419 = vpop.f32.mrf.mxu0
  %v1420 = vadd.f32 %v312, %v1419
  %v1421 = vpop.f32.mrf.mxu0
  %v1422 = vadd.f32 %v312, %v1421
  %1423 = vmatmul.bf16.gmra.mxu0 %v883
  %v1424 = vpop.f32.mrf.mxu0
  %v1425 = vadd.f32 %v312, %v1424
  %v1426 = vpop.f32.mrf.mxu0
  %v1427 = vadd.f32 %v312, %v1426
  %1428 = vmatmul.bf16.gmra.mxu0 %v884
  %v1429 = vpop.f32.mrf.mxu0
  %v1430 = vadd.f32 %v312, %v1429
  %v1431 = vpop.f32.mrf.mxu0
  %v1432 = vadd.f32 %v312, %v1431
  %1433 = vmatmul.bf16.gmra.mxu0 %v885
  %v1434 = vpop.f32.mrf.mxu0
  %v1435 = vadd.f32 %v312, %v1434
  %v1436 = vpop.f32.mrf.mxu0
  %v1437 = vadd.f32 %v312, %v1436
  %1438 = vmatmul.bf16.gmra.mxu0 %v886
  %v1439 = vpop.f32.mrf.mxu0
  %v1440 = vadd.f32 %v312, %v1439
  %v1441 = vpop.f32.mrf.mxu0
  %v1442 = vadd.f32 %v312, %v1441
  %1443 = vmatmul.bf16.gmra.mxu0 %v887
  %v1444 = vpop.f32.mrf.mxu0
  %v1445 = vadd.f32 %v312, %v1444
  %v1446 = vpop.f32.mrf.mxu0
  %v1447 = vadd.f32 %v312, %v1446
  %1448 = vmatmul.bf16.gmra.mxu0 %v888
  %v1449 = vpop.f32.mrf.mxu0
  %v1450 = vadd.f32 %v312, %v1449
  %v1451 = vpop.f32.mrf.mxu0
  %v1452 = vadd.f32 %v312, %v1451
  %1453 = vmatmul.bf16.gmra.mxu0 %v889
  %v1454 = vpop.f32.mrf.mxu0
  %v1455 = vadd.f32 %v312, %v1454
  %v1456 = vpop.f32.mrf.mxu0
  %v1457 = vadd.f32 %v312, %v1456
  %1458 = vmatmul.bf16.gmra.mxu0 %v890
  %v1459 = vpop.f32.mrf.mxu0
  %v1460 = vadd.f32 %v312, %v1459
  %v1461 = vpop.f32.mrf.mxu0
  %v1462 = vadd.f32 %v312, %v1461
  %1463 = vmatmul.bf16.gmra.mxu0 %v891
  %v1464 = vpop.f32.mrf.mxu0
  %v1465 = vadd.f32 %v312, %v1464
  %v1466 = vpop.f32.mrf.mxu0
  %v1467 = vadd.f32 %v312, %v1466
  %1468 = vmatmul.bf16.gmra.mxu0 %v892
  %v1469 = vpop.f32.mrf.mxu0
  %v1470 = vadd.f32 %v312, %v1469
  %v1471 = vpop.f32.mrf.mxu0
  %v1472 = vadd.f32 %v312, %v1471
  %1473 = vmatmul.bf16.gmra.mxu0 %v893
  %v1474 = vpop.f32.mrf.mxu0
  %v1475 = vadd.f32 %v312, %v1474
  %v1476 = vpop.f32.mrf.mxu0
  %v1477 = vadd.f32 %v312, %v1476
  %1478 = vmatmul.bf16.gmra.mxu0 %v894
  %v1479 = vpop.f32.mrf.mxu0
  %v1480 = vadd.f32 %v312, %v1479
  %v1481 = vpop.f32.mrf.mxu0
  %v1482 = vadd.f32 %v312, %v1481
  %1483 = vmatmul.bf16.gmra.mxu0 %v895
  %v1484 = vpop.f32.mrf.mxu0
  %v1485 = vadd.f32 %v312, %v1484
  %v1486 = vpop.f32.mrf.mxu0
  %v1487 = vadd.f32 %v312, %v1486
  %1488 = vmatmul.bf16.gmra.mxu0 %v896
  %v1489 = vpop.f32.mrf.mxu0
  %v1490 = vadd.f32 %v312, %v1489
  %v1491 = vpop.f32.mrf.mxu0
  %v1492 = vadd.f32 %v312, %v1491
  %1493 = vmatmul.bf16.gmra.mxu0 %v897
  %v1494 = vpop.f32.mrf.mxu0
  %v1495 = vadd.f32 %v312, %v1494
  %v1496 = vpop.f32.mrf.mxu0
  %v1497 = vadd.f32 %v312, %v1496
  %1498 = vmatmul.bf16.gmra.mxu0 %v898
  %v1499 = vpop.f32.mrf.mxu0
  %v1500 = vadd.f32 %v312, %v1499
  %v1501 = vpop.f32.mrf.mxu0
  %v1502 = vadd.f32 %v312, %v1501
  %1503 = vmatmul.bf16.gmra.mxu0 %v899
  %v1504 = vpop.f32.mrf.mxu0
  %v1505 = vadd.f32 %v312, %v1504
  %v1506 = vpop.f32.mrf.mxu0
  %v1507 = vadd.f32 %v312, %v1506
  %1508 = vmatmul.bf16.gmra.mxu0 %v900
  %v1509 = vpop.f32.mrf.mxu0
  %v1510 = vadd.f32 %v312, %v1509
  %v1511 = vpop.f32.mrf.mxu0
  %v1512 = vadd.f32 %v312, %v1511
  %1513 = vmatmul.bf16.gmra.mxu0 %v901
  %v1514 = vpop.f32.mrf.mxu0
  %v1515 = vadd.f32 %v312, %v1514
  %v1516 = vpop.f32.mrf.mxu0
  %v1517 = vadd.f32 %v312, %v1516
  %1518 = vmatmul.bf16.gmra.mxu0 %v902
  %v1519 = vpop.f32.mrf.mxu0
  %v1520 = vadd.f32 %v312, %v1519
  %v1521 = vpop.f32.mrf.mxu0
  %v1522 = vadd.f32 %v312, %v1521
  %1523 = vmatmul.bf16.gmra.mxu0 %v903
  %v1524 = vpop.f32.mrf.mxu0
  %v1525 = vadd.f32 %v312, %v1524
  %v1526 = vpop.f32.mrf.mxu0
  %v1527 = vadd.f32 %v312, %v1526
  %1528 = vmatmul.bf16.gmra.mxu0 %v904
  %v1529 = vpop.f32.mrf.mxu0
  %v1530 = vadd.f32 %v312, %v1529
  %v1531 = vpop.f32.mrf.mxu0
  %v1532 = vadd.f32 %v312, %v1531
  %1533 = vmatmul.bf16.gmra.mxu0 %v905
  %v1534 = vpop.f32.mrf.mxu0
  %v1535 = vadd.f32 %v312, %v1534
  %v1536 = vpop.f32.mrf.mxu0
  %v1537 = vadd.f32 %v312, %v1536
  %1538 = vmatmul.bf16.gmra.mxu0 %v906
  %v1539 = vpop.f32.mrf.mxu0
  %v1540 = vadd.f32 %v312, %v1539
  %v1541 = vpop.f32.mrf.mxu0
  %v1542 = vadd.f32 %v312, %v1541
  %1543 = vmatmul.bf16.gmra.mxu0 %v907
  %v1544 = vpop.f32.mrf.mxu0
  %v1545 = vadd.f32 %v312, %v1544
  %v1546 = vpop.f32.mrf.mxu0
  %v1547 = vadd.f32 %v312, %v1546
  %1548 = vmatmul.bf16.gmra.mxu0 %v908
  %v1549 = vpop.f32.mrf.mxu0
  %v1550 = vadd.f32 %v312, %v1549
  %v1551 = vpop.f32.mrf.mxu0
  %v1552 = vadd.f32 %v312, %v1551
  %1553 = vmatmul.bf16.gmra.mxu0 %v909
  %v1554 = vpop.f32.mrf.mxu0
  %v1555 = vadd.f32 %v312, %v1554
  %v1556 = vpop.f32.mrf.mxu0
  %v1557 = vadd.f32 %v312, %v1556
  %1558 = vmatmul.bf16.gmra.mxu0 %v910
  %v1559 = vpop.f32.mrf.mxu0
  %v1560 = vadd.f32 %v312, %v1559
  %v1561 = vpop.f32.mrf.mxu0
  %v1562 = vadd.f32 %v312, %v1561
  %1563 = vmatmul.bf16.gmra.mxu0 %v911
  %v1564 = vpop.f32.mrf.mxu0
  %v1565 = vadd.f32 %v312, %v1564
  %v1566 = vpop.f32.mrf.mxu0
  %v1567 = vadd.f32 %v312, %v1566
  %1568 = vmatmul.bf16.gmra.mxu0 %v912
  %v1569 = vpop.f32.mrf.mxu0
  %v1570 = vadd.f32 %v312, %v1569
  %v1571 = vpop.f32.mrf.mxu0
  %v1572 = vadd.f32 %v312, %v1571
  %1573 = vmatmul.bf16.gmra.mxu0 %v913
  %v1574 = vpop.f32.mrf.mxu0
  %v1575 = vadd.f32 %v312, %v1574
  %v1576 = vpop.f32.mrf.mxu0
  %v1577 = vadd.f32 %v312, %v1576
  %1578 = vmatmul.bf16.gmra.mxu0 %v914
  %v1579 = vpop.f32.mrf.mxu0
  %v1580 = vadd.f32 %v312, %v1579
  %v1581 = vpop.f32.mrf.mxu0
  %v1582 = vadd.f32 %v312, %v1581
  %1583 = vmatmul.bf16.gmra.mxu0 %v915
  %v1584 = vpop.f32.mrf.mxu0
  %v1585 = vadd.f32 %v312, %v1584
  %v1586 = vpop.f32.mrf.mxu0
  %v1587 = vadd.f32 %v312, %v1586
  %1588 = vmatmul.bf16.gmra.mxu0 %v916
  %v1589 = vpop.f32.mrf.mxu0
  %v1590 = vadd.f32 %v312, %v1589
  %v1591 = vpop.f32.mrf.mxu0
  %v1592 = vadd.f32 %v312, %v1591
  %1593 = vmatmul.bf16.gmra.mxu0 %v917
  %v1594 = vpop.f32.mrf.mxu0
  %v1595 = vadd.f32 %v312, %v1594
  %v1596 = vpop.f32.mrf.mxu0
  %v1597 = vadd.f32 %v312, %v1596
  %1598 = vmatmul.bf16.gmra.mxu0 %v918
  %v1599 = vpop.f32.mrf.mxu0
  %v1600 = vadd.f32 %v312, %v1599
  %v1601 = vpop.f32.mrf.mxu0
  %v1602 = vadd.f32 %v312, %v1601
  %1603 = vmatmul.bf16.gmra.mxu0 %v919
  %v1604 = vpop.f32.mrf.mxu0
  %v1605 = vadd.f32 %v312, %v1604
  %v1606 = vpop.f32.mrf.mxu0
  %v1607 = vadd.f32 %v312, %v1606
  %1608 = vmatmul.bf16.gmra.mxu0 %v920
  %v1609 = vpop.f32.mrf.mxu0
  %v1610 = vadd.f32 %v312, %v1609
  %v1611 = vpop.f32.mrf.mxu0
  %v1612 = vadd.f32 %v312, %v1611
  %1613 = vmatmul.bf16.gmra.mxu0 %v921
  %v1614 = vpop.f32.mrf.mxu0
  %v1615 = vadd.f32 %v312, %v1614
  %v1616 = vpop.f32.mrf.mxu0
  %v1617 = vadd.f32 %v312, %v1616
  %1618 = vmatmul.bf16.gmra.mxu0 %v922
  %v1619 = vpop.f32.mrf.mxu0
  %v1620 = vadd.f32 %v312, %v1619
  %v1621 = vpop.f32.mrf.mxu0
  %v1622 = vadd.f32 %v312, %v1621
  %1623 = vmatmul.bf16.gmra.mxu0 %v923
  %v1624 = vpop.f32.mrf.mxu0
  %v1625 = vadd.f32 %v312, %v1624
  %v1626 = vpop.f32.mrf.mxu0
  %v1627 = vadd.f32 %v312, %v1626
  %1628 = vmatmul.bf16.gmra.mxu0 %v924
  %v1629 = vpop.f32.mrf.mxu0
  %v1630 = vadd.f32 %v312, %v1629
  %v1631 = vpop.f32.mrf.mxu0
  %v1632 = vadd.f32 %v312, %v1631
  %1633 = vmatmul.bf16.gmra.mxu0 %v925
  %v1634 = vpop.f32.mrf.mxu0
  %v1635 = vadd.f32 %v312, %v1634
  %v1636 = vpop.f32.mrf.mxu0
  %v1637 = vadd.f32 %v312, %v1636
  %1638 = vmatmul.bf16.gmra.mxu0 %v926
  %v1639 = vpop.f32.mrf.mxu0
  %v1640 = vadd.f32 %v312, %v1639
  %v1641 = vpop.f32.mrf.mxu0
  %v1642 = vadd.f32 %v312, %v1641
  %1643 = vmatmul.bf16.gmra.mxu0 %v927
  %v1644 = vpop.f32.mrf.mxu0
  %v1645 = vadd.f32 %v312, %v1644
  %v1646 = vpop.f32.mrf.mxu0
  %v1647 = vadd.f32 %v312, %v1646
  %1648 = vmatmul.bf16.gmra.mxu0 %v928
  %v1649 = vpop.f32.mrf.mxu0
  %v1650 = vadd.f32 %v312, %v1649
  %v1651 = vpop.f32.mrf.mxu0
  %v1652 = vadd.f32 %v312, %v1651
  %1653 = vmatmul.bf16.gmra.mxu0 %v929
  %v1654 = vpop.f32.mrf.mxu0
  %v1655 = vadd.f32 %v312, %v1654
  %v1656 = vpop.f32.mrf.mxu0
  %v1657 = vadd.f32 %v312, %v1656
  %1658 = vmatmul.bf16.gmra.mxu0 %v930
  %v1659 = vpop.f32.mrf.mxu0
  %v1660 = vadd.f32 %v312, %v1659
  %v1661 = vpop.f32.mrf.mxu0
  %v1662 = vadd.f32 %v312, %v1661
  %1663 = vmatmul.bf16.gmra.mxu0 %v931
  %v1664 = vpop.f32.mrf.mxu0
  %v1665 = vadd.f32 %v312, %v1664
  %v1666 = vpop.f32.mrf.mxu0
  %v1667 = vadd.f32 %v312, %v1666
  %1668 = vmatmul.bf16.gmra.mxu0 %v932
  %v1669 = vpop.f32.mrf.mxu0
  %v1670 = vadd.f32 %v312, %v1669
  %v1671 = vpop.f32.mrf.mxu0
  %v1672 = vadd.f32 %v312, %v1671
  %1673 = vmatmul.bf16.gmra.mxu0 %v933
  %v1674 = vpop.f32.mrf.mxu0
  %v1675 = vadd.f32 %v312, %v1674
  %v1676 = vpop.f32.mrf.mxu0
  %v1677 = vadd.f32 %v312, %v1676
  %1678 = vmatmul.bf16.gmra.mxu0 %v934
  %v1679 = vpop.f32.mrf.mxu0
  %v1680 = vadd.f32 %v312, %v1679
  %v1681 = vpop.f32.mrf.mxu0
  %v1682 = vadd.f32 %v312, %v1681
  %1683 = vmatmul.bf16.gmra.mxu0 %v935
  %v1684 = vpop.f32.mrf.mxu0
  %v1685 = vadd.f32 %v312, %v1684
  %v1686 = vpop.f32.mrf.mxu0
  %v1687 = vadd.f32 %v312, %v1686
  %1688 = vmatmul.bf16.gmra.mxu0 %v936
  %v1689 = vpop.f32.mrf.mxu0
  %v1690 = vadd.f32 %v312, %v1689
  %v1691 = vpop.f32.mrf.mxu0
  %v1692 = vadd.f32 %v312, %v1691
  %1693 = vmatmul.bf16.gmra.mxu0 %v937
  %v1694 = vpop.f32.mrf.mxu0
  %v1695 = vadd.f32 %v312, %v1694
  %v1696 = vpop.f32.mrf.mxu0
  %v1697 = vadd.f32 %v312, %v1696
  %1698 = vmatmul.bf16.gmra.mxu0 %v938
  %v1699 = vpop.f32.mrf.mxu0
  %v1700 = vadd.f32 %v312, %v1699
  %v1701 = vpop.f32.mrf.mxu0
  %v1702 = vadd.f32 %v312, %v1701
  %1703 = vmatmul.bf16.gmra.mxu0 %v939
  %v1704 = vpop.f32.mrf.mxu0
  %v1705 = vadd.f32 %v312, %v1704
  %v1706 = vpop.f32.mrf.mxu0
  %v1707 = vadd.f32 %v312, %v1706
  %1708 = vmatmul.bf16.gmra.mxu0 %v940
  %v1709 = vpop.f32.mrf.mxu0
  %v1710 = vadd.f32 %v312, %v1709
  %v1711 = vpop.f32.mrf.mxu0
  %v1712 = vadd.f32 %v312, %v1711
  %1713 = vmatmul.bf16.gmra.mxu0 %v941
  %v1714 = vpop.f32.mrf.mxu0
  %v1715 = vadd.f32 %v312, %v1714
  %v1716 = vpop.f32.mrf.mxu0
  %v1717 = vadd.f32 %v312, %v1716
  %1718 = vmatmul.bf16.gmra.mxu0 %v942
  %v1719 = vpop.f32.mrf.mxu0
  %v1720 = vadd.f32 %v312, %v1719
  %v1721 = vpop.f32.mrf.mxu0
  %v1722 = vadd.f32 %v312, %v1721
  %1723 = vmatmul.bf16.gmra.mxu0 %v943
  %v1724 = vpop.f32.mrf.mxu0
  %v1725 = vadd.f32 %v312, %v1724
  %v1726 = vpop.f32.mrf.mxu0
  %v1727 = vadd.f32 %v312, %v1726
  %1728 = vmatmul.bf16.gmra.mxu0 %v944
  %v1729 = vpop.f32.mrf.mxu0
  %v1730 = vadd.f32 %v312, %v1729
  %v1731 = vpop.f32.mrf.mxu0
  %v1732 = vadd.f32 %v312, %v1731
  %1733 = vmatmul.bf16.gmra.mxu0 %v945
  %v1734 = vpop.f32.mrf.mxu0
  %v1735 = vadd.f32 %v312, %v1734
  %v1736 = vpop.f32.mrf.mxu0
  %v1737 = vadd.f32 %v312, %v1736
  %1738 = vmatmul.bf16.gmra.mxu0 %v946
  %v1739 = vpop.f32.mrf.mxu0
  %v1740 = vadd.f32 %v312, %v1739
  %v1741 = vpop.f32.mrf.mxu0
  %v1742 = vadd.f32 %v312, %v1741
  %1743 = vmatmul.bf16.gmra.mxu0 %v947
  %v1744 = vpop.f32.mrf.mxu0
  %v1745 = vadd.f32 %v312, %v1744
  %v1746 = vpop.f32.mrf.mxu0
  %v1747 = vadd.f32 %v312, %v1746
  %1748 = vmatmul.bf16.gmra.mxu0 %v948
  %v1749 = vpop.f32.mrf.mxu0
  %v1750 = vadd.f32 %v312, %v1749
  %v1751 = vpop.f32.mrf.mxu0
  %v1752 = vadd.f32 %v312, %v1751
  %1753 = vmatmul.bf16.gmra.mxu0 %v949
  %v1754 = vpop.f32.mrf.mxu0
  %v1755 = vadd.f32 %v312, %v1754
  %v1756 = vpop.f32.mrf.mxu0
  %v1757 = vadd.f32 %v312, %v1756
  %1758 = vmatmul.bf16.gmra.mxu0 %v950
  %v1759 = vpop.f32.mrf.mxu0
  %v1760 = vadd.f32 %v312, %v1759
  %v1761 = vpop.f32.mrf.mxu0
  %v1762 = vadd.f32 %v312, %v1761
  %1763 = vmatmul.bf16.gmra.mxu0 %v951
  %v1764 = vpop.f32.mrf.mxu0
  %v1765 = vadd.f32 %v312, %v1764
  %v1766 = vpop.f32.mrf.mxu0
  %v1767 = vadd.f32 %v312, %v1766
  %1768 = vmatmul.bf16.gmra.mxu0 %v952
  %v1769 = vpop.f32.mrf.mxu0
  %v1770 = vadd.f32 %v312, %v1769
  %v1771 = vpop.f32.mrf.mxu0
  %v1772 = vadd.f32 %v312, %v1771
  %1773 = vmatmul.bf16.gmra.mxu0 %v953
  %v1774 = vpop.f32.mrf.mxu0
  %v1775 = vadd.f32 %v312, %v1774
  %v1776 = vpop.f32.mrf.mxu0
  %v1777 = vadd.f32 %v312, %v1776
  %1778 = vdwg.mxu0
  %v1779 = vmax.f32 %v1140, 0.0
  %v1780 = vmax.f32 %v1142, 0.0
  %v1781 = vmax.f32 %v1145, 0.0
  %v1782 = vmax.f32 %v1147, 0.0
  %v1783 = vmax.f32 %v1150, 0.0
  %v1784 = vmax.f32 %v1152, 0.0
  %v1785 = vmax.f32 %v1155, 0.0
  %v1786 = vmax.f32 %v1157, 0.0
  %v1787 = vmax.f32 %v1160, 0.0
  %v1788 = vmax.f32 %v1162, 0.0
  %v1789 = vmax.f32 %v1165, 0.0
  %v1790 = vmax.f32 %v1167, 0.0
  %v1791 = vmax.f32 %v1170, 0.0
  %v1792 = vmax.f32 %v1172, 0.0
  %v1793 = vmax.f32 %v1175, 0.0
  %v1794 = vmax.f32 %v1177, 0.0
  %v1795 = vmax.f32 %v1180, 0.0
  %v1796 = vmax.f32 %v1182, 0.0
  %v1797 = vmax.f32 %v1185, 0.0
  %v1798 = vmax.f32 %v1187, 0.0
  %v1799 = vmax.f32 %v1190, 0.0
  %v1800 = vmax.f32 %v1192, 0.0
  %v1801 = vmax.f32 %v1195, 0.0
  %v1802 = vmax.f32 %v1197, 0.0
  %v1803 = vmax.f32 %v1200, 0.0
  %v1804 = vmax.f32 %v1202, 0.0
  %v1805 = vmax.f32 %v1205, 0.0
  %v1806 = vmax.f32 %v1207, 0.0
  %v1807 = vmax.f32 %v1210, 0.0
  %v1808 = vmax.f32 %v1212, 0.0
  %v1809 = vmax.f32 %v1215, 0.0
  %v1810 = vmax.f32 %v1217, 0.0
  %v1811 = vmax.f32 %v1220, 0.0
  %v1812 = vmax.f32 %v1222, 0.0
  %v1813 = vmax.f32 %v1225, 0.0
  %v1814 = vmax.f32 %v1227, 0.0
  %v1815 = vmax.f32 %v1230, 0.0
  %v1816 = vmax.f32 %v1232, 0.0
  %v1817 = vmax.f32 %v1235, 0.0
  %v1818 = vmax.f32 %v1237, 0.0
  %v1819 = vmax.f32 %v1240, 0.0
  %v1820 = vmax.f32 %v1242, 0.0
  %v1821 = vmax.f32 %v1245, 0.0
  %v1822 = vmax.f32 %v1247, 0.0
  %v1823 = vmax.f32 %v1250, 0.0
  %v1824 = vmax.f32 %v1252, 0.0
  %v1825 = vmax.f32 %v1255, 0.0
  %v1826 = vmax.f32 %v1257, 0.0
  %v1827 = vmax.f32 %v1260, 0.0
  %v1828 = vmax.f32 %v1262, 0.0
  %v1829 = vmax.f32 %v1265, 0.0
  %v1830 = vmax.f32 %v1267, 0.0
  %v1831 = vmax.f32 %v1270, 0.0
  %v1832 = vmax.f32 %v1272, 0.0
  %v1833 = vmax.f32 %v1275, 0.0
  %v1834 = vmax.f32 %v1277, 0.0
  %v1835 = vmax.f32 %v1280, 0.0
  %v1836 = vmax.f32 %v1282, 0.0
  %v1837 = vmax.f32 %v1285, 0.0
  %v1838 = vmax.f32 %v1287, 0.0
  %v1839 = vmax.f32 %v1290, 0.0
  %v1840 = vmax.f32 %v1292, 0.0
  %v1841 = vmax.f32 %v1295, 0.0
  %v1842 = vmax.f32 %v1297, 0.0
  %v1843 = vmax.f32 %v1300, 0.0
  %v1844 = vmax.f32 %v1302, 0.0
  %v1845 = vmax.f32 %v1305, 0.0
  %v1846 = vmax.f32 %v1307, 0.0
  %v1847 = vmax.f32 %v1310, 0.0
  %v1848 = vmax.f32 %v1312, 0.0
  %v1849 = vmax.f32 %v1315, 0.0
  %v1850 = vmax.f32 %v1317, 0.0
  %v1851 = vmax.f32 %v1320, 0.0
  %v1852 = vmax.f32 %v1322, 0.0
  %v1853 = vmax.f32 %v1325, 0.0
  %v1854 = vmax.f32 %v1327, 0.0
  %v1855 = vmax.f32 %v1330, 0.0
  %v1856 = vmax.f32 %v1332, 0.0
  %v1857 = vmax.f32 %v1335, 0.0
  %v1858 = vmax.f32 %v1337, 0.0
  %v1859 = vmax.f32 %v1340, 0.0
  %v1860 = vmax.f32 %v1342, 0.0
  %v1861 = vmax.f32 %v1345, 0.0
  %v1862 = vmax.f32 %v1347, 0.0
  %v1863 = vmax.f32 %v1350, 0.0
  %v1864 = vmax.f32 %v1352, 0.0
  %v1865 = vmax.f32 %v1355, 0.0
  %v1866 = vmax.f32 %v1357, 0.0
  %v1867 = vmax.f32 %v1360, 0.0
  %v1868 = vmax.f32 %v1362, 0.0
  %v1869 = vmax.f32 %v1365, 0.0
  %v1870 = vmax.f32 %v1367, 0.0
  %v1871 = vmax.f32 %v1370, 0.0
  %v1872 = vmax.f32 %v1372, 0.0
  %v1873 = vmax.f32 %v1375, 0.0
  %v1874 = vmax.f32 %v1377, 0.0
  %v1875 = vmax.f32 %v1380, 0.0
  %v1876 = vmax.f32 %v1382, 0.0
  %v1877 = vmax.f32 %v1385, 0.0
  %v1878 = vmax.f32 %v1387, 0.0
  %v1879 = vmax.f32 %v1390, 0.0
  %v1880 = vmax.f32 %v1392, 0.0
  %v1881 = vmax.f32 %v1395, 0.0
  %v1882 = vmax.f32 %v1397, 0.0
  %v1883 = vmax.f32 %v1400, 0.0
  %v1884 = vmax.f32 %v1402, 0.0
  %v1885 = vmax.f32 %v1405, 0.0
  %v1886 = vmax.f32 %v1407, 0.0
  %v1887 = vmax.f32 %v1410, 0.0
  %v1888 = vmax.f32 %v1412, 0.0
  %v1889 = vmax.f32 %v1415, 0.0
  %v1890 = vmax.f32 %v1417, 0.0
  %v1891 = vmax.f32 %v1420, 0.0
  %v1892 = vmax.f32 %v1422, 0.0
  %v1893 = vmax.f32 %v1425, 0.0
  %v1894 = vmax.f32 %v1427, 0.0
  %v1895 = vmax.f32 %v1430, 0.0
  %v1896 = vmax.f32 %v1432, 0.0
  %v1897 = vmax.f32 %v1435, 0.0
  %v1898 = vmax.f32 %v1437, 0.0
  %v1899 = vmax.f32 %v1440, 0.0
  %v1900 = vmax.f32 %v1442, 0.0
  %v1901 = vmax.f32 %v1445, 0.0
  %v1902 = vmax.f32 %v1447, 0.0
  %v1903 = vmax.f32 %v1450, 0.0
  %v1904 = vmax.f32 %v1452, 0.0
  %v1905 = vmax.f32 %v1455, 0.0
  %v1906 = vmax.f32 %v1457, 0.0
  %v1907 = vmax.f32 %v1460, 0.0
  %v1908 = vmax.f32 %v1462, 0.0
  %v1909 = vmax.f32 %v1465, 0.0
  %v1910 = vmax.f32 %v1467, 0.0
  %v1911 = vmax.f32 %v1470, 0.0
  %v1912 = vmax.f32 %v1472, 0.0
  %v1913 = vmax.f32 %v1475, 0.0
  %v1914 = vmax.f32 %v1477, 0.0
  %v1915 = vmax.f32 %v1480, 0.0
  %v1916 = vmax.f32 %v1482, 0.0
  %v1917 = vmax.f32 %v1485, 0.0
  %v1918 = vmax.f32 %v1487, 0.0
  %v1919 = vmax.f32 %v1490, 0.0
  %v1920 = vmax.f32 %v1492, 0.0
  %v1921 = vmax.f32 %v1495, 0.0
  %v1922 = vmax.f32 %v1497, 0.0
  %v1923 = vmax.f32 %v1500, 0.0
  %v1924 = vmax.f32 %v1502, 0.0
  %v1925 = vmax.f32 %v1505, 0.0
  %v1926 = vmax.f32 %v1507, 0.0
  %v1927 = vmax.f32 %v1510, 0.0
  %v1928 = vmax.f32 %v1512, 0.0
  %v1929 = vmax.f32 %v1515, 0.0
  %v1930 = vmax.f32 %v1517, 0.0
  %v1931 = vmax.f32 %v1520, 0.0
  %v1932 = vmax.f32 %v1522, 0.0
  %v1933 = vmax.f32 %v1525, 0.0
  %v1934 = vmax.f32 %v1527, 0.0
  %v1935 = vmax.f32 %v1530, 0.0
  %v1936 = vmax.f32 %v1532, 0.0
  %v1937 = vmax.f32 %v1535, 0.0
  %v1938 = vmax.f32 %v1537, 0.0
  %v1939 = vmax.f32 %v1540, 0.0
  %v1940 = vmax.f32 %v1542, 0.0
  %v1941 = vmax.f32 %v1545, 0.0
  %v1942 = vmax.f32 %v1547, 0.0
  %v1943 = vmax.f32 %v1550, 0.0
  %v1944 = vmax.f32 %v1552, 0.0
  %v1945 = vmax.f32 %v1555, 0.0
  %v1946 = vmax.f32 %v1557, 0.0
  %v1947 = vmax.f32 %v1560, 0.0
  %v1948 = vmax.f32 %v1562, 0.0
  %v1949 = vmax.f32 %v1565, 0.0
  %v1950 = vmax.f32 %v1567, 0.0
  %v1951 = vmax.f32 %v1570, 0.0
  %v1952 = vmax.f32 %v1572, 0.0
  %v1953 = vmax.f32 %v1575, 0.0
  %v1954 = vmax.f32 %v1577, 0.0
  %v1955 = vmax.f32 %v1580, 0.0
  %v1956 = vmax.f32 %v1582, 0.0
  %v1957 = vmax.f32 %v1585, 0.0
  %v1958 = vmax.f32 %v1587, 0.0
  %v1959 = vmax.f32 %v1590, 0.0
  %v1960 = vmax.f32 %v1592, 0.0
  %v1961 = vmax.f32 %v1595, 0.0
  %v1962 = vmax.f32 %v1597, 0.0
  %v1963 = vmax.f32 %v1600, 0.0
  %v1964 = vmax.f32 %v1602, 0.0
  %v1965 = vmax.f32 %v1605, 0.0
  %v1966 = vmax.f32 %v1607, 0.0
  %v1967 = vmax.f32 %v1610, 0.0
  %v1968 = vmax.f32 %v1612, 0.0
  %v1969 = vmax.f32 %v1615, 0.0
  %v1970 = vmax.f32 %v1617, 0.0
  %v1971 = vmax.f32 %v1620, 0.0
  %v1972 = vmax.f32 %v1622, 0.0
  %v1973 = vmax.f32 %v1625, 0.0
  %v1974 = vmax.f32 %v1627, 0.0
  %v1975 = vmax.f32 %v1630, 0.0
  %v1976 = vmax.f32 %v1632, 0.0
  %v1977 = vmax.f32 %v1635, 0.0
  %v1978 = vmax.f32 %v1637, 0.0
  %v1979 = vmax.f32 %v1640, 0.0
  %v1980 = vmax.f32 %v1642, 0.0
  %v1981 = vmax.f32 %v1645, 0.0
  %v1982 = vmax.f32 %v1647, 0.0
  %v1983 = vmax.f32 %v1650, 0.0
  %v1984 = vmax.f32 %v1652, 0.0
  %v1985 = vmax.f32 %v1655, 0.0
  %v1986 = vmax.f32 %v1657, 0.0
  %v1987 = vmax.f32 %v1660, 0.0
  %v1988 = vmax.f32 %v1662, 0.0
  %v1989 = vmax.f32 %v1665, 0.0
  %v1990 = vmax.f32 %v1667, 0.0
  %v1991 = vmax.f32 %v1670, 0.0
  %v1992 = vmax.f32 %v1672, 0.0
  %v1993 = vmax.f32 %v1675, 0.0
  %v1994 = vmax.f32 %v1677, 0.0
  %v1995 = vmax.f32 %v1680, 0.0
  %v1996 = vmax.f32 %v1682, 0.0
  %v1997 = vmax.f32 %v1685, 0.0
  %v1998 = vmax.f32 %v1687, 0.0
  %v1999 = vmax.f32 %v1690, 0.0
  %v2000 = vmax.f32 %v1692, 0.0
  %v2001 = vmax.f32 %v1695, 0.0
  %v2002 = vmax.f32 %v1697, 0.0
  %v2003 = vmax.f32 %v1700, 0.0
  %v2004 = vmax.f32 %v1702, 0.0
  %v2005 = vmax.f32 %v1705, 0.0
  %v2006 = vmax.f32 %v1707, 0.0
  %v2007 = vmax.f32 %v1710, 0.0
  %v2008 = vmax.f32 %v1712, 0.0
  %v2009 = vmax.f32 %v1715, 0.0
  %v2010 = vmax.f32 %v1717, 0.0
  %v2011 = vmax.f32 %v1720, 0.0
  %v2012 = vmax.f32 %v1722, 0.0
  %v2013 = vmax.f32 %v1725, 0.0
  %v2014 = vmax.f32 %v1727, 0.0
  %v2015 = vmax.f32 %v1730, 0.0
  %v2016 = vmax.f32 %v1732, 0.0
  %v2017 = vmax.f32 %v1735, 0.0
  %v2018 = vmax.f32 %v1737, 0.0
  %v2019 = vmax.f32 %v1740, 0.0
  %v2020 = vmax.f32 %v1742, 0.0
  %v2021 = vmax.f32 %v1745, 0.0
  %v2022 = vmax.f32 %v1747, 0.0
  %v2023 = vmax.f32 %v1750, 0.0
  %v2024 = vmax.f32 %v1752, 0.0
  %v2025 = vmax.f32 %v1755, 0.0
  %v2026 = vmax.f32 %v1757, 0.0
  %v2027 = vmax.f32 %v1760, 0.0
  %v2028 = vmax.f32 %v1762, 0.0
  %v2029 = vmax.f32 %v1765, 0.0
  %v2030 = vmax.f32 %v1767, 0.0
  %v2031 = vmax.f32 %v1770, 0.0
  %v2032 = vmax.f32 %v1772, 0.0
  %v2033 = vmax.f32 %v1775, 0.0
  %v2034 = vmax.f32 %v1777, 0.0
  %v2035 = vmax.f32 %v1779, %v1843
  %v2036 = vmax.f32 %v1780, %v1844
  %v2037 = vmax.f32 %v1781, %v1845
  %v2038 = vmax.f32 %v1782, %v1846
  %v2039 = vmax.f32 %v1783, %v1847
  %v2040 = vmax.f32 %v1784, %v1848
  %v2041 = vmax.f32 %v1785, %v1849
  %v2042 = vmax.f32 %v1786, %v1850
  %v2043 = vmax.f32 %v1787, %v1851
  %v2044 = vmax.f32 %v1788, %v1852
  %v2045 = vmax.f32 %v1789, %v1853
  %v2046 = vmax.f32 %v1790, %v1854
  %v2047 = vmax.f32 %v1791, %v1855
  %v2048 = vmax.f32 %v1792, %v1856
  %v2049 = vmax.f32 %v1793, %v1857
  %v2050 = vmax.f32 %v1794, %v1858
  %v2051 = vmax.f32 %v1795, %v1859
  %v2052 = vmax.f32 %v1796, %v1860
  %v2053 = vmax.f32 %v1797, %v1861
  %v2054 = vmax.f32 %v1798, %v1862
  %v2055 = vmax.f32 %v1799, %v1863
  %v2056 = vmax.f32 %v1800, %v1864
  %v2057 = vmax.f32 %v1801, %v1865
  %v2058 = vmax.f32 %v1802, %v1866
  %v2059 = vmax.f32 %v1803, %v1867
  %v2060 = vmax.f32 %v1804, %v1868
  %v2061 = vmax.f32 %v1805, %v1869
  %v2062 = vmax.f32 %v1806, %v1870
  %v2063 = vmax.f32 %v1807, %v1871
  %v2064 = vmax.f32 %v1808, %v1872
  %v2065 = vmax.f32 %v1809, %v1873
  %v2066 = vmax.f32 %v1810, %v1874
  %v2067 = vmax.f32 %v1811, %v1875
  %v2068 = vmax.f32 %v1812, %v1876
  %v2069 = vmax.f32 %v1813, %v1877
  %v2070 = vmax.f32 %v1814, %v1878
  %v2071 = vmax.f32 %v1815, %v1879
  %v2072 = vmax.f32 %v1816, %v1880
  %v2073 = vmax.f32 %v1817, %v1881
  %v2074 = vmax.f32 %v1818, %v1882
  %v2075 = vmax.f32 %v1819, %v1883
  %v2076 = vmax.f32 %v1820, %v1884
  %v2077 = vmax.f32 %v1821, %v1885
  %v2078 = vmax.f32 %v1822, %v1886
  %v2079 = vmax.f32 %v1823, %v1887
  %v2080 = vmax.f32 %v1824, %v1888
  %v2081 = vmax.f32 %v1825, %v1889
  %v2082 = vmax.f32 %v1826, %v1890
  %v2083 = vmax.f32 %v1827, %v1891
  %v2084 = vmax.f32 %v1828, %v1892
  %v2085 = vmax.f32 %v1829, %v1893
  %v2086 = vmax.f32 %v1830, %v1894
  %v2087 = vmax.f32 %v1831, %v1895
  %v2088 = vmax.f32 %v1832, %v1896
  %v2089 = vmax.f32 %v1833, %v1897
  %v2090 = vmax.f32 %v1834, %v1898
  %v2091 = vmax.f32 %v1835, %v1899
  %v2092 = vmax.f32 %v1836, %v1900
  %v2093 = vmax.f32 %v1837, %v1901
  %v2094 = vmax.f32 %v1838, %v1902
  %v2095 = vmax.f32 %v1839, %v1903
  %v2096 = vmax.f32 %v1840, %v1904
  %v2097 = vmax.f32 %v1841, %v1905
  %v2098 = vmax.f32 %v1842, %v1906
  %v2099 = vmax.f32 %v1907, %v1971
  %v2100 = vmax.f32 %v1908, %v1972
  %v2101 = vmax.f32 %v1909, %v1973
  %v2102 = vmax.f32 %v1910, %v1974
  %v2103 = vmax.f32 %v1911, %v1975
  %v2104 = vmax.f32 %v1912, %v1976
  %v2105 = vmax.f32 %v1913, %v1977
  %v2106 = vmax.f32 %v1914, %v1978
  %v2107 = vmax.f32 %v1915, %v1979
  %v2108 = vmax.f32 %v1916, %v1980
  %v2109 = vmax.f32 %v1917, %v1981
  %v2110 = vmax.f32 %v1918, %v1982
  %v2111 = vmax.f32 %v1919, %v1983
  %v2112 = vmax.f32 %v1920, %v1984
  %v2113 = vmax.f32 %v1921, %v1985
  %v2114 = vmax.f32 %v1922, %v1986
  %v2115 = vmax.f32 %v1923, %v1987
  %v2116 = vmax.f32 %v1924, %v1988
  %v2117 = vmax.f32 %v1925, %v1989
  %v2118 = vmax.f32 %v1926, %v1990
  %v2119 = vmax.f32 %v1927, %v1991
  %v2120 = vmax.f32 %v1928, %v1992
  %v2121 = vmax.f32 %v1929, %v1993
  %v2122 = vmax.f32 %v1930, %v1994
  %v2123 = vmax.f32 %v1931, %v1995
  %v2124 = vmax.f32 %v1932, %v1996
  %v2125 = vmax.f32 %v1933, %v1997
  %v2126 = vmax.f32 %v1934, %v1998
  %v2127 = vmax.f32 %v1935, %v1999
  %v2128 = vmax.f32 %v1936, %v2000
  %v2129 = vmax.f32 %v1937, %v2001
  %v2130 = vmax.f32 %v1938, %v2002
  %v2131 = vmax.f32 %v1939, %v2003
  %v2132 = vmax.f32 %v1940, %v2004
  %v2133 = vmax.f32 %v1941, %v2005
  %v2134 = vmax.f32 %v1942, %v2006
  %v2135 = vmax.f32 %v1943, %v2007
  %v2136 = vmax.f32 %v1944, %v2008
  %v2137 = vmax.f32 %v1945, %v2009
  %v2138 = vmax.f32 %v1946, %v2010
  %v2139 = vmax.f32 %v1947, %v2011
  %v2140 = vmax.f32 %v1948, %v2012
  %v2141 = vmax.f32 %v1949, %v2013
  %v2142 = vmax.f32 %v1950, %v2014
  %v2143 = vmax.f32 %v1951, %v2015
  %v2144 = vmax.f32 %v1952, %v2016
  %v2145 = vmax.f32 %v1953, %v2017
  %v2146 = vmax.f32 %v1954, %v2018
  %v2147 = vmax.f32 %v1955, %v2019
  %v2148 = vmax.f32 %v1956, %v2020
  %v2149 = vmax.f32 %v1957, %v2021
  %v2150 = vmax.f32 %v1958, %v2022
  %v2151 = vmax.f32 %v1959, %v2023
  %v2152 = vmax.f32 %v1960, %v2024
  %v2153 = vmax.f32 %v1961, %v2025
  %v2154 = vmax.f32 %v1962, %v2026
  %v2155 = vmax.f32 %v1963, %v2027
  %v2156 = vmax.f32 %v1964, %v2028
  %v2157 = vmax.f32 %v1965, %v2029
  %v2158 = vmax.f32 %v1966, %v2030
  %v2159 = vmax.f32 %v1967, %v2031
  %v2160 = vmax.f32 %v1968, %v2032
  %v2161 = vmax.f32 %v1969, %v2033
  %v2162 = vmax.f32 %v1970, %v2034
  %v2163 = vmax.f32 %v2035, %v2099
  %v2164 = vmax.f32 %v2036, %v2100
  %v2165 = vmax.f32 %v2037, %v2101
  %v2166 = vmax.f32 %v2038, %v2102
  %v2167 = vmax.f32 %v2039, %v2103
  %v2168 = vmax.f32 %v2040, %v2104
  %v2169 = vmax.f32 %v2041, %v2105
  %v2170 = vmax.f32 %v2042, %v2106
  %v2171 = vmax.f32 %v2043, %v2107
  %v2172 = vmax.f32 %v2044, %v2108
  %v2173 = vmax.f32 %v2045, %v2109
  %v2174 = vmax.f32 %v2046, %v2110
  %v2175 = vmax.f32 %v2047, %v2111
  %v2176 = vmax.f32 %v2048, %v2112
  %v2177 = vmax.f32 %v2049, %v2113
  %v2178 = vmax.f32 %v2050, %v2114
  %v2179 = vmax.f32 %v2051, %v2115
  %v2180 = vmax.f32 %v2052, %v2116
  %v2181 = vmax.f32 %v2053, %v2117
  %v2182 = vmax.f32 %v2054, %v2118
  %v2183 = vmax.f32 %v2055, %v2119
  %v2184 = vmax.f32 %v2056, %v2120
  %v2185 = vmax.f32 %v2057, %v2121
  %v2186 = vmax.f32 %v2058, %v2122
  %v2187 = vmax.f32 %v2059, %v2123
  %v2188 = vmax.f32 %v2060, %v2124
  %v2189 = vmax.f32 %v2061, %v2125
  %v2190 = vmax.f32 %v2062, %v2126
  %v2191 = vmax.f32 %v2063, %v2127
  %v2192 = vmax.f32 %v2064, %v2128
  %v2193 = vmax.f32 %v2065, %v2129
  %v2194 = vmax.f32 %v2066, %v2130
  %v2195 = vmax.f32 %v2067, %v2131
  %v2196 = vmax.f32 %v2068, %v2132
  %v2197 = vmax.f32 %v2069, %v2133
  %v2198 = vmax.f32 %v2070, %v2134
  %v2199 = vmax.f32 %v2071, %v2135
  %v2200 = vmax.f32 %v2072, %v2136
  %v2201 = vmax.f32 %v2073, %v2137
  %v2202 = vmax.f32 %v2074, %v2138
  %v2203 = vmax.f32 %v2075, %v2139
  %v2204 = vmax.f32 %v2076, %v2140
  %v2205 = vmax.f32 %v2077, %v2141
  %v2206 = vmax.f32 %v2078, %v2142
  %v2207 = vmax.f32 %v2079, %v2143
  %v2208 = vmax.f32 %v2080, %v2144
  %v2209 = vmax.f32 %v2081, %v2145
  %v2210 = vmax.f32 %v2082, %v2146
  %v2211 = vmax.f32 %v2083, %v2147
  %v2212 = vmax.f32 %v2084, %v2148
  %v2213 = vmax.f32 %v2085, %v2149
  %v2214 = vmax.f32 %v2086, %v2150
  %v2215 = vmax.f32 %v2087, %v2151
  %v2216 = vmax.f32 %v2088, %v2152
  %v2217 = vmax.f32 %v2089, %v2153
  %v2218 = vmax.f32 %v2090, %v2154
  %v2219 = vmax.f32 %v2091, %v2155
  %v2220 = vmax.f32 %v2092, %v2156
  %v2221 = vmax.f32 %v2093, %v2157
  %v2222 = vmax.f32 %v2094, %v2158
  %v2223 = vmax.f32 %v2095, %v2159
  %v2224 = vmax.f32 %v2096, %v2160
  %v2225 = vmax.f32 %v2097, %v2161
  %v2226 = vmax.f32 %v2098, %v2162
  %v2227 = vpack.c.bf16 %v2164, %v2163
  %v2228 = vpack.c.bf16 %v2166, %v2165
  %v2229 = vpack.c.bf16 %v2168, %v2167
  %v2230 = vpack.c.bf16 %v2170, %v2169
  %v2231 = vpack.c.bf16 %v2172, %v2171
  %v2232 = vpack.c.bf16 %v2174, %v2173
  %v2233 = vpack.c.bf16 %v2176, %v2175
  %v2234 = vpack.c.bf16 %v2178, %v2177
  %v2235 = vpack.c.bf16 %v2180, %v2179
  %v2236 = vpack.c.bf16 %v2182, %v2181
  %v2237 = vpack.c.bf16 %v2184, %v2183
  %v2238 = vpack.c.bf16 %v2186, %v2185
  %v2239 = vpack.c.bf16 %v2188, %v2187
  %v2240 = vpack.c.bf16 %v2190, %v2189
  %v2241 = vpack.c.bf16 %v2192, %v2191
  %v2242 = vpack.c.bf16 %v2194, %v2193
  %v2243 = vpack.c.bf16 %v2196, %v2195
  %v2244 = vpack.c.bf16 %v2198, %v2197
  %v2245 = vpack.c.bf16 %v2200, %v2199
  %v2246 = vpack.c.bf16 %v2202, %v2201
  %v2247 = vpack.c.bf16 %v2204, %v2203
  %v2248 = vpack.c.bf16 %v2206, %v2205
  %v2249 = vpack.c.bf16 %v2208, %v2207
  %v2250 = vpack.c.bf16 %v2210, %v2209
  %v2251 = vpack.c.bf16 %v2212, %v2211
  %v2252 = vpack.c.bf16 %v2214, %v2213
  %v2253 = vpack.c.bf16 %v2216, %v2215
  %v2254 = vpack.c.bf16 %v2218, %v2217
  %v2255 = vpack.c.bf16 %v2220, %v2219
  %v2256 = vpack.c.bf16 %v2222, %v2221
  %v2257 = vpack.c.bf16 %v2224, %v2223
  %v2258 = vpack.c.bf16 %v2226, %v2225
  %v2259 = vld [vmem:[%s3] sm:$0xf]
  %v2260 = vld [vmem:[%s3 + $0x4] sm:$0xf]
  %v2261 = vld [vmem:[%s3 + $0x8] sm:$0xf]
  %v2262 = vld [vmem:[%s3 + $0xc] sm:$0xf]
  %v2263 = vld [vmem:[%s3 + $0x10] sm:$0xf]
  %v2264 = vld [vmem:[%s3 + $0x14] sm:$0xf]
  %v2265 = vld [vmem:[%s3 + $0x18] sm:$0xf]
  %v2266 = vld [vmem:[%s3 + $0x1c] sm:$0xf]
  %v2267 = vld [vmem:[%s3 + $0x20] sm:$0xf]
  %v2268 = vld [vmem:[%s3 + $0x24] sm:$0xf]
  %v2269 = vld [vmem:[%s3 + $0x28] sm:$0xf]
  %v2270 = vld [vmem:[%s3 + $0x2c] sm:$0xf]
  %v2271 = vld [vmem:[%s3 + $0x30] sm:$0xf]
  %v2272 = vld [vmem:[%s3 + $0x34] sm:$0xf]
  %v2273 = vld [vmem:[%s3 + $0x38] sm:$0xf]
  %v2274 = vld [vmem:[%s3 + $0x3c] sm:$0xf]
  %v2275 = vld [vmem:[%s4] sm:$0x1]
  %v2277 = vperm.slane %v2275, 0
  %v2295 = vunpack.c.l.b16 %v2259
  %v2296 = vunpack.c.l.b16 %v2260
  %v2297 = vunpack.c.l.b16 %v2261
  %v2298 = vunpack.c.l.b16 %v2262
  %v2299 = vunpack.c.l.b16 %v2263
  %v2300 = vunpack.c.l.b16 %v2264
  %v2301 = vunpack.c.l.b16 %v2265
  %v2302 = vunpack.c.l.b16 %v2266
  %v2303 = vunpack.c.l.b16 %v2267
  %v2304 = vunpack.c.l.b16 %v2268
  %v2305 = vunpack.c.l.b16 %v2269
  %v2306 = vunpack.c.l.b16 %v2270
  %v2307 = vunpack.c.l.b16 %v2271
  %v2308 = vunpack.c.l.b16 %v2272
  %v2309 = vunpack.c.l.b16 %v2273
  %v2310 = vunpack.c.l.b16 %v2274
  %v2311 = vpack.c.b16 %v2296, %v2295
  %v2312 = vpack.c.b16 %v2298, %v2297
  %v2313 = vpack.c.b16 %v2300, %v2299
  %v2314 = vpack.c.b16 %v2302, %v2301
  %v2315 = vpack.c.b16 %v2304, %v2303
  %v2316 = vpack.c.b16 %v2306, %v2305
  %v2317 = vpack.c.b16 %v2308, %v2307
  %v2318 = vpack.c.b16 %v2310, %v2309
  %2327 = vmatpush.bf16.msra.mxu0 %v2318
  %2328 = vmatpush.bf16.msra.mxu0 %v2317
  %2329 = vmatpush.bf16.msra.mxu0 %v2316
  %2330 = vmatpush.bf16.msra.mxu0 %v2315
  %2331 = vmatpush.bf16.msra.mxu0 %v2314
  %2332 = vmatpush.bf16.msra.mxu0 %v2313
  %2333 = vmatpush.bf16.msra.mxu0 %v2312
  %2334 = vmatpush.bf16.msra.mxu0 %v2311
  %2335 = vmatmul.bf16.gmra.mxu0 %v2227
  %v2336 = vpop.f32.mrf.mxu0
  %v2337 = vadd.f32 %v2277, %v2336
  %v2338 = vpop.f32.mrf.mxu0
  %v2339 = vadd.f32 %v2277, %v2338
  %2340 = vmatmul.bf16.gmra.mxu0 %v2228
  %v2341 = vpop.f32.mrf.mxu0
  %v2342 = vadd.f32 %v2277, %v2341
  %v2343 = vpop.f32.mrf.mxu0
  %v2344 = vadd.f32 %v2277, %v2343
  %2345 = vmatmul.bf16.gmra.mxu0 %v2229
  %v2346 = vpop.f32.mrf.mxu0
  %v2347 = vadd.f32 %v2277, %v2346
  %v2348 = vpop.f32.mrf.mxu0
  %v2349 = vadd.f32 %v2277, %v2348
  %2350 = vmatmul.bf16.gmra.mxu0 %v2230
  %v2351 = vpop.f32.mrf.mxu0
  %v2352 = vadd.f32 %v2277, %v2351
  %v2353 = vpop.f32.mrf.mxu0
  %v2354 = vadd.f32 %v2277, %v2353
  %2355 = vmatmul.bf16.gmra.mxu0 %v2231
  %v2356 = vpop.f32.mrf.mxu0
  %v2357 = vadd.f32 %v2277, %v2356
  %v2358 = vpop.f32.mrf.mxu0
  %v2359 = vadd.f32 %v2277, %v2358
  %2360 = vmatmul.bf16.gmra.mxu0 %v2232
  %v2361 = vpop.f32.mrf.mxu0
  %v2362 = vadd.f32 %v2277, %v2361
  %v2363 = vpop.f32.mrf.mxu0
  %v2364 = vadd.f32 %v2277, %v2363
  %2365 = vmatmul.bf16.gmra.mxu0 %v2233
  %v2366 = vpop.f32.mrf.mxu0
  %v2367 = vadd.f32 %v2277, %v2366
  %v2368 = vpop.f32.mrf.mxu0
  %v2369 = vadd.f32 %v2277, %v2368
  %2370 = vmatmul.bf16.gmra.mxu0 %v2234
  %v2371 = vpop.f32.mrf.mxu0
  %v2372 = vadd.f32 %v2277, %v2371
  %v2373 = vpop.f32.mrf.mxu0
  %v2374 = vadd.f32 %v2277, %v2373
  %2375 = vmatmul.bf16.gmra.mxu0 %v2235
  %v2376 = vpop.f32.mrf.mxu0
  %v2377 = vadd.f32 %v2277, %v2376
  %v2378 = vpop.f32.mrf.mxu0
  %v2379 = vadd.f32 %v2277, %v2378
  %2380 = vmatmul.bf16.gmra.mxu0 %v2236
  %v2381 = vpop.f32.mrf.mxu0
  %v2382 = vadd.f32 %v2277, %v2381
  %v2383 = vpop.f32.mrf.mxu0
  %v2384 = vadd.f32 %v2277, %v2383
  %2385 = vmatmul.bf16.gmra.mxu0 %v2237
  %v2386 = vpop.f32.mrf.mxu0
  %v2387 = vadd.f32 %v2277, %v2386
  %v2388 = vpop.f32.mrf.mxu0
  %v2389 = vadd.f32 %v2277, %v2388
  %2390 = vmatmul.bf16.gmra.mxu0 %v2238
  %v2391 = vpop.f32.mrf.mxu0
  %v2392 = vadd.f32 %v2277, %v2391
  %v2393 = vpop.f32.mrf.mxu0
  %v2394 = vadd.f32 %v2277, %v2393
  %2395 = vmatmul.bf16.gmra.mxu0 %v2239
  %v2396 = vpop.f32.mrf.mxu0
  %v2397 = vadd.f32 %v2277, %v2396
  %v2398 = vpop.f32.mrf.mxu0
  %v2399 = vadd.f32 %v2277, %v2398
  %2400 = vmatmul.bf16.gmra.mxu0 %v2240
  %v2401 = vpop.f32.mrf.mxu0
  %v2402 = vadd.f32 %v2277, %v2401
  %v2403 = vpop.f32.mrf.mxu0
  %v2404 = vadd.f32 %v2277, %v2403
  %2405 = vmatmul.bf16.gmra.mxu0 %v2241
  %v2406 = vpop.f32.mrf.mxu0
  %v2407 = vadd.f32 %v2277, %v2406
  %v2408 = vpop.f32.mrf.mxu0
  %v2409 = vadd.f32 %v2277, %v2408
  %2410 = vmatmul.bf16.gmra.mxu0 %v2242
  %v2411 = vpop.f32.mrf.mxu0
  %v2412 = vadd.f32 %v2277, %v2411
  %v2413 = vpop.f32.mrf.mxu0
  %v2414 = vadd.f32 %v2277, %v2413
  %2415 = vmatmul.bf16.gmra.mxu0 %v2243
  %v2416 = vpop.f32.mrf.mxu0
  %v2417 = vadd.f32 %v2277, %v2416
  %v2418 = vpop.f32.mrf.mxu0
  %v2419 = vadd.f32 %v2277, %v2418
  %2420 = vmatmul.bf16.gmra.mxu0 %v2244
  %v2421 = vpop.f32.mrf.mxu0
  %v2422 = vadd.f32 %v2277, %v2421
  %v2423 = vpop.f32.mrf.mxu0
  %v2424 = vadd.f32 %v2277, %v2423
  %2425 = vmatmul.bf16.gmra.mxu0 %v2245
  %v2426 = vpop.f32.mrf.mxu0
  %v2427 = vadd.f32 %v2277, %v2426
  %v2428 = vpop.f32.mrf.mxu0
  %v2429 = vadd.f32 %v2277, %v2428
  %2430 = vmatmul.bf16.gmra.mxu0 %v2246
  %v2431 = vpop.f32.mrf.mxu0
  %v2432 = vadd.f32 %v2277, %v2431
  %v2433 = vpop.f32.mrf.mxu0
  %v2434 = vadd.f32 %v2277, %v2433
  %2435 = vmatmul.bf16.gmra.mxu0 %v2247
  %v2436 = vpop.f32.mrf.mxu0
  %v2437 = vadd.f32 %v2277, %v2436
  %v2438 = vpop.f32.mrf.mxu0
  %v2439 = vadd.f32 %v2277, %v2438
  %2440 = vmatmul.bf16.gmra.mxu0 %v2248
  %v2441 = vpop.f32.mrf.mxu0
  %v2442 = vadd.f32 %v2277, %v2441
  %v2443 = vpop.f32.mrf.mxu0
  %v2444 = vadd.f32 %v2277, %v2443
  %2445 = vmatmul.bf16.gmra.mxu0 %v2249
  %v2446 = vpop.f32.mrf.mxu0
  %v2447 = vadd.f32 %v2277, %v2446
  %v2448 = vpop.f32.mrf.mxu0
  %v2449 = vadd.f32 %v2277, %v2448
  %2450 = vmatmul.bf16.gmra.mxu0 %v2250
  %v2451 = vpop.f32.mrf.mxu0
  %v2452 = vadd.f32 %v2277, %v2451
  %v2453 = vpop.f32.mrf.mxu0
  %v2454 = vadd.f32 %v2277, %v2453
  %2455 = vmatmul.bf16.gmra.mxu0 %v2251
  %v2456 = vpop.f32.mrf.mxu0
  %v2457 = vadd.f32 %v2277, %v2456
  %v2458 = vpop.f32.mrf.mxu0
  %v2459 = vadd.f32 %v2277, %v2458
  %2460 = vmatmul.bf16.gmra.mxu0 %v2252
  %v2461 = vpop.f32.mrf.mxu0
  %v2462 = vadd.f32 %v2277, %v2461
  %v2463 = vpop.f32.mrf.mxu0
  %v2464 = vadd.f32 %v2277, %v2463
  %2465 = vmatmul.bf16.gmra.mxu0 %v2253
  %v2466 = vpop.f32.mrf.mxu0
  %v2467 = vadd.f32 %v2277, %v2466
  %v2468 = vpop.f32.mrf.mxu0
  %v2469 = vadd.f32 %v2277, %v2468
  %2470 = vmatmul.bf16.gmra.mxu0 %v2254
  %v2471 = vpop.f32.mrf.mxu0
  %v2472 = vadd.f32 %v2277, %v2471
  %v2473 = vpop.f32.mrf.mxu0
  %v2474 = vadd.f32 %v2277, %v2473
  %2475 = vmatmul.bf16.gmra.mxu0 %v2255
  %v2476 = vpop.f32.mrf.mxu0
  %v2477 = vadd.f32 %v2277, %v2476
  %v2478 = vpop.f32.mrf.mxu0
  %v2479 = vadd.f32 %v2277, %v2478
  %2480 = vmatmul.bf16.gmra.mxu0 %v2256
  %v2481 = vpop.f32.mrf.mxu0
  %v2482 = vadd.f32 %v2277, %v2481
  %v2483 = vpop.f32.mrf.mxu0
  %v2484 = vadd.f32 %v2277, %v2483
  %2485 = vmatmul.bf16.gmra.mxu0 %v2257
  %v2486 = vpop.f32.mrf.mxu0
  %v2487 = vadd.f32 %v2277, %v2486
  %v2488 = vpop.f32.mrf.mxu0
  %v2489 = vadd.f32 %v2277, %v2488
  %2490 = vmatmul.bf16.gmra.mxu0 %v2258
  %v2491 = vpop.f32.mrf.mxu0
  %v2492 = vadd.f32 %v2277, %v2491
  %v2493 = vpop.f32.mrf.mxu0
  %v2494 = vadd.f32 %v2277, %v2493
  %2495 = vdwg.mxu0
  %v2496 = vmax.f32 %v2337, 0.0
  %v2497 = vmax.f32 %v2339, 0.0
  %v2498 = vmax.f32 %v2342, 0.0
  %v2499 = vmax.f32 %v2344, 0.0
  %v2500 = vmax.f32 %v2347, 0.0
  %v2501 = vmax.f32 %v2349, 0.0
  %v2502 = vmax.f32 %v2352, 0.0
  %v2503 = vmax.f32 %v2354, 0.0
  %v2504 = vmax.f32 %v2357, 0.0
  %v2505 = vmax.f32 %v2359, 0.0
  %v2506 = vmax.f32 %v2362, 0.0
  %v2507 = vmax.f32 %v2364, 0.0
  %v2508 = vmax.f32 %v2367, 0.0
  %v2509 = vmax.f32 %v2369, 0.0
  %v2510 = vmax.f32 %v2372, 0.0
  %v2511 = vmax.f32 %v2374, 0.0
  %v2512 = vmax.f32 %v2377, 0.0
  %v2513 = vmax.f32 %v2379, 0.0
  %v2514 = vmax.f32 %v2382, 0.0
  %v2515 = vmax.f32 %v2384, 0.0
  %v2516 = vmax.f32 %v2387, 0.0
  %v2517 = vmax.f32 %v2389, 0.0
  %v2518 = vmax.f32 %v2392, 0.0
  %v2519 = vmax.f32 %v2394, 0.0
  %v2520 = vmax.f32 %v2397, 0.0
  %v2521 = vmax.f32 %v2399, 0.0
  %v2522 = vmax.f32 %v2402, 0.0
  %v2523 = vmax.f32 %v2404, 0.0
  %v2524 = vmax.f32 %v2407, 0.0
  %v2525 = vmax.f32 %v2409, 0.0
  %v2526 = vmax.f32 %v2412, 0.0
  %v2527 = vmax.f32 %v2414, 0.0
  %v2528 = vmax.f32 %v2417, 0.0
  %v2529 = vmax.f32 %v2419, 0.0
  %v2530 = vmax.f32 %v2422, 0.0
  %v2531 = vmax.f32 %v2424, 0.0
  %v2532 = vmax.f32 %v2427, 0.0
  %v2533 = vmax.f32 %v2429, 0.0
  %v2534 = vmax.f32 %v2432, 0.0
  %v2535 = vmax.f32 %v2434, 0.0
  %v2536 = vmax.f32 %v2437, 0.0
  %v2537 = vmax.f32 %v2439, 0.0
  %v2538 = vmax.f32 %v2442, 0.0
  %v2539 = vmax.f32 %v2444, 0.0
  %v2540 = vmax.f32 %v2447, 0.0
  %v2541 = vmax.f32 %v2449, 0.0
  %v2542 = vmax.f32 %v2452, 0.0
  %v2543 = vmax.f32 %v2454, 0.0
  %v2544 = vmax.f32 %v2457, 0.0
  %v2545 = vmax.f32 %v2459, 0.0
  %v2546 = vmax.f32 %v2462, 0.0
  %v2547 = vmax.f32 %v2464, 0.0
  %v2548 = vmax.f32 %v2467, 0.0
  %v2549 = vmax.f32 %v2469, 0.0
  %v2550 = vmax.f32 %v2472, 0.0
  %v2551 = vmax.f32 %v2474, 0.0
  %v2552 = vmax.f32 %v2477, 0.0
  %v2553 = vmax.f32 %v2479, 0.0
  %v2554 = vmax.f32 %v2482, 0.0
  %v2555 = vmax.f32 %v2484, 0.0
  %v2556 = vmax.f32 %v2487, 0.0
  %v2557 = vmax.f32 %v2489, 0.0
  %v2558 = vmax.f32 %v2492, 0.0
  %v2559 = vmax.f32 %v2494, 0.0
  %v2560 = vmax.f32 %v2496, %v2512
  %v2561 = vmax.f32 %v2497, %v2513
  %v2562 = vmax.f32 %v2498, %v2514
  %v2563 = vmax.f32 %v2499, %v2515
  %v2564 = vmax.f32 %v2500, %v2516
  %v2565 = vmax.f32 %v2501, %v2517
  %v2566 = vmax.f32 %v2502, %v2518
  %v2567 = vmax.f32 %v2503, %v2519
  %v2568 = vmax.f32 %v2504, %v2520
  %v2569 = vmax.f32 %v2505, %v2521
  %v2570 = vmax.f32 %v2506, %v2522
  %v2571 = vmax.f32 %v2507, %v2523
  %v2572 = vmax.f32 %v2508, %v2524
  %v2573 = vmax.f32 %v2509, %v2525
  %v2574 = vmax.f32 %v2510, %v2526
  %v2575 = vmax.f32 %v2511, %v2527
  %v2576 = vmax.f32 %v2528, %v2544
  %v2577 = vmax.f32 %v2529, %v2545
  %v2578 = vmax.f32 %v2530, %v2546
  %v2579 = vmax.f32 %v2531, %v2547
  %v2580 = vmax.f32 %v2532, %v2548
  %v2581 = vmax.f32 %v2533, %v2549
  %v2582 = vmax.f32 %v2534, %v2550
  %v2583 = vmax.f32 %v2535, %v2551
  %v2584 = vmax.f32 %v2536, %v2552
  %v2585 = vmax.f32 %v2537, %v2553
  %v2586 = vmax.f32 %v2538, %v2554
  %v2587 = vmax.f32 %v2539, %v2555
  %v2588 = vmax.f32 %v2540, %v2556
  %v2589 = vmax.f32 %v2541, %v2557
  %v2590 = vmax.f32 %v2542, %v2558
  %v2591 = vmax.f32 %v2543, %v2559
  %v2592 = vmax.f32 %v2560, %v2576
  %v2593 = vmax.f32 %v2561, %v2577
  %v2594 = vmax.f32 %v2562, %v2578
  %v2595 = vmax.f32 %v2563, %v2579
  %v2596 = vmax.f32 %v2564, %v2580
  %v2597 = vmax.f32 %v2565, %v2581
  %v2598 = vmax.f32 %v2566, %v2582
  %v2599 = vmax.f32 %v2567, %v2583
  %v2600 = vmax.f32 %v2568, %v2584
  %v2601 = vmax.f32 %v2569, %v2585
  %v2602 = vmax.f32 %v2570, %v2586
  %v2603 = vmax.f32 %v2571, %v2587
  %v2604 = vmax.f32 %v2572, %v2588
  %v2605 = vmax.f32 %v2573, %v2589
  %v2606 = vmax.f32 %v2574, %v2590
  %v2607 = vmax.f32 %v2575, %v2591
  %v2608 = vpack.c.bf16 %v2593, %v2592
  %v2609 = vpack.c.bf16 %v2595, %v2594
  %v2610 = vpack.c.bf16 %v2597, %v2596
  %v2611 = vpack.c.bf16 %v2599, %v2598
  %v2612 = vpack.c.bf16 %v2601, %v2600
  %v2613 = vpack.c.bf16 %v2603, %v2602
  %v2614 = vpack.c.bf16 %v2605, %v2604
  %v2615 = vpack.c.bf16 %v2607, %v2606
  %v2616 = vld [vmem:[%s5] sm:$0xff]
  %v2617 = vld [vmem:[%s5 + $0x8] sm:$0xff]
  %v2618 = vld [vmem:[%s5 + $0x10] sm:$0xff]
  %v2619 = vld [vmem:[%s5 + $0x18] sm:$0xff]
  %v2620 = vld [vmem:[%s5 + $0x20] sm:$0xff]
  %v2621 = vld [vmem:[%s5 + $0x28] sm:$0xff]
  %v2622 = vld [vmem:[%s5 + $0x30] sm:$0xff]
  %v2623 = vld [vmem:[%s5 + $0x38] sm:$0xff]
  %v2624 = vld [vmem:[%s5 + $0x40] sm:$0xff]
  %v2625 = vld [vmem:[%s5 + $0x48] sm:$0xff]
  %v2626 = vld [vmem:[%s5 + $0x50] sm:$0xff]
  %v2627 = vld [vmem:[%s5 + $0x58] sm:$0xff]
  %v2628 = vld [vmem:[%s5 + $0x60] sm:$0xff]
  %v2629 = vld [vmem:[%s5 + $0x68] sm:$0xff]
  %v2630 = vld [vmem:[%s5 + $0x70] sm:$0xff]
  %v2631 = vld [vmem:[%s5 + $0x78] sm:$0xff]
  %v2632 = vld [vmem:[%s6] sm:$0x3]
  %v2634 = vperm.slane %v2632, 0
  %v2635 = vperm.slane %v2632, 1
  %v2654 = vunpack.c.l.b16 %v2616
  %v2655 = vunpack.c.h.b16 %v2616
  %v2656 = vunpack.c.l.b16 %v2617
  %v2657 = vunpack.c.h.b16 %v2617
  %v2658 = vunpack.c.l.b16 %v2618
  %v2659 = vunpack.c.h.b16 %v2618
  %v2660 = vunpack.c.l.b16 %v2619
  %v2661 = vunpack.c.h.b16 %v2619
  %v2662 = vunpack.c.l.b16 %v2620
  %v2663 = vunpack.c.h.b16 %v2620
  %v2664 = vunpack.c.l.b16 %v2621
  %v2665 = vunpack.c.h.b16 %v2621
  %v2666 = vunpack.c.l.b16 %v2622
  %v2667 = vunpack.c.h.b16 %v2622
  %v2668 = vunpack.c.l.b16 %v2623
  %v2669 = vunpack.c.h.b16 %v2623
  %v2670 = vunpack.c.l.b16 %v2624
  %v2671 = vunpack.c.h.b16 %v2624
  %v2672 = vunpack.c.l.b16 %v2625
  %v2673 = vunpack.c.h.b16 %v2625
  %v2674 = vunpack.c.l.b16 %v2626
  %v2675 = vunpack.c.h.b16 %v2626
  %v2676 = vunpack.c.l.b16 %v2627
  %v2677 = vunpack.c.h.b16 %v2627
  %v2678 = vunpack.c.l.b16 %v2628
  %v2679 = vunpack.c.h.b16 %v2628
  %v2680 = vunpack.c.l.b16 %v2629
  %v2681 = vunpack.c.h.b16 %v2629
  %v2682 = vunpack.c.l.b16 %v2630
  %v2683 = vunpack.c.h.b16 %v2630
  %v2684 = vunpack.c.l.b16 %v2631
  %v2685 = vunpack.c.h.b16 %v2631
  %v2686 = vpack.c.b16 %v2656, %v2654
  %v2687 = vpack.c.b16 %v2657, %v2655
  %v2688 = vpack.c.b16 %v2660, %v2658
  %v2689 = vpack.c.b16 %v2661, %v2659
  %v2690 = vpack.c.b16 %v2664, %v2662
  %v2691 = vpack.c.b16 %v2665, %v2663
  %v2692 = vpack.c.b16 %v2668, %v2666
  %v2693 = vpack.c.b16 %v2669, %v2667
  %v2694 = vpack.c.b16 %v2672, %v2670
  %v2695 = vpack.c.b16 %v2673, %v2671
  %v2696 = vpack.c.b16 %v2676, %v2674
  %v2697 = vpack.c.b16 %v2677, %v2675
  %v2698 = vpack.c.b16 %v2680, %v2678
  %v2699 = vpack.c.b16 %v2681, %v2679
  %v2700 = vpack.c.b16 %v2684, %v2682
  %v2701 = vpack.c.b16 %v2685, %v2683
  %2718 = vmatpush.bf16.msra.mxu0 %v2700
  %2719 = vmatpush.bf16.msra.mxu0 %v2698
  %2720 = vmatpush.bf16.msra.mxu0 %v2696
  %2721 = vmatpush.bf16.msra.mxu0 %v2694
  %2722 = vmatpush.bf16.msra.mxu0 %v2692
  %2723 = vmatpush.bf16.msra.mxu0 %v2690
  %2724 = vmatpush.bf16.msra.mxu0 %v2688
  %2725 = vmatpush.bf16.msra.mxu0 %v2686
  %2726 = vmatmul.bf16.gmra.mxu0 %v2608
  %v2727 = vpop.f32.mrf.mxu0
  %v2728 = vadd.f32 %v2634, %v2727
  %v2729 = vpop.f32.mrf.mxu0
  %v2730 = vadd.f32 %v2634, %v2729
  %2731 = vmatmul.bf16.gmra.mxu0 %v2609
  %v2732 = vpop.f32.mrf.mxu0
  %v2733 = vadd.f32 %v2634, %v2732
  %v2734 = vpop.f32.mrf.mxu0
  %v2735 = vadd.f32 %v2634, %v2734
  %2736 = vmatmul.bf16.gmra.mxu0 %v2610
  %v2737 = vpop.f32.mrf.mxu0
  %v2738 = vadd.f32 %v2634, %v2737
  %v2739 = vpop.f32.mrf.mxu0
  %v2740 = vadd.f32 %v2634, %v2739
  %2741 = vmatmul.bf16.gmra.mxu0 %v2611
  %v2742 = vpop.f32.mrf.mxu0
  %v2743 = vadd.f32 %v2634, %v2742
  %v2744 = vpop.f32.mrf.mxu0
  %v2745 = vadd.f32 %v2634, %v2744
  %2746 = vmatmul.bf16.gmra.mxu0 %v2612
  %v2747 = vpop.f32.mrf.mxu0
  %v2748 = vadd.f32 %v2634, %v2747
  %v2749 = vpop.f32.mrf.mxu0
  %v2750 = vadd.f32 %v2634, %v2749
  %2751 = vmatmul.bf16.gmra.mxu0 %v2613
  %v2752 = vpop.f32.mrf.mxu0
  %v2753 = vadd.f32 %v2634, %v2752
  %v2754 = vpop.f32.mrf.mxu0
  %v2755 = vadd.f32 %v2634, %v2754
  %2756 = vmatmul.bf16.gmra.mxu0 %v2614
  %v2757 = vpop.f32.mrf.mxu0
  %v2758 = vadd.f32 %v2634, %v2757
  %v2759 = vpop.f32.mrf.mxu0
  %v2760 = vadd.f32 %v2634, %v2759
  %2761 = vmatmul.bf16.gmra.mxu0 %v2615
  %v2762 = vpop.f32.mrf.mxu0
  %v2763 = vadd.f32 %v2634, %v2762
  %v2764 = vpop.f32.mrf.mxu0
  %v2765 = vadd.f32 %v2634, %v2764
  %2766 = vdwg.mxu0
  %2767 = vmatpush.bf16.msra.mxu0 %v2701
  %2768 = vmatpush.bf16.msra.mxu0 %v2699
  %2769 = vmatpush.bf16.msra.mxu0 %v2697
  %2770 = vmatpush.bf16.msra.mxu0 %v2695
  %2771 = vmatpush.bf16.msra.mxu0 %v2693
  %2772 = vmatpush.bf16.msra.mxu0 %v2691
  %2773 = vmatpush.bf16.msra.mxu0 %v2689
  %2774 = vmatpush.bf16.msra.mxu0 %v2687
  %2775 = vmatmul.bf16.gmra.mxu0 %v2608
  %v2776 = vpop.f32.mrf.mxu0
  %v2777 = vadd.f32 %v2635, %v2776
  %v2778 = vpop.f32.mrf.mxu0
  %v2779 = vadd.f32 %v2635, %v2778
  %2780 = vmatmul.bf16.gmra.mxu0 %v2609
  %v2781 = vpop.f32.mrf.mxu0
  %v2782 = vadd.f32 %v2635, %v2781
  %v2783 = vpop.f32.mrf.mxu0
  %v2784 = vadd.f32 %v2635, %v2783
  %2785 = vmatmul.bf16.gmra.mxu0 %v2610
  %v2786 = vpop.f32.mrf.mxu0
  %v2787 = vadd.f32 %v2635, %v2786
  %v2788 = vpop.f32.mrf.mxu0
  %v2789 = vadd.f32 %v2635, %v2788
  %2790 = vmatmul.bf16.gmra.mxu0 %v2611
  %v2791 = vpop.f32.mrf.mxu0
  %v2792 = vadd.f32 %v2635, %v2791
  %v2793 = vpop.f32.mrf.mxu0
  %v2794 = vadd.f32 %v2635, %v2793
  %2795 = vmatmul.bf16.gmra.mxu0 %v2612
  %v2796 = vpop.f32.mrf.mxu0
  %v2797 = vadd.f32 %v2635, %v2796
  %v2798 = vpop.f32.mrf.mxu0
  %v2799 = vadd.f32 %v2635, %v2798
  %2800 = vmatmul.bf16.gmra.mxu0 %v2613
  %v2801 = vpop.f32.mrf.mxu0
  %v2802 = vadd.f32 %v2635, %v2801
  %v2803 = vpop.f32.mrf.mxu0
  %v2804 = vadd.f32 %v2635, %v2803
  %2805 = vmatmul.bf16.gmra.mxu0 %v2614
  %v2806 = vpop.f32.mrf.mxu0
  %v2807 = vadd.f32 %v2635, %v2806
  %v2808 = vpop.f32.mrf.mxu0
  %v2809 = vadd.f32 %v2635, %v2808
  %2810 = vmatmul.bf16.gmra.mxu0 %v2615
  %v2811 = vpop.f32.mrf.mxu0
  %v2812 = vadd.f32 %v2635, %v2811
  %v2813 = vpop.f32.mrf.mxu0
  %v2814 = vadd.f32 %v2635, %v2813
  %2815 = vdwg.mxu0
  %v2816 = vmax.f32 %v2728, 0.0
  %v2817 = vmax.f32 %v2777, 0.0
  %v2818 = vmax.f32 %v2730, 0.0
  %v2819 = vmax.f32 %v2779, 0.0
  %v2820 = vmax.f32 %v2733, 0.0
  %v2821 = vmax.f32 %v2782, 0.0
  %v2822 = vmax.f32 %v2735, 0.0
  %v2823 = vmax.f32 %v2784, 0.0
  %v2824 = vmax.f32 %v2738, 0.0
  %v2825 = vmax.f32 %v2787, 0.0
  %v2826 = vmax.f32 %v2740, 0.0
  %v2827 = vmax.f32 %v2789, 0.0
  %v2828 = vmax.f32 %v2743, 0.0
  %v2829 = vmax.f32 %v2792, 0.0
  %v2830 = vmax.f32 %v2745, 0.0
  %v2831 = vmax.f32 %v2794, 0.0
  %v2832 = vmax.f32 %v2748, 0.0
  %v2833 = vmax.f32 %v2797, 0.0
  %v2834 = vmax.f32 %v2750, 0.0
  %v2835 = vmax.f32 %v2799, 0.0
  %v2836 = vmax.f32 %v2753, 0.0
  %v2837 = vmax.f32 %v2802, 0.0
  %v2838 = vmax.f32 %v2755, 0.0
  %v2839 = vmax.f32 %v2804, 0.0
  %v2840 = vmax.f32 %v2758, 0.0
  %v2841 = vmax.f32 %v2807, 0.0
  %v2842 = vmax.f32 %v2760, 0.0
  %v2843 = vmax.f32 %v2809, 0.0
  %v2844 = vmax.f32 %v2763, 0.0
  %v2845 = vmax.f32 %v2812, 0.0
  %v2846 = vmax.f32 %v2765, 0.0
  %v2847 = vmax.f32 %v2814, 0.0
  %v2848 = vmax.f32 %v2816, %v2824
  %v2849 = vmax.f32 %v2817, %v2825
  %v2850 = vmax.f32 %v2818, %v2826
  %v2851 = vmax.f32 %v2819, %v2827
  %v2852 = vmax.f32 %v2820, %v2828
  %v2853 = vmax.f32 %v2821, %v2829
  %v2854 = vmax.f32 %v2822, %v2830
  %v2855 = vmax.f32 %v2823, %v2831
  %v2856 = vmax.f32 %v2832, %v2840
  %v2857 = vmax.f32 %v2833, %v2841
  %v2858 = vmax.f32 %v2834, %v2842
  %v2859 = vmax.f32 %v2835, %v2843
  %v2860 = vmax.f32 %v2836, %v2844
  %v2861 = vmax.f32 %v2837, %v2845
  %v2862 = vmax.f32 %v2838, %v2846
  %v2863 = vmax.f32 %v2839, %v2847
  %v2864 = vmax.f32 %v2848, %v2856
  %v2865 = vmax.f32 %v2849, %v2857
  %v2866 = vmax.f32 %v2850, %v2858
  %v2867 = vmax.f32 %v2851, %v2859
  %v2868 = vmax.f32 %v2852, %v2860
  %v2869 = vmax.f32 %v2853, %v2861
  %v2870 = vmax.f32 %v2854, %v2862
  %v2871 = vmax.f32 %v2855, %v2863
  %v2872 = vpack.c.bf16 %v2866, %v2864
  %v2873 = vpack.c.bf16 %v2867, %v2865
  %v2874 = vpack.c.bf16 %v2870, %v2868
  %v2875 = vpack.c.bf16 %v2871, %v2869
  %v2876 = vld [vmem:[%s7] sm:$0xff]
  %v2877 = vld [vmem:[%s7 + $0x8] sm:$0xff]
  %v2878 = vld [vmem:[%s7 + $0x10] sm:$0xff]
  %v2879 = vld [vmem:[%s7 + $0x18] sm:$0xff]
  %v2880 = vld [vmem:[%s7 + $0x20] sm:$0xff]
  %v2881 = vld [vmem:[%s7 + $0x28] sm:$0xff]
  %v2882 = vld [vmem:[%s7 + $0x30] sm:$0xff]
  %v2883 = vld [vmem:[%s7 + $0x38] sm:$0xff]
  %v2884 = vld [vmem:[%s7 + $0x40] sm:$0xff]
  %v2885 = vld [vmem:[%s7 + $0x48] sm:$0xff]
  %v2886 = vld [vmem:[%s7 + $0x50] sm:$0xff]
  %v2887 = vld [vmem:[%s7 + $0x58] sm:$0xff]
  %v2888 = vld [vmem:[%s7 + $0x60] sm:$0xff]
  %v2889 = vld [vmem:[%s7 + $0x68] sm:$0xff]
  %v2890 = vld [vmem:[%s7 + $0x70] sm:$0xff]
  %v2891 = vld [vmem:[%s7 + $0x78] sm:$0xff]
  %v2892 = vld [vmem:[%s7 + $0x80] sm:$0xff]
  %v2893 = vld [vmem:[%s7 + $0x88] sm:$0xff]
  %v2894 = vld [vmem:[%s7 + $0x90] sm:$0xff]
  %v2895 = vld [vmem:[%s7 + $0x98] sm:$0xff]
  %v2896 = vld [vmem:[%s7 + $0xa0] sm:$0xff]
  %v2897 = vld [vmem:[%s7 + $0xa8] sm:$0xff]
  %v2898 = vld [vmem:[%s7 + $0xb0] sm:$0xff]
  %v2899 = vld [vmem:[%s7 + $0xb8] sm:$0xff]
  %v2900 = vld [vmem:[%s7 + $0xc0] sm:$0xff]
  %v2901 = vld [vmem:[%s7 + $0xc8] sm:$0xff]
  %v2902 = vld [vmem:[%s7 + $0xd0] sm:$0xff]
  %v2903 = vld [vmem:[%s7 + $0xd8] sm:$0xff]
  %v2904 = vld [vmem:[%s7 + $0xe0] sm:$0xff]
  %v2905 = vld [vmem:[%s7 + $0xe8] sm:$0xff]
  %v2906 = vld [vmem:[%s7 + $0xf0] sm:$0xff]
  %v2907 = vld [vmem:[%s7 + $0xf8] sm:$0xff]
  %v2908 = vld [vmem:[%s7 + $0x100] sm:$0xff]
  %v2909 = vld [vmem:[%s7 + $0x108] sm:$0xff]
  %v2910 = vld [vmem:[%s7 + $0x110] sm:$0xff]
  %v2911 = vld [vmem:[%s7 + $0x118] sm:$0xff]
  %v2912 = vld [vmem:[%s7 + $0x120] sm:$0xff]
  %v2913 = vld [vmem:[%s7 + $0x128] sm:$0xff]
  %v2914 = vld [vmem:[%s7 + $0x130] sm:$0xff]
  %v2915 = vld [vmem:[%s7 + $0x138] sm:$0xff]
  %v2916 = vld [vmem:[%s7 + $0x140] sm:$0xff]
  %v2917 = vld [vmem:[%s7 + $0x148] sm:$0xff]
  %v2918 = vld [vmem:[%s7 + $0x150] sm:$0xff]
  %v2919 = vld [vmem:[%s7 + $0x158] sm:$0xff]
  %v2920 = vld [vmem:[%s7 + $0x160] sm:$0xff]
  %v2921 = vld [vmem:[%s7 + $0x168] sm:$0xff]
  %v2922 = vld [vmem:[%s7 + $0x170] sm:$0xff]
  %v2923 = vld [vmem:[%s7 + $0x178] sm:$0xff]
  %v2924 = vld [vmem:[%s7 + $0x180] sm:$0xff]
  %v2925 = vld [vmem:[%s7 + $0x188] sm:$0xff]
  %v2926 = vld [vmem:[%s7 + $0x190] sm:$0xff]
  %v2927 = vld [vmem:[%s7 + $0x198] sm:$0xff]
  %v2928 = vld [vmem:[%s7 + $0x1a0] sm:$0xff]
  %v2929 = vld [vmem:[%s7 + $0x1a8] sm:$0xff]
  %v2930 = vld [vmem:[%s7 + $0x1b0] sm:$0xff]
  %v2931 = vld [vmem:[%s7 + $0x1b8] sm:$0xff]
  %v2932 = vld [vmem:[%s7 + $0x1c0] sm:$0xff]
  %v2933 = vld [vmem:[%s7 + $0x1c8] sm:$0xff]
  %v2934 = vld [vmem:[%s7 + $0x1d0] sm:$0xff]
  %v2935 = vld [vmem:[%s7 + $0x1d8] sm:$0xff]
  %v2936 = vld [vmem:[%s7 + $0x1e0] sm:$0xff]
  %v2937 = vld [vmem:[%s7 + $0x1e8] sm:$0xff]
  %v2938 = vld [vmem:[%s7 + $0x1f0] sm:$0xff]
  %v2939 = vld [vmem:[%s7 + $0x1f8] sm:$0xff]
  %v2940 = vld [vmem:[%s8] sm:$0xf]
  %v2942 = vperm.slane %v2940, 0
  %v2943 = vperm.slane %v2940, 1
  %v2944 = vperm.slane %v2940, 2
  %v2945 = vperm.slane %v2940, 3
  %v3014 = vunpack.c.l.b16 %v2876
  %v3015 = vunpack.c.h.b16 %v2876
  %v3016 = vunpack.c.l.b16 %v2877
  %v3017 = vunpack.c.h.b16 %v2877
  %v3018 = vunpack.c.l.b16 %v2878
  %v3019 = vunpack.c.h.b16 %v2878
  %v3020 = vunpack.c.l.b16 %v2879
  %v3021 = vunpack.c.h.b16 %v2879
  %v3022 = vunpack.c.l.b16 %v2880
  %v3023 = vunpack.c.h.b16 %v2880
  %v3024 = vunpack.c.l.b16 %v2881
  %v3025 = vunpack.c.h.b16 %v2881
  %v3026 = vunpack.c.l.b16 %v2882
  %v3027 = vunpack.c.h.b16 %v2882
  %v3028 = vunpack.c.l.b16 %v2883
  %v3029 = vunpack.c.h.b16 %v2883
  %v3030 = vunpack.c.l.b16 %v2884
  %v3031 = vunpack.c.h.b16 %v2884
  %v3032 = vunpack.c.l.b16 %v2885
  %v3033 = vunpack.c.h.b16 %v2885
  %v3034 = vunpack.c.l.b16 %v2886
  %v3035 = vunpack.c.h.b16 %v2886
  %v3036 = vunpack.c.l.b16 %v2887
  %v3037 = vunpack.c.h.b16 %v2887
  %v3038 = vunpack.c.l.b16 %v2888
  %v3039 = vunpack.c.h.b16 %v2888
  %v3040 = vunpack.c.l.b16 %v2889
  %v3041 = vunpack.c.h.b16 %v2889
  %v3042 = vunpack.c.l.b16 %v2890
  %v3043 = vunpack.c.h.b16 %v2890
  %v3044 = vunpack.c.l.b16 %v2891
  %v3045 = vunpack.c.h.b16 %v2891
  %v3046 = vunpack.c.l.b16 %v2892
  %v3047 = vunpack.c.h.b16 %v2892
  %v3048 = vunpack.c.l.b16 %v2893
  %v3049 = vunpack.c.h.b16 %v2893
  %v3050 = vunpack.c.l.b16 %v2894
  %v3051 = vunpack.c.h.b16 %v2894
  %v3052 = vunpack.c.l.b16 %v2895
  %v3053 = vunpack.c.h.b16 %v2895
  %v3054 = vunpack.c.l.b16 %v2896
  %v3055 = vunpack.c.h.b16 %v2896
  %v3056 = vunpack.c.l.b16 %v2897
  %v3057 = vunpack.c.h.b16 %v2897
  %v3058 = vunpack.c.l.b16 %v2898
  %v3059 = vunpack.c.h.b16 %v2898
  %v3060 = vunpack.c.l.b16 %v2899
  %v3061 = vunpack.c.h.b16 %v2899
  %v3062 = vunpack.c.l.b16 %v2900
  %v3063 = vunpack.c.h.b16 %v2900
  %v3064 = vunpack.c.l.b16 %v2901
  %v3065 = vunpack.c.h.b16 %v2901
  %v3066 = vunpack.c.l.b16 %v2902
  %v3067 = vunpack.c.h.b16 %v2902
  %v3068 = vunpack.c.l.b16 %v2903
  %v3069 = vunpack.c.h.b16 %v2903
  %v3070 = vunpack.c.l.b16 %v2904
  %v3071 = vunpack.c.h.b16 %v2904
  %v3072 = vunpack.c.l.b16 %v2905
  %v3073 = vunpack.c.h.b16 %v2905
  %v3074 = vunpack.c.l.b16 %v2906
  %v3075 = vunpack.c.h.b16 %v2906
  %v3076 = vunpack.c.l.b16 %v2907
  %v3077 = vunpack.c.h.b16 %v2907
  %v3078 = vunpack.c.l.b16 %v2908
  %v3079 = vunpack.c.h.b16 %v2908
  %v3080 = vunpack.c.l.b16 %v2909
  %v3081 = vunpack.c.h.b16 %v2909
  %v3082 = vunpack.c.l.b16 %v2910
  %v3083 = vunpack.c.h.b16 %v2910
  %v3084 = vunpack.c.l.b16 %v2911
  %v3085 = vunpack.c.h.b16 %v2911
  %v3086 = vunpack.c.l.b16 %v2912
  %v3087 = vunpack.c.h.b16 %v2912
  %v3088 = vunpack.c.l.b16 %v2913
  %v3089 = vunpack.c.h.b16 %v2913
  %v3090 = vunpack.c.l.b16 %v2914
  %v3091 = vunpack.c.h.b16 %v2914
  %v3092 = vunpack.c.l.b16 %v2915
  %v3093 = vunpack.c.h.b16 %v2915
  %v3094 = vunpack.c.l.b16 %v2916
  %v3095 = vunpack.c.h.b16 %v2916
  %v3096 = vunpack.c.l.b16 %v2917
  %v3097 = vunpack.c.h.b16 %v2917
  %v3098 = vunpack.c.l.b16 %v2918
  %v3099 = vunpack.c.h.b16 %v2918
  %v3100 = vunpack.c.l.b16 %v2919
  %v3101 = vunpack.c.h.b16 %v2919
  %v3102 = vunpack.c.l.b16 %v2920
  %v3103 = vunpack.c.h.b16 %v2920
  %v3104 = vunpack.c.l.b16 %v2921
  %v3105 = vunpack.c.h.b16 %v2921
  %v3106 = vunpack.c.l.b16 %v2922
  %v3107 = vunpack.c.h.b16 %v2922
  %v3108 = vunpack.c.l.b16 %v2923
  %v3109 = vunpack.c.h.b16 %v2923
  %v3110 = vunpack.c.l.b16 %v2924
  %v3111 = vunpack.c.h.b16 %v2924
  %v3112 = vunpack.c.l.b16 %v2925
  %v3113 = vunpack.c.h.b16 %v2925
  %v3114 = vunpack.c.l.b16 %v2926
  %v3115 = vunpack.c.h.b16 %v2926
  %v3116 = vunpack.c.l.b16 %v2927
  %v3117 = vunpack.c.h.b16 %v2927
  %v3118 = vunpack.c.l.b16 %v2928
  %v3119 = vunpack.c.h.b16 %v2928
  %v3120 = vunpack.c.l.b16 %v2929
  %v3121 = vunpack.c.h.b16 %v2929
  %v3122 = vunpack.c.l.b16 %v2930
  %v3123 = vunpack.c.h.b16 %v2930
  %v3124 = vunpack.c.l.b16 %v2931
  %v3125 = vunpack.c.h.b16 %v2931
  %v3126 = vunpack.c.l.b16 %v2932
  %v3127 = vunpack.c.h.b16 %v2932
  %v3128 = vunpack.c.l.b16 %v2933
  %v3129 = vunpack.c.h.b16 %v2933
  %v3130 = vunpack.c.l.b16 %v2934
  %v3131 = vunpack.c.h.b16 %v2934
  %v3132 = vunpack.c.l.b16 %v2935
  %v3133 = vunpack.c.h.b16 %v2935
  %v3134 = vunpack.c.l.b16 %v2936
  %v3135 = vunpack.c.h.b16 %v2936
  %v3136 = vunpack.c.l.b16 %v2937
  %v3137 = vunpack.c.h.b16 %v2937
  %v3138 = vunpack.c.l.b16 %v2938
  %v3139 = vunpack.c.h.b16 %v2938
  %v3140 = vunpack.c.l.b16 %v2939
  %v3141 = vunpack.c.h.b16 %v2939
  %v3142 = vpack.c.b16 %v3018, %v3014
  %v3143 = vpack.c.b16 %v3019, %v3015
  %v3144 = vpack.c.b16 %v3020, %v3016
  %v3145 = vpack.c.b16 %v3021, %v3017
  %v3146 = vpack.c.b16 %v3026, %v3022
  %v3147 = vpack.c.b16 %v3027, %v3023
  %v3148 = vpack.c.b16 %v3028, %v3024
  %v3149 = vpack.c.b16 %v3029, %v3025
  %v3150 = vpack.c.b16 %v3034, %v3030
  %v3151 = vpack.c.b16 %v3035, %v3031
  %v3152 = vpack.c.b16 %v3036, %v3032
  %v3153 = vpack.c.b16 %v3037, %v3033
  %v3154 = vpack.c.b16 %v3042, %v3038
  %v3155 = vpack.c.b16 %v3043, %v3039
  %v3156 = vpack.c.b16 %v3044, %v3040
  %v3157 = vpack.c.b16 %v3045, %v3041
  %v3158 = vpack.c.b16 %v3050, %v3046
  %v3159 = vpack.c.b16 %v3051, %v3047
  %v3160 = vpack.c.b16 %v3052, %v3048
  %v3161 = vpack.c.b16 %v3053, %v3049
  %v3162 = vpack.c.b16 %v3058, %v3054
  %v3163 = vpack.c.b16 %v3059, %v3055
  %v3164 = vpack.c.b16 %v3060, %v3056
  %v3165 = vpack.c.b16 %v3061, %v3057
  %v3166 = vpack.c.b16 %v3066, %v3062
  %v3167 = vpack.c.b16 %v3067, %v3063
  %v3168 = vpack.c.b16 %v3068, %v3064
  %v3169 = vpack.c.b16 %v3069, %v3065
  %v3170 = vpack.c.b16 %v3074, %v3070
  %v3171 = vpack.c.b16 %v3075, %v3071
  %v3172 = vpack.c.b16 %v3076, %v3072
  %v3173 = vpack.c.b16 %v3077, %v3073
  %v3174 = vpack.c.b16 %v3082, %v3078
  %v3175 = vpack.c.b16 %v3083, %v3079
  %v3176 = vpack.c.b16 %v3084, %v3080
  %v3177 = vpack.c.b16 %v3085, %v3081
  %v3178 = vpack.c.b16 %v3090, %v3086
  %v3179 = vpack.c.b16 %v3091, %v3087
  %v3180 = vpack.c.b16 %v3092, %v3088
  %v3181 = vpack.c.b16 %v3093, %v3089
  %v3182 = vpack.c.b16 %v3098, %v3094
  %v3183 = vpack.c.b16 %v3099, %v3095
  %v3184 = vpack.c.b16 %v3100, %v3096
  %v3185 = vpack.c.b16 %v3101, %v3097
  %v3186 = vpack.c.b16 %v3106, %v3102
  %v3187 = vpack.c.b16 %v3107, %v3103
  %v3188 = vpack.c.b16 %v3108, %v3104
  %v3189 = vpack.c.b16 %v3109, %v3105
  %v3190 = vpack.c.b16 %v3114, %v3110
  %v3191 = vpack.c.b16 %v3115, %v3111
  %v3192 = vpack.c.b16 %v3116, %v3112
  %v3193 = vpack.c.b16 %v3117, %v3113
  %v3194 = vpack.c.b16 %v3122, %v3118
  %v3195 = vpack.c.b16 %v3123, %v3119
  %v3196 = vpack.c.b16 %v3124, %v3120
  %v3197 = vpack.c.b16 %v3125, %v3121
  %v3198 = vpack.c.b16 %v3130, %v3126
  %v3199 = vpack.c.b16 %v3131, %v3127
  %v3200 = vpack.c.b16 %v3132, %v3128
  %v3201 = vpack.c.b16 %v3133, %v3129
  %v3202 = vpack.c.b16 %v3138, %v3134
  %v3203 = vpack.c.b16 %v3139, %v3135
  %v3204 = vpack.c.b16 %v3140, %v3136
  %v3205 = vpack.c.b16 %v3141, %v3137
  %3270 = vmatpush.bf16.msra.mxu0 %v3170
  %3271 = vmatpush.bf16.msra.mxu0 %v3166
  %3272 = vmatpush.bf16.msra.mxu0 %v3162
  %3273 = vmatpush.bf16.msra.mxu0 %v3158
  %3274 = vmatpush.bf16.msra.mxu0 %v3154
  %3275 = vmatpush.bf16.msra.mxu0 %v3150
  %3276 = vmatpush.bf16.msra.mxu0 %v3146
  %3277 = vmatpush.bf16.msra.mxu0 %v3142
  %3278 = vmatmul.bf16.gmra.mxu0 %v2872
  %v3279 = vpop.f32.mrf.mxu0
  %v3280 = vadd.f32 %v2942, %v3279
  %v3281 = vpop.f32.mrf.mxu0
  %v3282 = vadd.f32 %v2942, %v3281
  %3283 = vmatmul.bf16.gmra.mxu0 %v2874
  %v3284 = vpop.f32.mrf.mxu0
  %v3285 = vadd.f32 %v2942, %v3284
  %v3286 = vpop.f32.mrf.mxu0
  %v3287 = vadd.f32 %v2942, %v3286
  %3288 = vdwg.mxu0
  %3289 = vmatpush.bf16.msra.mxu0 %v3202
  %3290 = vmatpush.bf16.msra.mxu0 %v3198
  %3291 = vmatpush.bf16.msra.mxu0 %v3194
  %3292 = vmatpush.bf16.msra.mxu0 %v3190
  %3293 = vmatpush.bf16.msra.mxu0 %v3186
  %3294 = vmatpush.bf16.msra.mxu0 %v3182
  %3295 = vmatpush.bf16.msra.mxu0 %v3178
  %3296 = vmatpush.bf16.msra.mxu0 %v3174
  %3297 = vmatmul.bf16.gmra.mxu0 %v2873
  %v3298 = vpop.f32.mrf.mxu0
  %v3299 = vadd.f32 %v3280, %v3298
  %v3300 = vpop.f32.mrf.mxu0
  %v3301 = vadd.f32 %v3282, %v3300
  %3302 = vmatmul.bf16.gmra.mxu0 %v2875
  %v3303 = vpop.f32.mrf.mxu0
  %v3304 = vadd.f32 %v3285, %v3303
  %v3305 = vpop.f32.mrf.mxu0
  %v3306 = vadd.f32 %v3287, %v3305
  %3307 = vdwg.mxu0
  %3308 = vmatpush.bf16.msra.mxu0 %v3171
  %3309 = vmatpush.bf16.msra.mxu0 %v3167
  %3310 = vmatpush.bf16.msra.mxu0 %v3163
  %3311 = vmatpush.bf16.msra.mxu0 %v3159
  %3312 = vmatpush.bf16.msra.mxu0 %v3155
  %3313 = vmatpush.bf16.msra.mxu0 %v3151
  %3314 = vmatpush.bf16.msra.mxu0 %v3147
  %3315 = vmatpush.bf16.msra.mxu0 %v3143
  %3316 = vmatmul.bf16.gmra.mxu0 %v2872
  %v3317 = vpop.f32.mrf.mxu0
  %v3318 = vadd.f32 %v2943, %v3317
  %v3319 = vpop.f32.mrf.mxu0
  %v3320 = vadd.f32 %v2943, %v3319
  %3321 = vmatmul.bf16.gmra.mxu0 %v2874
  %v3322 = vpop.f32.mrf.mxu0
  %v3323 = vadd.f32 %v2943, %v3322
  %v3324 = vpop.f32.mrf.mxu0
  %v3325 = vadd.f32 %v2943, %v3324
  %3326 = vdwg.mxu0
  %3327 = vmatpush.bf16.msra.mxu0 %v3203
  %3328 = vmatpush.bf16.msra.mxu0 %v3199
  %3329 = vmatpush.bf16.msra.mxu0 %v3195
  %3330 = vmatpush.bf16.msra.mxu0 %v3191
  %3331 = vmatpush.bf16.msra.mxu0 %v3187
  %3332 = vmatpush.bf16.msra.mxu0 %v3183
  %3333 = vmatpush.bf16.msra.mxu0 %v3179
  %3334 = vmatpush.bf16.msra.mxu0 %v3175
  %3335 = vmatmul.bf16.gmra.mxu0 %v2873
  %v3336 = vpop.f32.mrf.mxu0
  %v3337 = vadd.f32 %v3318, %v3336
  %v3338 = vpop.f32.mrf.mxu0
  %v3339 = vadd.f32 %v3320, %v3338
  %3340 = vmatmul.bf16.gmra.mxu0 %v2875
  %v3341 = vpop.f32.mrf.mxu0
  %v3342 = vadd.f32 %v3323, %v3341
  %v3343 = vpop.f32.mrf.mxu0
  %v3344 = vadd.f32 %v3325, %v3343
  %3345 = vdwg.mxu0
  %3346 = vmatpush.bf16.msra.mxu0 %v3172
  %3347 = vmatpush.bf16.msra.mxu0 %v3168
  %3348 = vmatpush.bf16.msra.mxu0 %v3164
  %3349 = vmatpush.bf16.msra.mxu0 %v3160
  %3350 = vmatpush.bf16.msra.mxu0 %v3156
  %3351 = vmatpush.bf16.msra.mxu0 %v3152
  %3352 = vmatpush.bf16.msra.mxu0 %v3148
  %3353 = vmatpush.bf16.msra.mxu0 %v3144
  %3354 = vmatmul.bf16.gmra.mxu0 %v2872
  %v3355 = vpop.f32.mrf.mxu0
  %v3356 = vadd.f32 %v2944, %v3355
  %v3357 = vpop.f32.mrf.mxu0
  %v3358 = vadd.f32 %v2944, %v3357
  %3359 = vmatmul.bf16.gmra.mxu0 %v2874
  %v3360 = vpop.f32.mrf.mxu0
  %v3361 = vadd.f32 %v2944, %v3360
  %v3362 = vpop.f32.mrf.mxu0
  %v3363 = vadd.f32 %v2944, %v3362
  %3364 = vdwg.mxu0
  %3365 = vmatpush.bf16.msra.mxu0 %v3204
  %3366 = vmatpush.bf16.msra.mxu0 %v3200
  %3367 = vmatpush.bf16.msra.mxu0 %v3196
  %3368 = vmatpush.bf16.msra.mxu0 %v3192
  %3369 = vmatpush.bf16.msra.mxu0 %v3188
  %3370 = vmatpush.bf16.msra.mxu0 %v3184
  %3371 = vmatpush.bf16.msra.mxu0 %v3180
  %3372 = vmatpush.bf16.msra.mxu0 %v3176
  %3373 = vmatmul.bf16.gmra.mxu0 %v2873
  %v3374 = vpop.f32.mrf.mxu0
  %v3375 = vadd.f32 %v3356, %v3374
  %v3376 = vpop.f32.mrf.mxu0
  %v3377 = vadd.f32 %v3358, %v3376
  %3378 = vmatmul.bf16.gmra.mxu0 %v2875
  %v3379 = vpop.f32.mrf.mxu0
  %v3380 = vadd.f32 %v3361, %v3379
  %v3381 = vpop.f32.mrf.mxu0
  %v3382 = vadd.f32 %v3363, %v3381
  %3383 = vdwg.mxu0
  %3384 = vmatpush.bf16.msra.mxu0 %v3173
  %3385 = vmatpush.bf16.msra.mxu0 %v3169
  %3386 = vmatpush.bf16.msra.mxu0 %v3165
  %3387 = vmatpush.bf16.msra.mxu0 %v3161
  %3388 = vmatpush.bf16.msra.mxu0 %v3157
  %3389 = vmatpush.bf16.msra.mxu0 %v3153
  %3390 = vmatpush.bf16.msra.mxu0 %v3149
  %3391 = vmatpush.bf16.msra.mxu0 %v3145
  %3392 = vmatmul.bf16.gmra.mxu0 %v2872
  %v3393 = vpop.f32.mrf.mxu0
  %v3394 = vadd.f32 %v2945, %v3393
  %v3395 = vpop.f32.mrf.mxu0
  %v3396 = vadd.f32 %v2945, %v3395
  %3397 = vmatmul.bf16.gmra.mxu0 %v2874
  %v3398 = vpop.f32.mrf.mxu0
  %v3399 = vadd.f32 %v2945, %v3398
  %v3400 = vpop.f32.mrf.mxu0
  %v3401 = vadd.f32 %v2945, %v3400
  %3402 = vdwg.mxu0
  %3403 = vmatpush.bf16.msra.mxu0 %v3205
  %3404 = vmatpush.bf16.msra.mxu0 %v3201
  %3405 = vmatpush.bf16.msra.mxu0 %v3197
  %3406 = vmatpush.bf16.msra.mxu0 %v3193
  %3407 = vmatpush.bf16.msra.mxu0 %v3189
  %3408 = vmatpush.bf16.msra.mxu0 %v3185
  %3409 = vmatpush.bf16.msra.mxu0 %v3181
  %3410 = vmatpush.bf16.msra.mxu0 %v3177
  %3411 = vmatmul.bf16.gmra.mxu0 %v2873
  %v3412 = vpop.f32.mrf.mxu0
  %v3413 = vadd.f32 %v3394, %v3412
  %v3414 = vpop.f32.mrf.mxu0
  %v3415 = vadd.f32 %v3396, %v3414
  %3416 = vmatmul.bf16.gmra.mxu0 %v2875
  %v3417 = vpop.f32.mrf.mxu0
  %v3418 = vadd.f32 %v3399, %v3417
  %v3419 = vpop.f32.mrf.mxu0
  %v3420 = vadd.f32 %v3401, %v3419
  %3421 = vdwg.mxu0
  %v3422 = vmax.f32 %v3299, 0.0
  %v3423 = vmax.f32 %v3337, 0.0
  %v3424 = vmax.f32 %v3375, 0.0
  %v3425 = vmax.f32 %v3413, 0.0
  %v3426 = vmax.f32 %v3301, 0.0
  %v3427 = vmax.f32 %v3339, 0.0
  %v3428 = vmax.f32 %v3377, 0.0
  %v3429 = vmax.f32 %v3415, 0.0
  %v3430 = vmax.f32 %v3304, 0.0
  %v3431 = vmax.f32 %v3342, 0.0
  %v3432 = vmax.f32 %v3380, 0.0
  %v3433 = vmax.f32 %v3418, 0.0
  %v3434 = vmax.f32 %v3306, 0.0
  %v3435 = vmax.f32 %v3344, 0.0
  %v3436 = vmax.f32 %v3382, 0.0
  %v3437 = vmax.f32 %v3420, 0.0
  %v3438 = vmax.f32 %v3422, %v3426
  %v3439 = vmax.f32 %v3423, %v3427
  %v3440 = vmax.f32 %v3424, %v3428
  %v3441 = vmax.f32 %v3425, %v3429
  %v3442 = vmax.f32 %v3430, %v3434
  %v3443 = vmax.f32 %v3431, %v3435
  %v3444 = vmax.f32 %v3432, %v3436
  %v3445 = vmax.f32 %v3433, %v3437
  %v3446 = vmax.f32 %v3438, %v3442
  %v3447 = vmax.f32 %v3439, %v3443
  %v3448 = vmax.f32 %v3440, %v3444
  %v3449 = vmax.f32 %v3441, %v3445
  %v3450 = vpack.c.bf16 %v3446, %v3446
  %v3451 = vpack.c.bf16 %v3447, %v3447
  %v3452 = vpack.c.bf16 %v3448, %v3448
  %v3453 = vpack.c.bf16 %v3449, %v3449
  %v3454 = vld [vmem:[%s9] sm:$0xff]
  %v3455 = vld [vmem:[%s9 + $0x8] sm:$0xff]
  %v3456 = vld [vmem:[%s9 + $0x10] sm:$0xff]
  %v3457 = vld [vmem:[%s9 + $0x18] sm:$0xff]
  %v3458 = vld [vmem:[%s9 + $0x20] sm:$0xff]
  %v3459 = vld [vmem:[%s9 + $0x28] sm:$0xff]
  %v3460 = vld [vmem:[%s9 + $0x30] sm:$0xff]
  %v3461 = vld [vmem:[%s9 + $0x38] sm:$0xff]
  %v3462 = vld [vmem:[%s9 + $0x40] sm:$0xff]
  %v3463 = vld [vmem:[%s9 + $0x48] sm:$0xff]
  %v3464 = vld [vmem:[%s9 + $0x50] sm:$0xff]
  %v3465 = vld [vmem:[%s9 + $0x58] sm:$0xff]
  %v3466 = vld [vmem:[%s9 + $0x60] sm:$0xff]
  %v3467 = vld [vmem:[%s9 + $0x68] sm:$0xff]
  %v3468 = vld [vmem:[%s9 + $0x70] sm:$0xff]
  %v3469 = vld [vmem:[%s9 + $0x78] sm:$0xff]
  %v3470 = vld [vmem:[%s9 + $0x80] sm:$0xff]
  %v3471 = vld [vmem:[%s9 + $0x88] sm:$0xff]
  %v3472 = vld [vmem:[%s9 + $0x90] sm:$0xff]
  %v3473 = vld [vmem:[%s9 + $0x98] sm:$0xff]
  %v3474 = vld [vmem:[%s9 + $0xa0] sm:$0xff]
  %v3475 = vld [vmem:[%s9 + $0xa8] sm:$0xff]
  %v3476 = vld [vmem:[%s9 + $0xb0] sm:$0xff]
  %v3477 = vld [vmem:[%s9 + $0xb8] sm:$0xff]
  %v3478 = vld [vmem:[%s9 + $0xc0] sm:$0xff]
  %v3479 = vld [vmem:[%s9 + $0xc8] sm:$0xff]
  %v3480 = vld [vmem:[%s9 + $0xd0] sm:$0xff]
  %v3481 = vld [vmem:[%s9 + $0xd8] sm:$0xff]
  %v3482 = vld [vmem:[%s9 + $0xe0] sm:$0xff]
  %v3483 = vld [vmem:[%s9 + $0xe8] sm:$0xff]
  %v3484 = vld [vmem:[%s9 + $0xf0] sm:$0xff]
  %v3485 = vld [vmem:[%s9 + $0xf8] sm:$0xff]
  %v3486 = vld [vmem:[%s9 + $0x100] sm:$0xff]
  %v3487 = vld [vmem:[%s9 + $0x108] sm:$0xff]
  %v3488 = vld [vmem:[%s9 + $0x110] sm:$0xff]
  %v3489 = vld [vmem:[%s9 + $0x118] sm:$0xff]
  %v3490 = vld [vmem:[%s9 + $0x120] sm:$0xff]
  %v3491 = vld [vmem:[%s9 + $0x128] sm:$0xff]
  %v3492 = vld [vmem:[%s9 + $0x130] sm:$0xff]
  %v3493 = vld [vmem:[%s9 + $0x138] sm:$0xff]
  %v3494 = vld [vmem:[%s9 + $0x140] sm:$0xff]
  %v3495 = vld [vmem:[%s9 + $0x148] sm:$0xff]
  %v3496 = vld [vmem:[%s9 + $0x150] sm:$0xff]
  %v3497 = vld [vmem:[%s9 + $0x158] sm:$0xff]
  %v3498 = vld [vmem:[%s9 + $0x160] sm:$0xff]
  %v3499 = vld [vmem:[%s9 + $0x168] sm:$0xff]
  %v3500 = vld [vmem:[%s9 + $0x170] sm:$0xff]
  %v3501 = vld [vmem:[%s9 + $0x178] sm:$0xff]
  %v3502 = vld [vmem:[%s9 + $0x180] sm:$0xff]
  %v3503 = vld [vmem:[%s9 + $0x188] sm:$0xff]
  %v3504 = vld [vmem:[%s9 + $0x190] sm:$0xff]
  %v3505 = vld [vmem:[%s9 + $0x198] sm:$0xff]
  %v3506 = vld [vmem:[%s9 + $0x1a0] sm:$0xff]
  %v3507 = vld [vmem:[%s9 + $0x1a8] sm:$0xff]
  %v3508 = vld [vmem:[%s9 + $0x1b0] sm:$0xff]
  %v3509 = vld [vmem:[%s9 + $0x1b8] sm:$0xff]
  %v3510 = vld [vmem:[%s9 + $0x1c0] sm:$0xff]
  %v3511 = vld [vmem:[%s9 + $0x1c8] sm:$0xff]
  %v3512 = vld [vmem:[%s9 + $0x1d0] sm:$0xff]
  %v3513 = vld [vmem:[%s9 + $0x1d8] sm:$0xff]
  %v3514 = vld [vmem:[%s9 + $0x1e0] sm:$0xff]
  %v3515 = vld [vmem:[%s9 + $0x1e8] sm:$0xff]
  %v3516 = vld [vmem:[%s9 + $0x1f0] sm:$0xff]
  %v3517 = vld [vmem:[%s9 + $0x1f8] sm:$0xff]
  %v3518 = vld [vmem:[%s9 + $0x200] sm:$0xff]
  %v3519 = vld [vmem:[%s9 + $0x208] sm:$0xff]
  %v3520 = vld [vmem:[%s9 + $0x210] sm:$0xff]
  %v3521 = vld [vmem:[%s9 + $0x218] sm:$0xff]
  %v3522 = vld [vmem:[%s9 + $0x220] sm:$0xff]
  %v3523 = vld [vmem:[%s9 + $0x228] sm:$0xff]
  %v3524 = vld [vmem:[%s9 + $0x230] sm:$0xff]
  %v3525 = vld [vmem:[%s9 + $0x238] sm:$0xff]
  %v3526 = vld [vmem:[%s9 + $0x240] sm:$0xff]
  %v3527 = vld [vmem:[%s9 + $0x248] sm:$0xff]
  %v3528 = vld [vmem:[%s9 + $0x250] sm:$0xff]
  %v3529 = vld [vmem:[%s9 + $0x258] sm:$0xff]
  %v3530 = vld [vmem:[%s9 + $0x260] sm:$0xff]
  %v3531 = vld [vmem:[%s9 + $0x268] sm:$0xff]
  %v3532 = vld [vmem:[%s9 + $0x270] sm:$0xff]
  %v3533 = vld [vmem:[%s9 + $0x278] sm:$0xff]
  %v3534 = vld [vmem:[%s9 + $0x280] sm:$0xff]
  %v3535 = vld [vmem:[%s9 + $0x288] sm:$0xff]
  %v3536 = vld [vmem:[%s9 + $0x290] sm:$0xff]
  %v3537 = vld [vmem:[%s9 + $0x298] sm:$0xff]
  %v3538 = vld [vmem:[%s9 + $0x2a0] sm:$0xff]
  %v3539 = vld [vmem:[%s9 + $0x2a8] sm:$0xff]
  %v3540 = vld [vmem:[%s9 + $0x2b0] sm:$0xff]
  %v3541 = vld [vmem:[%s9 + $0x2b8] sm:$0xff]
  %v3542 = vld [vmem:[%s9 + $0x2c0] sm:$0xff]
  %v3543 = vld [vmem:[%s9 + $0x2c8] sm:$0xff]
  %v3544 = vld [vmem:[%s9 + $0x2d0] sm:$0xff]
  %v3545 = vld [vmem:[%s9 + $0x2d8] sm:$0xff]
  %v3546 = vld [vmem:[%s9 + $0x2e0] sm:$0xff]
  %v3547 = vld [vmem:[%s9 + $0x2e8] sm:$0xff]
  %v3548 = vld [vmem:[%s9 + $0x2f0] sm:$0xff]
  %v3549 = vld [vmem:[%s9 + $0x2f8] sm:$0xff]
  %v3550 = vld [vmem:[%s9 + $0x300] sm:$0xff]
  %v3551 = vld [vmem:[%s9 + $0x308] sm:$0xff]
  %v3552 = vld [vmem:[%s9 + $0x310] sm:$0xff]
  %v3553 = vld [vmem:[%s9 + $0x318] sm:$0xff]
  %v3554 = vld [vmem:[%s9 + $0x320] sm:$0xff]
  %v3555 = vld [vmem:[%s9 + $0x328] sm:$0xff]
  %v3556 = vld [vmem:[%s9 + $0x330] sm:$0xff]
  %v3557 = vld [vmem:[%s9 + $0x338] sm:$0xff]
  %v3558 = vld [vmem:[%s9 + $0x340] sm:$0xff]
  %v3559 = vld [vmem:[%s9 + $0x348] sm:$0xff]
  %v3560 = vld [vmem:[%s9 + $0x350] sm:$0xff]
  %v3561 = vld [vmem:[%s9 + $0x358] sm:$0xff]
  %v3562 = vld [vmem:[%s9 + $0x360] sm:$0xff]
  %v3563 = vld [vmem:[%s9 + $0x368] sm:$0xff]
  %v3564 = vld [vmem:[%s9 + $0x370] sm:$0xff]
  %v3565 = vld [vmem:[%s9 + $0x378] sm:$0xff]
  %v3566 = vld [vmem:[%s9 + $0x380] sm:$0xff]
  %v3567 = vld [vmem:[%s9 + $0x388] sm:$0xff]
  %v3568 = vld [vmem:[%s9 + $0x390] sm:$0xff]
  %v3569 = vld [vmem:[%s9 + $0x398] sm:$0xff]
  %v3570 = vld [vmem:[%s9 + $0x3a0] sm:$0xff]
  %v3571 = vld [vmem:[%s9 + $0x3a8] sm:$0xff]
  %v3572 = vld [vmem:[%s9 + $0x3b0] sm:$0xff]
  %v3573 = vld [vmem:[%s9 + $0x3b8] sm:$0xff]
  %v3574 = vld [vmem:[%s9 + $0x3c0] sm:$0xff]
  %v3575 = vld [vmem:[%s9 + $0x3c8] sm:$0xff]
  %v3576 = vld [vmem:[%s9 + $0x3d0] sm:$0xff]
  %v3577 = vld [vmem:[%s9 + $0x3d8] sm:$0xff]
  %v3578 = vld [vmem:[%s9 + $0x3e0] sm:$0xff]
  %v3579 = vld [vmem:[%s9 + $0x3e8] sm:$0xff]
  %v3580 = vld [vmem:[%s9 + $0x3f0] sm:$0xff]
  %v3581 = vld [vmem:[%s9 + $0x3f8] sm:$0xff]
  %v3582 = vld [vmem:[%s9 + $0x400] sm:$0xff]
  %v3583 = vld [vmem:[%s9 + $0x408] sm:$0xff]
  %v3584 = vld [vmem:[%s9 + $0x410] sm:$0xff]
  %v3585 = vld [vmem:[%s9 + $0x418] sm:$0xff]
  %v3586 = vld [vmem:[%s9 + $0x420] sm:$0xff]
  %v3587 = vld [vmem:[%s9 + $0x428] sm:$0xff]
  %v3588 = vld [vmem:[%s9 + $0x430] sm:$0xff]
  %v3589 = vld [vmem:[%s9 + $0x438] sm:$0xff]
  %v3590 = vld [vmem:[%s9 + $0x440] sm:$0xff]
  %v3591 = vld [vmem:[%s9 + $0x448] sm:$0xff]
  %v3592 = vld [vmem:[%s9 + $0x450] sm:$0xff]
  %v3593 = vld [vmem:[%s9 + $0x458] sm:$0xff]
  %v3594 = vld [vmem:[%s9 + $0x460] sm:$0xff]
  %v3595 = vld [vmem:[%s9 + $0x468] sm:$0xff]
  %v3596 = vld [vmem:[%s9 + $0x470] sm:$0xff]
  %v3597 = vld [vmem:[%s9 + $0x478] sm:$0xff]
  %v3598 = vld [vmem:[%s9 + $0x480] sm:$0xff]
  %v3599 = vld [vmem:[%s9 + $0x488] sm:$0xff]
  %v3600 = vld [vmem:[%s9 + $0x490] sm:$0xff]
  %v3601 = vld [vmem:[%s9 + $0x498] sm:$0xff]
  %v3602 = vld [vmem:[%s9 + $0x4a0] sm:$0xff]
  %v3603 = vld [vmem:[%s9 + $0x4a8] sm:$0xff]
  %v3604 = vld [vmem:[%s9 + $0x4b0] sm:$0xff]
  %v3605 = vld [vmem:[%s9 + $0x4b8] sm:$0xff]
  %v3606 = vld [vmem:[%s9 + $0x4c0] sm:$0xff]
  %v3607 = vld [vmem:[%s9 + $0x4c8] sm:$0xff]
  %v3608 = vld [vmem:[%s9 + $0x4d0] sm:$0xff]
  %v3609 = vld [vmem:[%s9 + $0x4d8] sm:$0xff]
  %v3610 = vld [vmem:[%s9 + $0x4e0] sm:$0xff]
  %v3611 = vld [vmem:[%s9 + $0x4e8] sm:$0xff]
  %v3612 = vld [vmem:[%s9 + $0x4f0] sm:$0xff]
  %v3613 = vld [vmem:[%s9 + $0x4f8] sm:$0xff]
  %v3614 = vld [vmem:[%s9 + $0x500] sm:$0xff]
  %v3615 = vld [vmem:[%s9 + $0x508] sm:$0xff]
  %v3616 = vld [vmem:[%s9 + $0x510] sm:$0xff]
  %v3617 = vld [vmem:[%s9 + $0x518] sm:$0xff]
  %v3618 = vld [vmem:[%s9 + $0x520] sm:$0xff]
  %v3619 = vld [vmem:[%s9 + $0x528] sm:$0xff]
  %v3620 = vld [vmem:[%s9 + $0x530] sm:$0xff]
  %v3621 = vld [vmem:[%s9 + $0x538] sm:$0xff]
  %v3622 = vld [vmem:[%s9 + $0x540] sm:$0xff]
  %v3623 = vld [vmem:[%s9 + $0x548] sm:$0xff]
  %v3624 = vld [vmem:[%s9 + $0x550] sm:$0xff]
  %v3625 = vld [vmem:[%s9 + $0x558] sm:$0xff]
  %v3626 = vld [vmem:[%s9 + $0x560] sm:$0xff]
  %v3627 = vld [vmem:[%s9 + $0x568] sm:$0xff]
  %v3628 = vld [vmem:[%s9 + $0x570] sm:$0xff]
  %v3629 = vld [vmem:[%s9 + $0x578] sm:$0xff]
  %v3630 = vld [vmem:[%s9 + $0x580] sm:$0xff]
  %v3631 = vld [vmem:[%s9 + $0x588] sm:$0xff]
  %v3632 = vld [vmem:[%s9 + $0x590] sm:$0xff]
  %v3633 = vld [vmem:[%s9 + $0x598] sm:$0xff]
  %v3634 = vld [vmem:[%s9 + $0x5a0] sm:$0xff]
  %v3635 = vld [vmem:[%s9 + $0x5a8] sm:$0xff]
  %v3636 = vld [vmem:[%s9 + $0x5b0] sm:$0xff]
  %v3637 = vld [vmem:[%s9 + $0x5b8] sm:$0xff]
  %v3638 = vld [vmem:[%s9 + $0x5c0] sm:$0xff]
  %v3639 = vld [vmem:[%s9 + $0x5c8] sm:$0xff]
  %v3640 = vld [vmem:[%s9 + $0x5d0] sm:$0xff]
  %v3641 = vld [vmem:[%s9 + $0x5d8] sm:$0xff]
  %v3642 = vld [vmem:[%s9 + $0x5e0] sm:$0xff]
  %v3643 = vld [vmem:[%s9 + $0x5e8] sm:$0xff]
  %v3644 = vld [vmem:[%s9 + $0x5f0] sm:$0xff]
  %v3645 = vld [vmem:[%s9 + $0x5f8] sm:$0xff]
  %v3646 = vld [vmem:[%s9 + $0x600] sm:$0xff]
  %v3647 = vld [vmem:[%s9 + $0x608] sm:$0xff]
  %v3648 = vld [vmem:[%s9 + $0x610] sm:$0xff]
  %v3649 = vld [vmem:[%s9 + $0x618] sm:$0xff]
  %v3650 = vld [vmem:[%s9 + $0x620] sm:$0xff]
  %v3651 = vld [vmem:[%s9 + $0x628] sm:$0xff]
  %v3652 = vld [vmem:[%s9 + $0x630] sm:$0xff]
  %v3653 = vld [vmem:[%s9 + $0x638] sm:$0xff]
  %v3654 = vld [vmem:[%s9 + $0x640] sm:$0xff]
  %v3655 = vld [vmem:[%s9 + $0x648] sm:$0xff]
  %v3656 = vld [vmem:[%s9 + $0x650] sm:$0xff]
  %v3657 = vld [vmem:[%s9 + $0x658] sm:$0xff]
  %v3658 = vld [vmem:[%s9 + $0x660] sm:$0xff]
  %v3659 = vld [vmem:[%s9 + $0x668] sm:$0xff]
  %v3660 = vld [vmem:[%s9 + $0x670] sm:$0xff]
  %v3661 = vld [vmem:[%s9 + $0x678] sm:$0xff]
  %v3662 = vld [vmem:[%s9 + $0x680] sm:$0xff]
  %v3663 = vld [vmem:[%s9 + $0x688] sm:$0xff]
  %v3664 = vld [vmem:[%s9 + $0x690] sm:$0xff]
  %v3665 = vld [vmem:[%s9 + $0x698] sm:$0xff]
  %v3666 = vld [vmem:[%s9 + $0x6a0] sm:$0xff]
  %v3667 = vld [vmem:[%s9 + $0x6a8] sm:$0xff]
  %v3668 = vld [vmem:[%s9 + $0x6b0] sm:$0xff]
  %v3669 = vld [vmem:[%s9 + $0x6b8] sm:$0xff]
  %v3670 = vld [vmem:[%s9 + $0x6c0] sm:$0xff]
  %v3671 = vld [vmem:[%s9 + $0x6c8] sm:$0xff]
  %v3672 = vld [vmem:[%s9 + $0x6d0] sm:$0xff]
  %v3673 = vld [vmem:[%s9 + $0x6d8] sm:$0xff]
  %v3674 = vld [vmem:[%s9 + $0x6e0] sm:$0xff]
  %v3675 = vld [vmem:[%s9 + $0x6e8] sm:$0xff]
  %v3676 = vld [vmem:[%s9 + $0x6f0] sm:$0xff]
  %v3677 = vld [vmem:[%s9 + $0x6f8] sm:$0xff]
  %v3678 = vld [vmem:[%s9 + $0x700] sm:$0xff]
  %v3679 = vld [vmem:[%s9 + $0x708] sm:$0xff]
  %v3680 = vld [vmem:[%s9 + $0x710] sm:$0xff]
  %v3681 = vld [vmem:[%s9 + $0x718] sm:$0xff]
  %v3682 = vld [vmem:[%s9 + $0x720] sm:$0xff]
  %v3683 = vld [vmem:[%s9 + $0x728] sm:$0xff]
  %v3684 = vld [vmem:[%s9 + $0x730] sm:$0xff]
  %v3685 = vld [vmem:[%s9 + $0x738] sm:$0xff]
  %v3686 = vld [vmem:[%s9 + $0x740] sm:$0xff]
  %v3687 = vld [vmem:[%s9 + $0x748] sm:$0xff]
  %v3688 = vld [vmem:[%s9 + $0x750] sm:$0xff]
  %v3689 = vld [vmem:[%s9 + $0x758] sm:$0xff]
  %v3690 = vld [vmem:[%s9 + $0x760] sm:$0xff]
  %v3691 = vld [vmem:[%s9 + $0x768] sm:$0xff]
  %v3692 = vld [vmem:[%s9 + $0x770] sm:$0xff]
  %v3693 = vld [vmem:[%s9 + $0x778] sm:$0xff]
  %v3694 = vld [vmem:[%s9 + $0x780] sm:$0xff]
  %v3695 = vld [vmem:[%s9 + $0x788] sm:$0xff]
  %v3696 = vld [vmem:[%s9 + $0x790] sm:$0xff]
  %v3697 = vld [vmem:[%s9 + $0x798] sm:$0xff]
  %v3698 = vld [vmem:[%s9 + $0x7a0] sm:$0xff]
  %v3699 = vld [vmem:[%s9 + $0x7a8] sm:$0xff]
  %v3700 = vld [vmem:[%s9 + $0x7b0] sm:$0xff]
  %v3701 = vld [vmem:[%s9 + $0x7b8] sm:$0xff]
  %v3702 = vld [vmem:[%s9 + $0x7c0] sm:$0xff]
  %v3703 = vld [vmem:[%s9 + $0x7c8] sm:$0xff]
  %v3704 = vld [vmem:[%s9 + $0x7d0] sm:$0xff]
  %v3705 = vld [vmem:[%s9 + $0x7d8] sm:$0xff]
  %v3706 = vld [vmem:[%s9 + $0x7e0] sm:$0xff]
  %v3707 = vld [vmem:[%s9 + $0x7e8] sm:$0xff]
  %v3708 = vld [vmem:[%s9 + $0x7f0] sm:$0xff]
  %v3709 = vld [vmem:[%s9 + $0x7f8] sm:$0xff]
  %v3710 = vld [vmem:[%s10] sm:$0xff]
  %v3712 = vperm.slane %v3710, 0
  %v3713 = vperm.slane %v3710, 1
  %v3714 = vperm.slane %v3710, 2
  %v3715 = vperm.slane %v3710, 3
  %v3716 = vperm.slane %v3710, 4
  %v3717 = vperm.slane %v3710, 5
  %v3718 = vperm.slane %v3710, 6
  %v3719 = vperm.slane %v3710, 7
  %v3984 = vunpack.c.l.b16 %v3454
  %v3985 = vunpack.c.h.b16 %v3454
  %v3986 = vunpack.c.l.b16 %v3455
  %v3987 = vunpack.c.h.b16 %v3455
  %v3988 = vunpack.c.l.b16 %v3456
  %v3989 = vunpack.c.h.b16 %v3456
  %v3990 = vunpack.c.l.b16 %v3457
  %v3991 = vunpack.c.h.b16 %v3457
  %v3992 = vunpack.c.l.b16 %v3458
  %v3993 = vunpack.c.h.b16 %v3458
  %v3994 = vunpack.c.l.b16 %v3459
  %v3995 = vunpack.c.h.b16 %v3459
  %v3996 = vunpack.c.l.b16 %v3460
  %v3997 = vunpack.c.h.b16 %v3460
  %v3998 = vunpack.c.l.b16 %v3461
  %v3999 = vunpack.c.h.b16 %v3461
  %v4000 = vunpack.c.l.b16 %v3462
  %v4001 = vunpack.c.h.b16 %v3462
  %v4002 = vunpack.c.l.b16 %v3463
  %v4003 = vunpack.c.h.b16 %v3463
  %v4004 = vunpack.c.l.b16 %v3464
  %v4005 = vunpack.c.h.b16 %v3464
  %v4006 = vunpack.c.l.b16 %v3465
  %v4007 = vunpack.c.h.b16 %v3465
  %v4008 = vunpack.c.l.b16 %v3466
  %v4009 = vunpack.c.h.b16 %v3466
  %v4010 = vunpack.c.l.b16 %v3467
  %v4011 = vunpack.c.h.b16 %v3467
  %v4012 = vunpack.c.l.b16 %v3468
  %v4013 = vunpack.c.h.b16 %v3468
  %v4014 = vunpack.c.l.b16 %v3469
  %v4015 = vunpack.c.h.b16 %v3469
  %v4016 = vunpack.c.l.b16 %v3470
  %v4017 = vunpack.c.h.b16 %v3470
  %v4018 = vunpack.c.l.b16 %v3471
  %v4019 = vunpack.c.h.b16 %v3471
  %v4020 = vunpack.c.l.b16 %v3472
  %v4021 = vunpack.c.h.b16 %v3472
  %v4022 = vunpack.c.l.b16 %v3473
  %v4023 = vunpack.c.h.b16 %v3473
  %v4024 = vunpack.c.l.b16 %v3474
  %v4025 = vunpack.c.h.b16 %v3474
  %v4026 = vunpack.c.l.b16 %v3475
  %v4027 = vunpack.c.h.b16 %v3475
  %v4028 = vunpack.c.l.b16 %v3476
  %v4029 = vunpack.c.h.b16 %v3476
  %v4030 = vunpack.c.l.b16 %v3477
  %v4031 = vunpack.c.h.b16 %v3477
  %v4032 = vunpack.c.l.b16 %v3478
  %v4033 = vunpack.c.h.b16 %v3478
  %v4034 = vunpack.c.l.b16 %v3479
  %v4035 = vunpack.c.h.b16 %v3479
  %v4036 = vunpack.c.l.b16 %v3480
  %v4037 = vunpack.c.h.b16 %v3480
  %v4038 = vunpack.c.l.b16 %v3481
  %v4039 = vunpack.c.h.b16 %v3481
  %v4040 = vunpack.c.l.b16 %v3482
  %v4041 = vunpack.c.h.b16 %v3482
  %v4042 = vunpack.c.l.b16 %v3483
  %v4043 = vunpack.c.h.b16 %v3483
  %v4044 = vunpack.c.l.b16 %v3484
  %v4045 = vunpack.c.h.b16 %v3484
  %v4046 = vunpack.c.l.b16 %v3485
  %v4047 = vunpack.c.h.b16 %v3485
  %v4048 = vunpack.c.l.b16 %v3486
  %v4049 = vunpack.c.h.b16 %v3486
  %v4050 = vunpack.c.l.b16 %v3487
  %v4051 = vunpack.c.h.b16 %v3487
  %v4052 = vunpack.c.l.b16 %v3488
  %v4053 = vunpack.c.h.b16 %v3488
  %v4054 = vunpack.c.l.b16 %v3489
  %v4055 = vunpack.c.h.b16 %v3489
  %v4056 = vunpack.c.l.b16 %v3490
  %v4057 = vunpack.c.h.b16 %v3490
  %v4058 = vunpack.c.l.b16 %v3491
  %v4059 = vunpack.c.h.b16 %v3491
  %v4060 = vunpack.c.l.b16 %v3492
  %v4061 = vunpack.c.h.b16 %v3492
  %v4062 = vunpack.c.l.b16 %v3493
  %v4063 = vunpack.c.h.b16 %v3493
  %v4064 = vunpack.c.l.b16 %v3494
  %v4065 = vunpack.c.h.b16 %v3494
  %v4066 = vunpack.c.l.b16 %v3495
  %v4067 = vunpack.c.h.b16 %v3495
  %v4068 = vunpack.c.l.b16 %v3496
  %v4069 = vunpack.c.h.b16 %v3496
  %v4070 = vunpack.c.l.b16 %v3497
  %v4071 = vunpack.c.h.b16 %v3497
  %v4072 = vunpack.c.l.b16 %v3498
  %v4073 = vunpack.c.h.b16 %v3498
  %v4074 = vunpack.c.l.b16 %v3499
  %v4075 = vunpack.c.h.b16 %v3499
  %v4076 = vunpack.c.l.b16 %v3500
  %v4077 = vunpack.c.h.b16 %v3500
  %v4078 = vunpack.c.l.b16 %v3501
  %v4079 = vunpack.c.h.b16 %v3501
  %v4080 = vunpack.c.l.b16 %v3502
  %v4081 = vunpack.c.h.b16 %v3502
  %v4082 = vunpack.c.l.b16 %v3503
  %v4083 = vunpack.c.h.b16 %v3503
  %v4084 = vunpack.c.l.b16 %v3504
  %v4085 = vunpack.c.h.b16 %v3504
  %v4086 = vunpack.c.l.b16 %v3505
  %v4087 = vunpack.c.h.b16 %v3505
  %v4088 = vunpack.c.l.b16 %v3506
  %v4089 = vunpack.c.h.b16 %v3506
  %v4090 = vunpack.c.l.b16 %v3507
  %v4091 = vunpack.c.h.b16 %v3507
  %v4092 = vunpack.c.l.b16 %v3508
  %v4093 = vunpack.c.h.b16 %v3508
  %v4094 = vunpack.c.l.b16 %v3509
  %v4095 = vunpack.c.h.b16 %v3509
  %v4096 = vunpack.c.l.b16 %v3510
  %v4097 = vunpack.c.h.b16 %v3510
  %v4098 = vunpack.c.l.b16 %v3511
  %v4099 = vunpack.c.h.b16 %v3511
  %v4100 = vunpack.c.l.b16 %v3512
  %v4101 = vunpack.c.h.b16 %v3512
  %v4102 = vunpack.c.l.b16 %v3513
  %v4103 = vunpack.c.h.b16 %v3513
  %v4104 = vunpack.c.l.b16 %v3514
  %v4105 = vunpack.c.h.b16 %v3514
  %v4106 = vunpack.c.l.b16 %v3515
  %v4107 = vunpack.c.h.b16 %v3515
  %v4108 = vunpack.c.l.b16 %v3516
  %v4109 = vunpack.c.h.b16 %v3516
  %v4110 = vunpack.c.l.b16 %v3517
  %v4111 = vunpack.c.h.b16 %v3517
  %v4112 = vunpack.c.l.b16 %v3518
  %v4113 = vunpack.c.h.b16 %v3518
  %v4114 = vunpack.c.l.b16 %v3519
  %v4115 = vunpack.c.h.b16 %v3519
  %v4116 = vunpack.c.l.b16 %v3520
  %v4117 = vunpack.c.h.b16 %v3520
  %v4118 = vunpack.c.l.b16 %v3521
  %v4119 = vunpack.c.h.b16 %v3521
  %v4120 = vunpack.c.l.b16 %v3522
  %v4121 = vunpack.c.h.b16 %v3522
  %v4122 = vunpack.c.l.b16 %v3523
  %v4123 = vunpack.c.h.b16 %v3523
  %v4124 = vunpack.c.l.b16 %v3524
  %v4125 = vunpack.c.h.b16 %v3524
  %v4126 = vunpack.c.l.b16 %v3525
  %v4127 = vunpack.c.h.b16 %v3525
  %v4128 = vunpack.c.l.b16 %v3526
  %v4129 = vunpack.c.h.b16 %v3526
  %v4130 = vunpack.c.l.b16 %v3527
  %v4131 = vunpack.c.h.b16 %v3527
  %v4132 = vunpack.c.l.b16 %v3528
  %v4133 = vunpack.c.h.b16 %v3528
  %v4134 = vunpack.c.l.b16 %v3529
  %v4135 = vunpack.c.h.b16 %v3529
  %v4136 = vunpack.c.l.b16 %v3530
  %v4137 = vunpack.c.h.b16 %v3530
  %v4138 = vunpack.c.l.b16 %v3531
  %v4139 = vunpack.c.h.b16 %v3531
  %v4140 = vunpack.c.l.b16 %v3532
  %v4141 = vunpack.c.h.b16 %v3532
  %v4142 = vunpack.c.l.b16 %v3533
  %v4143 = vunpack.c.h.b16 %v3533
  %v4144 = vunpack.c.l.b16 %v3534
  %v4145 = vunpack.c.h.b16 %v3534
  %v4146 = vunpack.c.l.b16 %v3535
  %v4147 = vunpack.c.h.b16 %v3535
  %v4148 = vunpack.c.l.b16 %v3536
  %v4149 = vunpack.c.h.b16 %v3536
  %v4150 = vunpack.c.l.b16 %v3537
  %v4151 = vunpack.c.h.b16 %v3537
  %v4152 = vunpack.c.l.b16 %v3538
  %v4153 = vunpack.c.h.b16 %v3538
  %v4154 = vunpack.c.l.b16 %v3539
  %v4155 = vunpack.c.h.b16 %v3539
  %v4156 = vunpack.c.l.b16 %v3540
  %v4157 = vunpack.c.h.b16 %v3540
  %v4158 = vunpack.c.l.b16 %v3541
  %v4159 = vunpack.c.h.b16 %v3541
  %v4160 = vunpack.c.l.b16 %v3542
  %v4161 = vunpack.c.h.b16 %v3542
  %v4162 = vunpack.c.l.b16 %v3543
  %v4163 = vunpack.c.h.b16 %v3543
  %v4164 = vunpack.c.l.b16 %v3544
  %v4165 = vunpack.c.h.b16 %v3544
  %v4166 = vunpack.c.l.b16 %v3545
  %v4167 = vunpack.c.h.b16 %v3545
  %v4168 = vunpack.c.l.b16 %v3546
  %v4169 = vunpack.c.h.b16 %v3546
  %v4170 = vunpack.c.l.b16 %v3547
  %v4171 = vunpack.c.h.b16 %v3547
  %v4172 = vunpack.c.l.b16 %v3548
  %v4173 = vunpack.c.h.b16 %v3548
  %v4174 = vunpack.c.l.b16 %v3549
  %v4175 = vunpack.c.h.b16 %v3549
  %v4176 = vunpack.c.l.b16 %v3550
  %v4177 = vunpack.c.h.b16 %v3550
  %v4178 = vunpack.c.l.b16 %v3551
  %v4179 = vunpack.c.h.b16 %v3551
  %v4180 = vunpack.c.l.b16 %v3552
  %v4181 = vunpack.c.h.b16 %v3552
  %v4182 = vunpack.c.l.b16 %v3553
  %v4183 = vunpack.c.h.b16 %v3553
  %v4184 = vunpack.c.l.b16 %v3554
  %v4185 = vunpack.c.h.b16 %v3554
  %v4186 = vunpack.c.l.b16 %v3555
  %v4187 = vunpack.c.h.b16 %v3555
  %v4188 = vunpack.c.l.b16 %v3556
  %v4189 = vunpack.c.h.b16 %v3556
  %v4190 = vunpack.c.l.b16 %v3557
  %v4191 = vunpack.c.h.b16 %v3557
  %v4192 = vunpack.c.l.b16 %v3558
  %v4193 = vunpack.c.h.b16 %v3558
  %v4194 = vunpack.c.l.b16 %v3559
  %v4195 = vunpack.c.h.b16 %v3559
  %v4196 = vunpack.c.l.b16 %v3560
  %v4197 = vunpack.c.h.b16 %v3560
  %v4198 = vunpack.c.l.b16 %v3561
  %v4199 = vunpack.c.h.b16 %v3561
  %v4200 = vunpack.c.l.b16 %v3562
  %v4201 = vunpack.c.h.b16 %v3562
  %v4202 = vunpack.c.l.b16 %v3563
  %v4203 = vunpack.c.h.b16 %v3563
  %v4204 = vunpack.c.l.b16 %v3564
  %v4205 = vunpack.c.h.b16 %v3564
  %v4206 = vunpack.c.l.b16 %v3565
  %v4207 = vunpack.c.h.b16 %v3565
  %v4208 = vunpack.c.l.b16 %v3566
  %v4209 = vunpack.c.h.b16 %v3566
  %v4210 = vunpack.c.l.b16 %v3567
  %v4211 = vunpack.c.h.b16 %v3567
  %v4212 = vunpack.c.l.b16 %v3568
  %v4213 = vunpack.c.h.b16 %v3568
  %v4214 = vunpack.c.l.b16 %v3569
  %v4215 = vunpack.c.h.b16 %v3569
  %v4216 = vunpack.c.l.b16 %v3570
  %v4217 = vunpack.c.h.b16 %v3570
  %v4218 = vunpack.c.l.b16 %v3571
  %v4219 = vunpack.c.h.b16 %v3571
  %v4220 = vunpack.c.l.b16 %v3572
  %v4221 = vunpack.c.h.b16 %v3572
  %v4222 = vunpack.c.l.b16 %v3573
  %v4223 = vunpack.c.h.b16 %v3573
  %v4224 = vunpack.c.l.b16 %v3574
  %v4225 = vunpack.c.h.b16 %v3574
  %v4226 = vunpack.c.l.b16 %v3575
  %v4227 = vunpack.c.h.b16 %v3575
  %v4228 = vunpack.c.l.b16 %v3576
  %v4229 = vunpack.c.h.b16 %v3576
  %v4230 = vunpack.c.l.b16 %v3577
  %v4231 = vunpack.c.h.b16 %v3577
  %v4232 = vunpack.c.l.b16 %v3578
  %v4233 = vunpack.c.h.b16 %v3578
  %v4234 = vunpack.c.l.b16 %v3579
  %v4235 = vunpack.c.h.b16 %v3579
  %v4236 = vunpack.c.l.b16 %v3580
  %v4237 = vunpack.c.h.b16 %v3580
  %v4238 = vunpack.c.l.b16 %v3581
  %v4239 = vunpack.c.h.b16 %v3581
  %v4240 = vunpack.c.l.b16 %v3582
  %v4241 = vunpack.c.h.b16 %v3582
  %v4242 = vunpack.c.l.b16 %v3583
  %v4243 = vunpack.c.h.b16 %v3583
  %v4244 = vunpack.c.l.b16 %v3584
  %v4245 = vunpack.c.h.b16 %v3584
  %v4246 = vunpack.c.l.b16 %v3585
  %v4247 = vunpack.c.h.b16 %v3585
  %v4248 = vunpack.c.l.b16 %v3586
  %v4249 = vunpack.c.h.b16 %v3586
  %v4250 = vunpack.c.l.b16 %v3587
  %v4251 = vunpack.c.h.b16 %v3587
  %v4252 = vunpack.c.l.b16 %v3588
  %v4253 = vunpack.c.h.b16 %v3588
  %v4254 = vunpack.c.l.b16 %v3589
  %v4255 = vunpack.c.h.b16 %v3589
  %v4256 = vunpack.c.l.b16 %v3590
  %v4257 = vunpack.c.h.b16 %v3590
  %v4258 = vunpack.c.l.b16 %v3591
  %v4259 = vunpack.c.h.b16 %v3591
  %v4260 = vunpack.c.l.b16 %v3592
  %v4261 = vunpack.c.h.b16 %v3592
  %v4262 = vunpack.c.l.b16 %v3593
  %v4263 = vunpack.c.h.b16 %v3593
  %v4264 = vunpack.c.l.b16 %v3594
  %v4265 = vunpack.c.h.b16 %v3594
  %v4266 = vunpack.c.l.b16 %v3595
  %v4267 = vunpack.c.h.b16 %v3595
  %v4268 = vunpack.c.l.b16 %v3596
  %v4269 = vunpack.c.h.b16 %v3596
  %v4270 = vunpack.c.l.b16 %v3597
  %v4271 = vunpack.c.h.b16 %v3597
  %v4272 = vunpack.c.l.b16 %v3598
  %v4273 = vunpack.c.h.b16 %v3598
  %v4274 = vunpack.c.l.b16 %v3599
  %v4275 = vunpack.c.h.b16 %v3599
  %v4276 = vunpack.c.l.b16 %v3600
  %v4277 = vunpack.c.h.b16 %v3600
  %v4278 = vunpack.c.l.b16 %v3601
  %v4279 = vunpack.c.h.b16 %v3601
  %v4280 = vunpack.c.l.b16 %v3602
  %v4281 = vunpack.c.h.b16 %v3602
  %v4282 = vunpack.c.l.b16 %v3603
  %v4283 = vunpack.c.h.b16 %v3603
  %v4284 = vunpack.c.l.b16 %v3604
  %v4285 = vunpack.c.h.b16 %v3604
  %v4286 = vunpack.c.l.b16 %v3605
  %v4287 = vunpack.c.h.b16 %v3605
  %v4288 = vunpack.c.l.b16 %v3606
  %v4289 = vunpack.c.h.b16 %v3606
  %v4290 = vunpack.c.l.b16 %v3607
  %v4291 = vunpack.c.h.b16 %v3607
  %v4292 = vunpack.c.l.b16 %v3608
  %v4293 = vunpack.c.h.b16 %v3608
  %v4294 = vunpack.c.l.b16 %v3609
  %v4295 = vunpack.c.h.b16 %v3609
  %v4296 = vunpack.c.l.b16 %v3610
  %v4297 = vunpack.c.h.b16 %v3610
  %v4298 = vunpack.c.l.b16 %v3611
  %v4299 = vunpack.c.h.b16 %v3611
  %v4300 = vunpack.c.l.b16 %v3612
  %v4301 = vunpack.c.h.b16 %v3612
  %v4302 = vunpack.c.l.b16 %v3613
  %v4303 = vunpack.c.h.b16 %v3613
  %v4304 = vunpack.c.l.b16 %v3614
  %v4305 = vunpack.c.h.b16 %v3614
  %v4306 = vunpack.c.l.b16 %v3615
  %v4307 = vunpack.c.h.b16 %v3615
  %v4308 = vunpack.c.l.b16 %v3616
  %v4309 = vunpack.c.h.b16 %v3616
  %v4310 = vunpack.c.l.b16 %v3617
  %v4311 = vunpack.c.h.b16 %v3617
  %v4312 = vunpack.c.l.b16 %v3618
  %v4313 = vunpack.c.h.b16 %v3618
  %v4314 = vunpack.c.l.b16 %v3619
  %v4315 = vunpack.c.h.b16 %v3619
  %v4316 = vunpack.c.l.b16 %v3620
  %v4317 = vunpack.c.h.b16 %v3620
  %v4318 = vunpack.c.l.b16 %v3621
  %v4319 = vunpack.c.h.b16 %v3621
  %v4320 = vunpack.c.l.b16 %v3622
  %v4321 = vunpack.c.h.b16 %v3622
  %v4322 = vunpack.c.l.b16 %v3623
  %v4323 = vunpack.c.h.b16 %v3623
  %v4324 = vunpack.c.l.b16 %v3624
  %v4325 = vunpack.c.h.b16 %v3624
  %v4326 = vunpack.c.l.b16 %v3625
  %v4327 = vunpack.c.h.b16 %v3625
  %v4328 = vunpack.c.l.b16 %v3626
  %v4329 = vunpack.c.h.b16 %v3626
  %v4330 = vunpack.c.l.b16 %v3627
  %v4331 = vunpack.c.h.b16 %v3627
  %v4332 = vunpack.c.l.b16 %v3628
  %v4333 = vunpack.c.h.b16 %v3628
  %v4334 = vunpack.c.l.b16 %v3629
  %v4335 = vunpack.c.h.b16 %v3629
  %v4336 = vunpack.c.l.b16 %v3630
  %v4337 = vunpack.c.h.b16 %v3630
  %v4338 = vunpack.c.l.b16 %v3631
  %v4339 = vunpack.c.h.b16 %v3631
  %v4340 = vunpack.c.l.b16 %v3632
  %v4341 = vunpack.c.h.b16 %v3632
  %v4342 = vunpack.c.l.b16 %v3633
  %v4343 = vunpack.c.h.b16 %v3633
  %v4344 = vunpack.c.l.b16 %v3634
  %v4345 = vunpack.c.h.b16 %v3634
  %v4346 = vunpack.c.l.b16 %v3635
  %v4347 = vunpack.c.h.b16 %v3635
  %v4348 = vunpack.c.l.b16 %v3636
  %v4349 = vunpack.c.h.b16 %v3636
  %v4350 = vunpack.c.l.b16 %v3637
  %v4351 = vunpack.c.h.b16 %v3637
  %v4352 = vunpack.c.l.b16 %v3638
  %v4353 = vunpack.c.h.b16 %v3638
  %v4354 = vunpack.c.l.b16 %v3639
  %v4355 = vunpack.c.h.b16 %v3639
  %v4356 = vunpack.c.l.b16 %v3640
  %v4357 = vunpack.c.h.b16 %v3640
  %v4358 = vunpack.c.l.b16 %v3641
  %v4359 = vunpack.c.h.b16 %v3641
  %v4360 = vunpack.c.l.b16 %v3642
  %v4361 = vunpack.c.h.b16 %v3642
  %v4362 = vunpack.c.l.b16 %v3643
  %v4363 = vunpack.c.h.b16 %v3643
  %v4364 = vunpack.c.l.b16 %v3644
  %v4365 = vunpack.c.h.b16 %v3644
  %v4366 = vunpack.c.l.b16 %v3645
  %v4367 = vunpack.c.h.b16 %v3645
  %v4368 = vunpack.c.l.b16 %v3646
  %v4369 = vunpack.c.h.b16 %v3646
  %v4370 = vunpack.c.l.b16 %v3647
  %v4371 = vunpack.c.h.b16 %v3647
  %v4372 = vunpack.c.l.b16 %v3648
  %v4373 = vunpack.c.h.b16 %v3648
  %v4374 = vunpack.c.l.b16 %v3649
  %v4375 = vunpack.c.h.b16 %v3649
  %v4376 = vunpack.c.l.b16 %v3650
  %v4377 = vunpack.c.h.b16 %v3650
  %v4378 = vunpack.c.l.b16 %v3651
  %v4379 = vunpack.c.h.b16 %v3651
  %v4380 = vunpack.c.l.b16 %v3652
  %v4381 = vunpack.c.h.b16 %v3652
  %v4382 = vunpack.c.l.b16 %v3653
  %v4383 = vunpack.c.h.b16 %v3653
  %v4384 = vunpack.c.l.b16 %v3654
  %v4385 = vunpack.c.h.b16 %v3654
  %v4386 = vunpack.c.l.b16 %v3655
  %v4387 = vunpack.c.h.b16 %v3655
  %v4388 = vunpack.c.l.b16 %v3656
  %v4389 = vunpack.c.h.b16 %v3656
  %v4390 = vunpack.c.l.b16 %v3657
  %v4391 = vunpack.c.h.b16 %v3657
  %v4392 = vunpack.c.l.b16 %v3658
  %v4393 = vunpack.c.h.b16 %v3658
  %v4394 = vunpack.c.l.b16 %v3659
  %v4395 = vunpack.c.h.b16 %v3659
  %v4396 = vunpack.c.l.b16 %v3660
  %v4397 = vunpack.c.h.b16 %v3660
  %v4398 = vunpack.c.l.b16 %v3661
  %v4399 = vunpack.c.h.b16 %v3661
  %v4400 = vunpack.c.l.b16 %v3662
  %v4401 = vunpack.c.h.b16 %v3662
  %v4402 = vunpack.c.l.b16 %v3663
  %v4403 = vunpack.c.h.b16 %v3663
  %v4404 = vunpack.c.l.b16 %v3664
  %v4405 = vunpack.c.h.b16 %v3664
  %v4406 = vunpack.c.l.b16 %v3665
  %v4407 = vunpack.c.h.b16 %v3665
  %v4408 = vunpack.c.l.b16 %v3666
  %v4409 = vunpack.c.h.b16 %v3666
  %v4410 = vunpack.c.l.b16 %v3667
  %v4411 = vunpack.c.h.b16 %v3667
  %v4412 = vunpack.c.l.b16 %v3668
  %v4413 = vunpack.c.h.b16 %v3668
  %v4414 = vunpack.c.l.b16 %v3669
  %v4415 = vunpack.c.h.b16 %v3669
  %v4416 = vunpack.c.l.b16 %v3670
  %v4417 = vunpack.c.h.b16 %v3670
  %v4418 = vunpack.c.l.b16 %v3671
  %v4419 = vunpack.c.h.b16 %v3671
  %v4420 = vunpack.c.l.b16 %v3672
  %v4421 = vunpack.c.h.b16 %v3672
  %v4422 = vunpack.c.l.b16 %v3673
  %v4423 = vunpack.c.h.b16 %v3673
  %v4424 = vunpack.c.l.b16 %v3674
  %v4425 = vunpack.c.h.b16 %v3674
  %v4426 = vunpack.c.l.b16 %v3675
  %v4427 = vunpack.c.h.b16 %v3675
  %v4428 = vunpack.c.l.b16 %v3676
  %v4429 = vunpack.c.h.b16 %v3676
  %v4430 = vunpack.c.l.b16 %v3677
  %v4431 = vunpack.c.h.b16 %v3677
  %v4432 = vunpack.c.l.b16 %v3678
  %v4433 = vunpack.c.h.b16 %v3678
  %v4434 = vunpack.c.l.b16 %v3679
  %v4435 = vunpack.c.h.b16 %v3679
  %v4436 = vunpack.c.l.b16 %v3680
  %v4437 = vunpack.c.h.b16 %v3680
  %v4438 = vunpack.c.l.b16 %v3681
  %v4439 = vunpack.c.h.b16 %v3681
  %v4440 = vunpack.c.l.b16 %v3682
  %v4441 = vunpack.c.h.b16 %v3682
  %v4442 = vunpack.c.l.b16 %v3683
  %v4443 = vunpack.c.h.b16 %v3683
  %v4444 = vunpack.c.l.b16 %v3684
  %v4445 = vunpack.c.h.b16 %v3684
  %v4446 = vunpack.c.l.b16 %v3685
  %v4447 = vunpack.c.h.b16 %v3685
  %v4448 = vunpack.c.l.b16 %v3686
  %v4449 = vunpack.c.h.b16 %v3686
  %v4450 = vunpack.c.l.b16 %v3687
  %v4451 = vunpack.c.h.b16 %v3687
  %v4452 = vunpack.c.l.b16 %v3688
  %v4453 = vunpack.c.h.b16 %v3688
  %v4454 = vunpack.c.l.b16 %v3689
  %v4455 = vunpack.c.h.b16 %v3689
  %v4456 = vunpack.c.l.b16 %v3690
  %v4457 = vunpack.c.h.b16 %v3690
  %v4458 = vunpack.c.l.b16 %v3691
  %v4459 = vunpack.c.h.b16 %v3691
  %v4460 = vunpack.c.l.b16 %v3692
  %v4461 = vunpack.c.h.b16 %v3692
  %v4462 = vunpack.c.l.b16 %v3693
  %v4463 = vunpack.c.h.b16 %v3693
  %v4464 = vunpack.c.l.b16 %v3694
  %v4465 = vunpack.c.h.b16 %v3694
  %v4466 = vunpack.c.l.b16 %v3695
  %v4467 = vunpack.c.h.b16 %v3695
  %v4468 = vunpack.c.l.b16 %v3696
  %v4469 = vunpack.c.h.b16 %v3696
  %v4470 = vunpack.c.l.b16 %v3697
  %v4471 = vunpack.c.h.b16 %v3697
  %v4472 = vunpack.c.l.b16 %v3698
  %v4473 = vunpack.c.h.b16 %v3698
  %v4474 = vunpack.c.l.b16 %v3699
  %v4475 = vunpack.c.h.b16 %v3699
  %v4476 = vunpack.c.l.b16 %v3700
  %v4477 = vunpack.c.h.b16 %v3700
  %v4478 = vunpack.c.l.b16 %v3701
  %v4479 = vunpack.c.h.b16 %v3701
  %v4480 = vunpack.c.l.b16 %v3702
  %v4481 = vunpack.c.h.b16 %v3702
  %v4482 = vunpack.c.l.b16 %v3703
  %v4483 = vunpack.c.h.b16 %v3703
  %v4484 = vunpack.c.l.b16 %v3704
  %v4485 = vunpack.c.h.b16 %v3704
  %v4486 = vunpack.c.l.b16 %v3705
  %v4487 = vunpack.c.h.b16 %v3705
  %v4488 = vunpack.c.l.b16 %v3706
  %v4489 = vunpack.c.h.b16 %v3706
  %v4490 = vunpack.c.l.b16 %v3707
  %v4491 = vunpack.c.h.b16 %v3707
  %v4492 = vunpack.c.l.b16 %v3708
  %v4493 = vunpack.c.h.b16 %v3708
  %v4494 = vunpack.c.l.b16 %v3709
  %v4495 = vunpack.c.h.b16 %v3709
  %v4496 = vpack.c.b16 %v3992, %v3984
  %v4497 = vpack.c.b16 %v3993, %v3985
  %v4498 = vpack.c.b16 %v3994, %v3986
  %v4499 = vpack.c.b16 %v3995, %v3987
  %v4500 = vpack.c.b16 %v3996, %v3988
  %v4501 = vpack.c.b16 %v3997, %v3989
  %v4502 = vpack.c.b16 %v3998, %v3990
  %v4503 = vpack.c.b16 %v3999, %v3991
  %v4504 = vpack.c.b16 %v4008, %v4000
  %v4505 = vpack.c.b16 %v4009, %v4001
  %v4506 = vpack.c.b16 %v4010, %v4002
  %v4507 = vpack.c.b16 %v4011, %v4003
  %v4508 = vpack.c.b16 %v4012, %v4004
  %v4509 = vpack.c.b16 %v4013, %v4005
  %v4510 = vpack.c.b16 %v4014, %v4006
  %v4511 = vpack.c.b16 %v4015, %v4007
  %v4512 = vpack.c.b16 %v4024, %v4016
  %v4513 = vpack.c.b16 %v4025, %v4017
  %v4514 = vpack.c.b16 %v4026, %v4018
  %v4515 = vpack.c.b16 %v4027, %v4019
  %v4516 = vpack.c.b16 %v4028, %v4020
  %v4517 = vpack.c.b16 %v4029, %v4021
  %v4518 = vpack.c.b16 %v4030, %v4022
  %v4519 = vpack.c.b16 %v4031, %v4023
  %v4520 = vpack.c.b16 %v4040, %v4032
  %v4521 = vpack.c.b16 %v4041, %v4033
  %v4522 = vpack.c.b16 %v4042, %v4034
  %v4523 = vpack.c.b16 %v4043, %v4035
  %v4524 = vpack.c.b16 %v4044, %v4036
  %v4525 = vpack.c.b16 %v4045, %v4037
  %v4526 = vpack.c.b16 %v4046, %v4038
  %v4527 = vpack.c.b16 %v4047, %v4039
  %v4528 = vpack.c.b16 %v4056, %v4048
  %v4529 = vpack.c.b16 %v4057, %v4049
  %v4530 = vpack.c.b16 %v4058, %v4050
  %v4531 = vpack.c.b16 %v4059, %v4051
  %v4532 = vpack.c.b16 %v4060, %v4052
  %v4533 = vpack.c.b16 %v4061, %v4053
  %v4534 = vpack.c.b16 %v4062, %v4054
  %v4535 = vpack.c.b16 %v4063, %v4055
  %v4536 = vpack.c.b16 %v4072, %v4064
  %v4537 = vpack.c.b16 %v4073, %v4065
  %v4538 = vpack.c.b16 %v4074, %v4066
  %v4539 = vpack.c.b16 %v4075, %v4067
  %v4540 = vpack.c.b16 %v4076, %v4068
  %v4541 = vpack.c.b16 %v4077, %v4069
  %v4542 = vpack.c.b16 %v4078, %v4070
  %v4543 = vpack.c.b16 %v4079, %v4071
  %v4544 = vpack.c.b16 %v4088, %v4080
  %v4545 = vpack.c.b16 %v4089, %v4081
  %v4546 = vpack.c.b16 %v4090, %v4082
  %v4547 = vpack.c.b16 %v4091, %v4083
  %v4548 = vpack.c.b16 %v4092, %v4084
  %v4549 = vpack.c.b16 %v4093, %v4085
  %v4550 = vpack.c.b16 %v4094, %v4086
  %v4551 = vpack.c.b16 %v4095, %v4087
  %v4552 = vpack.c.b16 %v4104, %v4096
  %v4553 = vpack.c.b16 %v4105, %v4097
  %v4554 = vpack.c.b16 %v4106, %v4098
  %v4555 = vpack.c.b16 %v4107, %v4099
  %v4556 = vpack.c.b16 %v4108, %v4100
  %v4557 = vpack.c.b16 %v4109, %v4101
  %v4558 = vpack.c.b16 %v4110, %v4102
  %v4559 = vpack.c.b16 %v4111, %v4103
  %v4560 = vpack.c.b16 %v4120, %v4112
  %v4561 = vpack.c.b16 %v4121, %v4113
  %v4562 = vpack.c.b16 %v4122, %v4114
  %v4563 = vpack.c.b16 %v4123, %v4115
  %v4564 = vpack.c.b16 %v4124, %v4116
  %v4565 = vpack.c.b16 %v4125, %v4117
  %v4566 = vpack.c.b16 %v4126, %v4118
  %v4567 = vpack.c.b16 %v4127, %v4119
  %v4568 = vpack.c.b16 %v4136, %v4128
  %v4569 = vpack.c.b16 %v4137, %v4129
  %v4570 = vpack.c.b16 %v4138, %v4130
  %v4571 = vpack.c.b16 %v4139, %v4131
  %v4572 = vpack.c.b16 %v4140, %v4132
  %v4573 = vpack.c.b16 %v4141, %v4133
  %v4574 = vpack.c.b16 %v4142, %v4134
  %v4575 = vpack.c.b16 %v4143, %v4135
  %v4576 = vpack.c.b16 %v4152, %v4144
  %v4577 = vpack.c.b16 %v4153, %v4145
  %v4578 = vpack.c.b16 %v4154, %v4146
  %v4579 = vpack.c.b16 %v4155, %v4147
  %v4580 = vpack.c.b16 %v4156, %v4148
  %v4581 = vpack.c.b16 %v4157, %v4149
  %v4582 = vpack.c.b16 %v4158, %v4150
  %v4583 = vpack.c.b16 %v4159, %v4151
  %v4584 = vpack.c.b16 %v4168, %v4160
  %v4585 = vpack.c.b16 %v4169, %v4161
  %v4586 = vpack.c.b16 %v4170, %v4162
  %v4587 = vpack.c.b16 %v4171, %v4163
  %v4588 = vpack.c.b16 %v4172, %v4164
  %v4589 = vpack.c.b16 %v4173, %v4165
  %v4590 = vpack.c.b16 %v4174, %v4166
  %v4591 = vpack.c.b16 %v4175, %v4167
  %v4592 = vpack.c.b16 %v4184, %v4176
  %v4593 = vpack.c.b16 %v4185, %v4177
  %v4594 = vpack.c.b16 %v4186, %v4178
  %v4595 = vpack.c.b16 %v4187, %v4179
  %v4596 = vpack.c.b16 %v4188, %v4180
  %v4597 = vpack.c.b16 %v4189, %v4181
  %v4598 = vpack.c.b16 %v4190, %v4182
  %v4599 = vpack.c.b16 %v4191, %v4183
  %v4600 = vpack.c.b16 %v4200, %v4192
  %v4601 = vpack.c.b16 %v4201, %v4193
  %v4602 = vpack.c.b16 %v4202, %v4194
  %v4603 = vpack.c.b16 %v4203, %v4195
  %v4604 = vpack.c.b16 %v4204, %v4196
  %v4605 = vpack.c.b16 %v4205, %v4197
  %v4606 = vpack.c.b16 %v4206, %v4198
  %v4607 = vpack.c.b16 %v4207, %v4199
  %v4608 = vpack.c.b16 %v4216, %v4208
  %v4609 = vpack.c.b16 %v4217, %v4209
  %v4610 = vpack.c.b16 %v4218, %v4210
  %v4611 = vpack.c.b16 %v4219, %v4211
  %v4612 = vpack.c.b16 %v4220, %v4212
  %v4613 = vpack.c.b16 %v4221, %v4213
  %v4614 = vpack.c.b16 %v4222, %v4214
  %v4615 = vpack.c.b16 %v4223, %v4215
  %v4616 = vpack.c.b16 %v4232, %v4224
  %v4617 = vpack.c.b16 %v4233, %v4225
  %v4618 = vpack.c.b16 %v4234, %v4226
  %v4619 = vpack.c.b16 %v4235, %v4227
  %v4620 = vpack.c.b16 %v4236, %v4228
  %v4621 = vpack.c.b16 %v4237, %v4229
  %v4622 = vpack.c.b16 %v4238, %v4230
  %v4623 = vpack.c.b16 %v4239, %v4231
  %v4624 = vpack.c.b16 %v4248, %v4240
  %v4625 = vpack.c.b16 %v4249, %v4241
  %v4626 = vpack.c.b16 %v4250, %v4242
  %v4627 = vpack.c.b16 %v4251, %v4243
  %v4628 = vpack.c.b16 %v4252, %v4244
  %v4629 = vpack.c.b16 %v4253, %v4245
  %v4630 = vpack.c.b16 %v4254, %v4246
  %v4631 = vpack.c.b16 %v4255, %v4247
  %v4632 = vpack.c.b16 %v4264, %v4256
  %v4633 = vpack.c.b16 %v4265, %v4257
  %v4634 = vpack.c.b16 %v4266, %v4258
  %v4635 = vpack.c.b16 %v4267, %v4259
  %v4636 = vpack.c.b16 %v4268, %v4260
  %v4637 = vpack.c.b16 %v4269, %v4261
  %v4638 = vpack.c.b16 %v4270, %v4262
  %v4639 = vpack.c.b16 %v4271, %v4263
  %v4640 = vpack.c.b16 %v4280, %v4272
  %v4641 = vpack.c.b16 %v4281, %v4273
  %v4642 = vpack.c.b16 %v4282, %v4274
  %v4643 = vpack.c.b16 %v4283, %v4275
  %v4644 = vpack.c.b16 %v4284, %v4276
  %v4645 = vpack.c.b16 %v4285, %v4277
  %v4646 = vpack.c.b16 %v4286, %v4278
  %v4647 = vpack.c.b16 %v4287, %v4279
  %v4648 = vpack.c.b16 %v4296, %v4288
  %v4649 = vpack.c.b16 %v4297, %v4289
  %v4650 = vpack.c.b16 %v4298, %v4290
  %v4651 = vpack.c.b16 %v4299, %v4291
  %v4652 = vpack.c.b16 %v4300, %v4292
  %v4653 = vpack.c.b16 %v4301, %v4293
  %v4654 = vpack.c.b16 %v4302, %v4294
  %v4655 = vpack.c.b16 %v4303, %v4295
  %v4656 = vpack.c.b16 %v4312, %v4304
  %v4657 = vpack.c.b16 %v4313, %v4305
  %v4658 = vpack.c.b16 %v4314, %v4306
  %v4659 = vpack.c.b16 %v4315, %v4307
  %v4660 = vpack.c.b16 %v4316, %v4308
  %v4661 = vpack.c.b16 %v4317, %v4309
  %v4662 = vpack.c.b16 %v4318, %v4310
  %v4663 = vpack.c.b16 %v4319, %v4311
  %v4664 = vpack.c.b16 %v4328, %v4320
  %v4665 = vpack.c.b16 %v4329, %v4321
  %v4666 = vpack.c.b16 %v4330, %v4322
  %v4667 = vpack.c.b16 %v4331, %v4323
  %v4668 = vpack.c.b16 %v4332, %v4324
  %v4669 = vpack.c.b16 %v4333, %v4325
  %v4670 = vpack.c.b16 %v4334, %v4326
  %v4671 = vpack.c.b16 %v4335, %v4327
  %v4672 = vpack.c.b16 %v4344, %v4336
  %v4673 = vpack.c.b16 %v4345, %v4337
  %v4674 = vpack.c.b16 %v4346, %v4338
  %v4675 = vpack.c.b16 %v4347, %v4339
  %v4676 = vpack.c.b16 %v4348, %v4340
  %v4677 = vpack.c.b16 %v4349, %v4341
  %v4678 = vpack.c.b16 %v4350, %v4342
  %v4679 = vpack.c.b16 %v4351, %v4343
  %v4680 = vpack.c.b16 %v4360, %v4352
  %v4681 = vpack.c.b16 %v4361, %v4353
  %v4682 = vpack.c.b16 %v4362, %v4354
  %v4683 = vpack.c.b16 %v4363, %v4355
  %v4684 = vpack.c.b16 %v4364, %v4356
  %v4685 = vpack.c.b16 %v4365, %v4357
  %v4686 = vpack.c.b16 %v4366, %v4358
  %v4687 = vpack.c.b16 %v4367, %v4359
  %v4688 = vpack.c.b16 %v4376, %v4368
  %v4689 = vpack.c.b16 %v4377, %v4369
  %v4690 = vpack.c.b16 %v4378, %v4370
  %v4691 = vpack.c.b16 %v4379, %v4371
  %v4692 = vpack.c.b16 %v4380, %v4372
  %v4693 = vpack.c.b16 %v4381, %v4373
  %v4694 = vpack.c.b16 %v4382, %v4374
  %v4695 = vpack.c.b16 %v4383, %v4375
  %v4696 = vpack.c.b16 %v4392, %v4384
  %v4697 = vpack.c.b16 %v4393, %v4385
  %v4698 = vpack.c.b16 %v4394, %v4386
  %v4699 = vpack.c.b16 %v4395, %v4387
  %v4700 = vpack.c.b16 %v4396, %v4388
  %v4701 = vpack.c.b16 %v4397, %v4389
  %v4702 = vpack.c.b16 %v4398, %v4390
  %v4703 = vpack.c.b16 %v4399, %v4391
  %v4704 = vpack.c.b16 %v4408, %v4400
  %v4705 = vpack.c.b16 %v4409, %v4401
  %v4706 = vpack.c.b16 %v4410, %v4402
  %v4707 = vpack.c.b16 %v4411, %v4403
  %v4708 = vpack.c.b16 %v4412, %v4404
  %v4709 = vpack.c.b16 %v4413, %v4405
  %v4710 = vpack.c.b16 %v4414, %v4406
  %v4711 = vpack.c.b16 %v4415, %v4407
  %v4712 = vpack.c.b16 %v4424, %v4416
  %v4713 = vpack.c.b16 %v4425, %v4417
  %v4714 = vpack.c.b16 %v4426, %v4418
  %v4715 = vpack.c.b16 %v4427, %v4419
  %v4716 = vpack.c.b16 %v4428, %v4420
  %v4717 = vpack.c.b16 %v4429, %v4421
  %v4718 = vpack.c.b16 %v4430, %v4422
  %v4719 = vpack.c.b16 %v4431, %v4423
  %v4720 = vpack.c.b16 %v4440, %v4432
  %v4721 = vpack.c.b16 %v4441, %v4433
  %v4722 = vpack.c.b16 %v4442, %v4434
  %v4723 = vpack.c.b16 %v4443, %v4435
  %v4724 = vpack.c.b16 %v4444, %v4436
  %v4725 = vpack.c.b16 %v4445, %v4437
  %v4726 = vpack.c.b16 %v4446, %v4438
  %v4727 = vpack.c.b16 %v4447, %v4439
  %v4728 = vpack.c.b16 %v4456, %v4448
  %v4729 = vpack.c.b16 %v4457, %v4449
  %v4730 = vpack.c.b16 %v4458, %v4450
  %v4731 = vpack.c.b16 %v4459, %v4451
  %v4732 = vpack.c.b16 %v4460, %v4452
  %v4733 = vpack.c.b16 %v4461, %v4453
  %v4734 = vpack.c.b16 %v4462, %v4454
  %v4735 = vpack.c.b16 %v4463, %v4455
  %v4736 = vpack.c.b16 %v4472, %v4464
  %v4737 = vpack.c.b16 %v4473, %v4465
  %v4738 = vpack.c.b16 %v4474, %v4466
  %v4739 = vpack.c.b16 %v4475, %v4467
  %v4740 = vpack.c.b16 %v4476, %v4468
  %v4741 = vpack.c.b16 %v4477, %v4469
  %v4742 = vpack.c.b16 %v4478, %v4470
  %v4743 = vpack.c.b16 %v4479, %v4471
  %v4744 = vpack.c.b16 %v4488, %v4480
  %v4745 = vpack.c.b16 %v4489, %v4481
  %v4746 = vpack.c.b16 %v4490, %v4482
  %v4747 = vpack.c.b16 %v4491, %v4483
  %v4748 = vpack.c.b16 %v4492, %v4484
  %v4749 = vpack.c.b16 %v4493, %v4485
  %v4750 = vpack.c.b16 %v4494, %v4486
  %v4751 = vpack.c.b16 %v4495, %v4487
  %5008 = vmatpush.bf16.msra.mxu0 %v4552
  %5009 = vmatpush.bf16.msra.mxu0 %v4544
  %5010 = vmatpush.bf16.msra.mxu0 %v4536
  %5011 = vmatpush.bf16.msra.mxu0 %v4528
  %5012 = vmatpush.bf16.msra.mxu0 %v4520
  %5013 = vmatpush.bf16.msra.mxu0 %v4512
  %5014 = vmatpush.bf16.msra.mxu0 %v4504
  %5015 = vmatpush.bf16.msra.mxu0 %v4496
  %5016 = vmatmul.bf16.gmra.mxu0 %v3450
  %v5017 = vpop.f32.mrf.mxu0
  %v5018 = vadd.f32 %v3712, %v5017
  %v5019 = vpop.f32.mrf.mxu0
  %5020 = vdwg.mxu0
  %5021 = vmatpush.bf16.msra.mxu0 %v4616
  %5022 = vmatpush.bf16.msra.mxu0 %v4608
  %5023 = vmatpush.bf16.msra.mxu0 %v4600
  %5024 = vmatpush.bf16.msra.mxu0 %v4592
  %5025 = vmatpush.bf16.msra.mxu0 %v4584
  %5026 = vmatpush.bf16.msra.mxu0 %v4576
  %5027 = vmatpush.bf16.msra.mxu0 %v4568
  %5028 = vmatpush.bf16.msra.mxu0 %v4560
  %5029 = vmatmul.bf16.gmra.mxu0 %v3451
  %v5030 = vpop.f32.mrf.mxu0
  %v5031 = vadd.f32 %v5018, %v5030
  %v5032 = vpop.f32.mrf.mxu0
  %5033 = vdwg.mxu0
  %5034 = vmatpush.bf16.msra.mxu0 %v4680
  %5035 = vmatpush.bf16.msra.mxu0 %v4672
  %5036 = vmatpush.bf16.msra.mxu0 %v4664
  %5037 = vmatpush.bf16.msra.mxu0 %v4656
  %5038 = vmatpush.bf16.msra.mxu0 %v4648
  %5039 = vmatpush.bf16.msra.mxu0 %v4640
  %5040 = vmatpush.bf16.msra.mxu0 %v4632
  %5041 = vmatpush.bf16.msra.mxu0 %v4624
  %5042 = vmatmul.bf16.gmra.mxu0 %v3452
  %v5043 = vpop.f32.mrf.mxu0
  %v5044 = vadd.f32 %v5031, %v5043
  %v5045 = vpop.f32.mrf.mxu0
  %5046 = vdwg.mxu0
  %5047 = vmatpush.bf16.msra.mxu0 %v4744
  %5048 = vmatpush.bf16.msra.mxu0 %v4736
  %5049 = vmatpush.bf16.msra.mxu0 %v4728
  %5050 = vmatpush.bf16.msra.mxu0 %v4720
  %5051 = vmatpush.bf16.msra.mxu0 %v4712
  %5052 = vmatpush.bf16.msra.mxu0 %v4704
  %5053 = vmatpush.bf16.msra.mxu0 %v4696
  %5054 = vmatpush.bf16.msra.mxu0 %v4688
  %5055 = vmatmul.bf16.gmra.mxu0 %v3453
  %v5056 = vpop.f32.mrf.mxu0
  %v5057 = vadd.f32 %v5044, %v5056
  %v5058 = vpop.f32.mrf.mxu0
  %5059 = vdwg.mxu0
  %5060 = vmatpush.bf16.msra.mxu0 %v4553
  %5061 = vmatpush.bf16.msra.mxu0 %v4545
  %5062 = vmatpush.bf16.msra.mxu0 %v4537
  %5063 = vmatpush.bf16.msra.mxu0 %v4529
  %5064 = vmatpush.bf16.msra.mxu0 %v4521
  %5065 = vmatpush.bf16.msra.mxu0 %v4513
  %5066 = vmatpush.bf16.msra.mxu0 %v4505
  %5067 = vmatpush.bf16.msra.mxu0 %v4497
  %5068 = vmatmul.bf16.gmra.mxu0 %v3450
  %v5069 = vpop.f32.mrf.mxu0
  %v5070 = vadd.f32 %v3713, %v5069
  %v5071 = vpop.f32.mrf.mxu0
  %5072 = vdwg.mxu0
  %5073 = vmatpush.bf16.msra.mxu0 %v4617
  %5074 = vmatpush.bf16.msra.mxu0 %v4609
  %5075 = vmatpush.bf16.msra.mxu0 %v4601
  %5076 = vmatpush.bf16.msra.mxu0 %v4593
  %5077 = vmatpush.bf16.msra.mxu0 %v4585
  %5078 = vmatpush.bf16.msra.mxu0 %v4577
  %5079 = vmatpush.bf16.msra.mxu0 %v4569
  %5080 = vmatpush.bf16.msra.mxu0 %v4561
  %5081 = vmatmul.bf16.gmra.mxu0 %v3451
  %v5082 = vpop.f32.mrf.mxu0
  %v5083 = vadd.f32 %v5070, %v5082
  %v5084 = vpop.f32.mrf.mxu0
  %5085 = vdwg.mxu0
  %5086 = vmatpush.bf16.msra.mxu0 %v4681
  %5087 = vmatpush.bf16.msra.mxu0 %v4673
  %5088 = vmatpush.bf16.msra.mxu0 %v4665
  %5089 = vmatpush.bf16.msra.mxu0 %v4657
  %5090 = vmatpush.bf16.msra.mxu0 %v4649
  %5091 = vmatpush.bf16.msra.mxu0 %v4641
  %5092 = vmatpush.bf16.msra.mxu0 %v4633
  %5093 = vmatpush.bf16.msra.mxu0 %v4625
  %5094 = vmatmul.bf16.gmra.mxu0 %v3452
  %v5095 = vpop.f32.mrf.mxu0
  %v5096 = vadd.f32 %v5083, %v5095
  %v5097 = vpop.f32.mrf.mxu0
  %5098 = vdwg.mxu0
  %5099 = vmatpush.bf16.msra.mxu0 %v4745
  %5100 = vmatpush.bf16.msra.mxu0 %v4737
  %5101 = vmatpush.bf16.msra.mxu0 %v4729
  %5102 = vmatpush.bf16.msra.mxu0 %v4721
  %5103 = vmatpush.bf16.msra.mxu0 %v4713
  %5104 = vmatpush.bf16.msra.mxu0 %v4705
  %5105 = vmatpush.bf16.msra.mxu0 %v4697
  %5106 = vmatpush.bf16.msra.mxu0 %v4689
  %5107 = vmatmul.bf16.gmra.mxu0 %v3453
  %v5108 = vpop.f32.mrf.mxu0
  %v5109 = vadd.f32 %v5096, %v5108
  %v5110 = vpop.f32.mrf.mxu0
  %5111 = vdwg.mxu0
  %5112 = vmatpush.bf16.msra.mxu0 %v4554
  %5113 = vmatpush.bf16.msra.mxu0 %v4546
  %5114 = vmatpush.bf16.msra.mxu0 %v4538
  %5115 = vmatpush.bf16.msra.mxu0 %v4530
  %5116 = vmatpush.bf16.msra.mxu0 %v4522
  %5117 = vmatpush.bf16.msra.mxu0 %v4514
  %5118 = vmatpush.bf16.msra.mxu0 %v4506
  %5119 = vmatpush.bf16.msra.mxu0 %v4498
  %5120 = vmatmul.bf16.gmra.mxu0 %v3450
  %v5121 = vpop.f32.mrf.mxu0
  %v5122 = vadd.f32 %v3714, %v5121
  %v5123 = vpop.f32.mrf.mxu0
  %5124 = vdwg.mxu0
  %5125 = vmatpush.bf16.msra.mxu0 %v4618
  %5126 = vmatpush.bf16.msra.mxu0 %v4610
  %5127 = vmatpush.bf16.msra.mxu0 %v4602
  %5128 = vmatpush.bf16.msra.mxu0 %v4594
  %5129 = vmatpush.bf16.msra.mxu0 %v4586
  %5130 = vmatpush.bf16.msra.mxu0 %v4578
  %5131 = vmatpush.bf16.msra.mxu0 %v4570
  %5132 = vmatpush.bf16.msra.mxu0 %v4562
  %5133 = vmatmul.bf16.gmra.mxu0 %v3451
  %v5134 = vpop.f32.mrf.mxu0
  %v5135 = vadd.f32 %v5122, %v5134
  %v5136 = vpop.f32.mrf.mxu0
  %5137 = vdwg.mxu0
  %5138 = vmatpush.bf16.msra.mxu0 %v4682
  %5139 = vmatpush.bf16.msra.mxu0 %v4674
  %5140 = vmatpush.bf16.msra.mxu0 %v4666
  %5141 = vmatpush.bf16.msra.mxu0 %v4658
  %5142 = vmatpush.bf16.msra.mxu0 %v4650
  %5143 = vmatpush.bf16.msra.mxu0 %v4642
  %5144 = vmatpush.bf16.msra.mxu0 %v4634
  %5145 = vmatpush.bf16.msra.mxu0 %v4626
  %5146 = vmatmul.bf16.gmra.mxu0 %v3452
  %v5147 = vpop.f32.mrf.mxu0
  %v5148 = vadd.f32 %v5135, %v5147
  %v5149 = vpop.f32.mrf.mxu0
  %5150 = vdwg.mxu0
  %5151 = vmatpush.bf16.msra.mxu0 %v4746
  %5152 = vmatpush.bf16.msra.mxu0 %v4738
  %5153 = vmatpush.bf16.msra.mxu0 %v4730
  %5154 = vmatpush.bf16.msra.mxu0 %v4722
  %5155 = vmatpush.bf16.msra.mxu0 %v4714
  %5156 = vmatpush.bf16.msra.mxu0 %v4706
  %5157 = vmatpush.bf16.msra.mxu0 %v4698
  %5158 = vmatpush.bf16.msra.mxu0 %v4690
  %5159 = vmatmul.bf16.gmra.mxu0 %v3453
  %v5160 = vpop.f32.mrf.mxu0
  %v5161 = vadd.f32 %v5148, %v5160
  %v5162 = vpop.f32.mrf.mxu0
  %5163 = vdwg.mxu0
  %5164 = vmatpush.bf16.msra.mxu0 %v4555
  %5165 = vmatpush.bf16.msra.mxu0 %v4547
  %5166 = vmatpush.bf16.msra.mxu0 %v4539
  %5167 = vmatpush.bf16.msra.mxu0 %v4531
  %5168 = vmatpush.bf16.msra.mxu0 %v4523
  %5169 = vmatpush.bf16.msra.mxu0 %v4515
  %5170 = vmatpush.bf16.msra.mxu0 %v4507
  %5171 = vmatpush.bf16.msra.mxu0 %v4499
  %5172 = vmatmul.bf16.gmra.mxu0 %v3450
  %v5173 = vpop.f32.mrf.mxu0
  %v5174 = vadd.f32 %v3715, %v5173
  %v5175 = vpop.f32.mrf.mxu0
  %5176 = vdwg.mxu0
  %5177 = vmatpush.bf16.msra.mxu0 %v4619
  %5178 = vmatpush.bf16.msra.mxu0 %v4611
  %5179 = vmatpush.bf16.msra.mxu0 %v4603
  %5180 = vmatpush.bf16.msra.mxu0 %v4595
  %5181 = vmatpush.bf16.msra.mxu0 %v4587
  %5182 = vmatpush.bf16.msra.mxu0 %v4579
  %5183 = vmatpush.bf16.msra.mxu0 %v4571
  %5184 = vmatpush.bf16.msra.mxu0 %v4563
  %5185 = vmatmul.bf16.gmra.mxu0 %v3451
  %v5186 = vpop.f32.mrf.mxu0
  %v5187 = vadd.f32 %v5174, %v5186
  %v5188 = vpop.f32.mrf.mxu0
  %5189 = vdwg.mxu0
  %5190 = vmatpush.bf16.msra.mxu0 %v4683
  %5191 = vmatpush.bf16.msra.mxu0 %v4675
  %5192 = vmatpush.bf16.msra.mxu0 %v4667
  %5193 = vmatpush.bf16.msra.mxu0 %v4659
  %5194 = vmatpush.bf16.msra.mxu0 %v4651
  %5195 = vmatpush.bf16.msra.mxu0 %v4643
  %5196 = vmatpush.bf16.msra.mxu0 %v4635
  %5197 = vmatpush.bf16.msra.mxu0 %v4627
  %5198 = vmatmul.bf16.gmra.mxu0 %v3452
  %v5199 = vpop.f32.mrf.mxu0
  %v5200 = vadd.f32 %v5187, %v5199
  %v5201 = vpop.f32.mrf.mxu0
  %5202 = vdwg.mxu0
  %5203 = vmatpush.bf16.msra.mxu0 %v4747
  %5204 = vmatpush.bf16.msra.mxu0 %v4739
  %5205 = vmatpush.bf16.msra.mxu0 %v4731
  %5206 = vmatpush.bf16.msra.mxu0 %v4723
  %5207 = vmatpush.bf16.msra.mxu0 %v4715
  %5208 = vmatpush.bf16.msra.mxu0 %v4707
  %5209 = vmatpush.bf16.msra.mxu0 %v4699
  %5210 = vmatpush.bf16.msra.mxu0 %v4691
  %5211 = vmatmul.bf16.gmra.mxu0 %v3453
  %v5212 = vpop.f32.mrf.mxu0
  %v5213 = vadd.f32 %v5200, %v5212
  %v5214 = vpop.f32.mrf.mxu0
  %5215 = vdwg.mxu0
  %5216 = vmatpush.bf16.msra.mxu0 %v4556
  %5217 = vmatpush.bf16.msra.mxu0 %v4548
  %5218 = vmatpush.bf16.msra.mxu0 %v4540
  %5219 = vmatpush.bf16.msra.mxu0 %v4532
  %5220 = vmatpush.bf16.msra.mxu0 %v4524
  %5221 = vmatpush.bf16.msra.mxu0 %v4516
  %5222 = vmatpush.bf16.msra.mxu0 %v4508
  %5223 = vmatpush.bf16.msra.mxu0 %v4500
  %5224 = vmatmul.bf16.gmra.mxu0 %v3450
  %v5225 = vpop.f32.mrf.mxu0
  %v5226 = vadd.f32 %v3716, %v5225
  %v5227 = vpop.f32.mrf.mxu0
  %5228 = vdwg.mxu0
  %5229 = vmatpush.bf16.msra.mxu0 %v4620
  %5230 = vmatpush.bf16.msra.mxu0 %v4612
  %5231 = vmatpush.bf16.msra.mxu0 %v4604
  %5232 = vmatpush.bf16.msra.mxu0 %v4596
  %5233 = vmatpush.bf16.msra.mxu0 %v4588
  %5234 = vmatpush.bf16.msra.mxu0 %v4580
  %5235 = vmatpush.bf16.msra.mxu0 %v4572
  %5236 = vmatpush.bf16.msra.mxu0 %v4564
  %5237 = vmatmul.bf16.gmra.mxu0 %v3451
  %v5238 = vpop.f32.mrf.mxu0
  %v5239 = vadd.f32 %v5226, %v5238
  %v5240 = vpop.f32.mrf.mxu0
  %5241 = vdwg.mxu0
  %5242 = vmatpush.bf16.msra.mxu0 %v4684
  %5243 = vmatpush.bf16.msra.mxu0 %v4676
  %5244 = vmatpush.bf16.msra.mxu0 %v4668
  %5245 = vmatpush.bf16.msra.mxu0 %v4660
  %5246 = vmatpush.bf16.msra.mxu0 %v4652
  %5247 = vmatpush.bf16.msra.mxu0 %v4644
  %5248 = vmatpush.bf16.msra.mxu0 %v4636
  %5249 = vmatpush.bf16.msra.mxu0 %v4628
  %5250 = vmatmul.bf16.gmra.mxu0 %v3452
  %v5251 = vpop.f32.mrf.mxu0
  %v5252 = vadd.f32 %v5239, %v5251
  %v5253 = vpop.f32.mrf.mxu0
  %5254 = vdwg.mxu0
  %5255 = vmatpush.bf16.msra.mxu0 %v4748
  %5256 = vmatpush.bf16.msra.mxu0 %v4740
  %5257 = vmatpush.bf16.msra.mxu0 %v4732
  %5258 = vmatpush.bf16.msra.mxu0 %v4724
  %5259 = vmatpush.bf16.msra.mxu0 %v4716
  %5260 = vmatpush.bf16.msra.mxu0 %v4708
  %5261 = vmatpush.bf16.msra.mxu0 %v4700
  %5262 = vmatpush.bf16.msra.mxu0 %v4692
  %5263 = vmatmul.bf16.gmra.mxu0 %v3453
  %v5264 = vpop.f32.mrf.mxu0
  %v5265 = vadd.f32 %v5252, %v5264
  %v5266 = vpop.f32.mrf.mxu0
  %5267 = vdwg.mxu0
  %5268 = vmatpush.bf16.msra.mxu0 %v4557
  %5269 = vmatpush.bf16.msra.mxu0 %v4549
  %5270 = vmatpush.bf16.msra.mxu0 %v4541
  %5271 = vmatpush.bf16.msra.mxu0 %v4533
  %5272 = vmatpush.bf16.msra.mxu0 %v4525
  %5273 = vmatpush.bf16.msra.mxu0 %v4517
  %5274 = vmatpush.bf16.msra.mxu0 %v4509
  %5275 = vmatpush.bf16.msra.mxu0 %v4501
  %5276 = vmatmul.bf16.gmra.mxu0 %v3450
  %v5277 = vpop.f32.mrf.mxu0
  %v5278 = vadd.f32 %v3717, %v5277
  %v5279 = vpop.f32.mrf.mxu0
  %5280 = vdwg.mxu0
  %5281 = vmatpush.bf16.msra.mxu0 %v4621
  %5282 = vmatpush.bf16.msra.mxu0 %v4613
  %5283 = vmatpush.bf16.msra.mxu0 %v4605
  %5284 = vmatpush.bf16.msra.mxu0 %v4597
  %5285 = vmatpush.bf16.msra.mxu0 %v4589
  %5286 = vmatpush.bf16.msra.mxu0 %v4581
  %5287 = vmatpush.bf16.msra.mxu0 %v4573
  %5288 = vmatpush.bf16.msra.mxu0 %v4565
  %5289 = vmatmul.bf16.gmra.mxu0 %v3451
  %v5290 = vpop.f32.mrf.mxu0
  %v5291 = vadd.f32 %v5278, %v5290
  %v5292 = vpop.f32.mrf.mxu0
  %5293 = vdwg.mxu0
  %5294 = vmatpush.bf16.msra.mxu0 %v4685
  %5295 = vmatpush.bf16.msra.mxu0 %v4677
  %5296 = vmatpush.bf16.msra.mxu0 %v4669
  %5297 = vmatpush.bf16.msra.mxu0 %v4661
  %5298 = vmatpush.bf16.msra.mxu0 %v4653
  %5299 = vmatpush.bf16.msra.mxu0 %v4645
  %5300 = vmatpush.bf16.msra.mxu0 %v4637
  %5301 = vmatpush.bf16.msra.mxu0 %v4629
  %5302 = vmatmul.bf16.gmra.mxu0 %v3452
  %v5303 = vpop.f32.mrf.mxu0
  %v5304 = vadd.f32 %v5291, %v5303
  %v5305 = vpop.f32.mrf.mxu0
  %5306 = vdwg.mxu0
  %5307 = vmatpush.bf16.msra.mxu0 %v4749
  %5308 = vmatpush.bf16.msra.mxu0 %v4741
  %5309 = vmatpush.bf16.msra.mxu0 %v4733
  %5310 = vmatpush.bf16.msra.mxu0 %v4725
  %5311 = vmatpush.bf16.msra.mxu0 %v4717
  %5312 = vmatpush.bf16.msra.mxu0 %v4709
  %5313 = vmatpush.bf16.msra.mxu0 %v4701
  %5314 = vmatpush.bf16.msra.mxu0 %v4693
  %5315 = vmatmul.bf16.gmra.mxu0 %v3453
  %v5316 = vpop.f32.mrf.mxu0
  %v5317 = vadd.f32 %v5304, %v5316
  %v5318 = vpop.f32.mrf.mxu0
  %5319 = vdwg.mxu0
  %5320 = vmatpush.bf16.msra.mxu0 %v4558
  %5321 = vmatpush.bf16.msra.mxu0 %v4550
  %5322 = vmatpush.bf16.msra.mxu0 %v4542
  %5323 = vmatpush.bf16.msra.mxu0 %v4534
  %5324 = vmatpush.bf16.msra.mxu0 %v4526
  %5325 = vmatpush.bf16.msra.mxu0 %v4518
  %5326 = vmatpush.bf16.msra.mxu0 %v4510
  %5327 = vmatpush.bf16.msra.mxu0 %v4502
  %5328 = vmatmul.bf16.gmra.mxu0 %v3450
  %v5329 = vpop.f32.mrf.mxu0
  %v5330 = vadd.f32 %v3718, %v5329
  %v5331 = vpop.f32.mrf.mxu0
  %5332 = vdwg.mxu0
  %5333 = vmatpush.bf16.msra.mxu0 %v4622
  %5334 = vmatpush.bf16.msra.mxu0 %v4614
  %5335 = vmatpush.bf16.msra.mxu0 %v4606
  %5336 = vmatpush.bf16.msra.mxu0 %v4598
  %5337 = vmatpush.bf16.msra.mxu0 %v4590
  %5338 = vmatpush.bf16.msra.mxu0 %v4582
  %5339 = vmatpush.bf16.msra.mxu0 %v4574
  %5340 = vmatpush.bf16.msra.mxu0 %v4566
  %5341 = vmatmul.bf16.gmra.mxu0 %v3451
  %v5342 = vpop.f32.mrf.mxu0
  %v5343 = vadd.f32 %v5330, %v5342
  %v5344 = vpop.f32.mrf.mxu0
  %5345 = vdwg.mxu0
  %5346 = vmatpush.bf16.msra.mxu0 %v4686
  %5347 = vmatpush.bf16.msra.mxu0 %v4678
  %5348 = vmatpush.bf16.msra.mxu0 %v4670
  %5349 = vmatpush.bf16.msra.mxu0 %v4662
  %5350 = vmatpush.bf16.msra.mxu0 %v4654
  %5351 = vmatpush.bf16.msra.mxu0 %v4646
  %5352 = vmatpush.bf16.msra.mxu0 %v4638
  %5353 = vmatpush.bf16.msra.mxu0 %v4630
  %5354 = vmatmul.bf16.gmra.mxu0 %v3452
  %v5355 = vpop.f32.mrf.mxu0
  %v5356 = vadd.f32 %v5343, %v5355
  %v5357 = vpop.f32.mrf.mxu0
  %5358 = vdwg.mxu0
  %5359 = vmatpush.bf16.msra.mxu0 %v4750
  %5360 = vmatpush.bf16.msra.mxu0 %v4742
  %5361 = vmatpush.bf16.msra.mxu0 %v4734
  %5362 = vmatpush.bf16.msra.mxu0 %v4726
  %5363 = vmatpush.bf16.msra.mxu0 %v4718
  %5364 = vmatpush.bf16.msra.mxu0 %v4710
  %5365 = vmatpush.bf16.msra.mxu0 %v4702
  %5366 = vmatpush.bf16.msra.mxu0 %v4694
  %5367 = vmatmul.bf16.gmra.mxu0 %v3453
  %v5368 = vpop.f32.mrf.mxu0
  %v5369 = vadd.f32 %v5356, %v5368
  %v5370 = vpop.f32.mrf.mxu0
  %5371 = vdwg.mxu0
  %5372 = vmatpush.bf16.msra.mxu0 %v4559
  %5373 = vmatpush.bf16.msra.mxu0 %v4551
  %5374 = vmatpush.bf16.msra.mxu0 %v4543
  %5375 = vmatpush.bf16.msra.mxu0 %v4535
  %5376 = vmatpush.bf16.msra.mxu0 %v4527
  %5377 = vmatpush.bf16.msra.mxu0 %v4519
  %5378 = vmatpush.bf16.msra.mxu0 %v4511
  %5379 = vmatpush.bf16.msra.mxu0 %v4503
  %5380 = vmatmul.bf16.gmra.mxu0 %v3450
  %v5381 = vpop.f32.mrf.mxu0
  %v5382 = vadd.f32 %v3719, %v5381
  %v5383 = vpop.f32.mrf.mxu0
  %5384 = vdwg.mxu0
  %5385 = vmatpush.bf16.msra.mxu0 %v4623
  %5386 = vmatpush.bf16.msra.mxu0 %v4615
  %5387 = vmatpush.bf16.msra.mxu0 %v4607
  %5388 = vmatpush.bf16.msra.mxu0 %v4599
  %5389 = vmatpush.bf16.msra.mxu0 %v4591
  %5390 = vmatpush.bf16.msra.mxu0 %v4583
  %5391 = vmatpush.bf16.msra.mxu0 %v4575
  %5392 = vmatpush.bf16.msra.mxu0 %v4567
  %5393 = vmatmul.bf16.gmra.mxu0 %v3451
  %v5394 = vpop.f32.mrf.mxu0
  %v5395 = vadd.f32 %v5382, %v5394
  %v5396 = vpop.f32.mrf.mxu0
  %5397 = vdwg.mxu0
  %5398 = vmatpush.bf16.msra.mxu0 %v4687
  %5399 = vmatpush.bf16.msra.mxu0 %v4679
  %5400 = vmatpush.bf16.msra.mxu0 %v4671
  %5401 = vmatpush.bf16.msra.mxu0 %v4663
  %5402 = vmatpush.bf16.msra.mxu0 %v4655
  %5403 = vmatpush.bf16.msra.mxu0 %v4647
  %5404 = vmatpush.bf16.msra.mxu0 %v4639
  %5405 = vmatpush.bf16.msra.mxu0 %v4631
  %5406 = vmatmul.bf16.gmra.mxu0 %v3452
  %v5407 = vpop.f32.mrf.mxu0
  %v5408 = vadd.f32 %v5395, %v5407
  %v5409 = vpop.f32.mrf.mxu0
  %5410 = vdwg.mxu0
  %5411 = vmatpush.bf16.msra.mxu0 %v4751
  %5412 = vmatpush.bf16.msra.mxu0 %v4743
  %5413 = vmatpush.bf16.msra.mxu0 %v4735
  %5414 = vmatpush.bf16.msra.mxu0 %v4727
  %5415 = vmatpush.bf16.msra.mxu0 %v4719
  %5416 = vmatpush.bf16.msra.mxu0 %v4711
  %5417 = vmatpush.bf16.msra.mxu0 %v4703
  %5418 = vmatpush.bf16.msra.mxu0 %v4695
  %5419 = vmatmul.bf16.gmra.mxu0 %v3453
  %v5420 = vpop.f32.mrf.mxu0
  %v5421 = vadd.f32 %v5408, %v5420
  %v5422 = vpop.f32.mrf.mxu0
  %5423 = vdwg.mxu0
  %v5424 = vmax.f32 %v5057, 0.0
  %v5425 = vmax.f32 %v5109, 0.0
  %v5426 = vmax.f32 %v5161, 0.0
  %v5427 = vmax.f32 %v5213, 0.0
  %v5428 = vmax.f32 %v5265, 0.0
  %v5429 = vmax.f32 %v5317, 0.0
  %v5430 = vmax.f32 %v5369, 0.0
  %v5431 = vmax.f32 %v5421, 0.0
  %5432 = vst [vmem:[%s11] sm:$0xff] %v5424
  %5433 = vst [vmem:[%s11 + $0x8] sm:$0xff] %v5425
  %5434 = vst [vmem:[%s11 + $0x10] sm:$0xff] %v5426
  %5435 = vst [vmem:[%s11 + $0x18] sm:$0xff] %v5427
  %5436 = vst [vmem:[%s11 + $0x20] sm:$0xff] %v5428
  %5437 = vst [vmem:[%s11 + $0x28] sm:$0xff] %v5429
  %5438 = vst [vmem:[%s11 + $0x30] sm:$0xff] %v5430
  %5439 = vst [vmem:[%s11 + $0x38] sm:$0xff] %v5431
  // Predicated region
  $region46: #{forward.1} parent=0 // pred_check
    _
  $region47: #{forward.1} parent=0 // pred_check_branch
    %5441 = sbr.rel (0) target = $region49
  $region48: #{forward.1} parent=0 // pred_region
    _
  $region49: #{forward.1} parent=0 // pred_fallthru
    _
  // Predicated region
  $region50: #{forward.1} parent=0 // pred_check
    _
  $region51: #{forward.1} parent=0 // pred_check_branch
    %5443 = sbr.rel (0) target = $region53
  $region52: #{forward.1} parent=0 // pred_region
    _
  $region53: #{forward.1} parent=0 // pred_fallthru
    _

</llo_original>
